<compile_context>
chip_gen: v7x
topology: tpu7x:2x2x1
jax: 0.10.0
libtpu: 0.0.40
codegen_flags: <defaults>
</compile_context>

<pallas_src>
import functools

import jax
import jax.numpy as jnp
from jax.experimental import pallas as pl
from jax.experimental.pallas import tpu as pltpu

# ---- small synthetic config consistent with a BERT-style text encoder ----
VOCAB = 128
MAX_POS = 16
HIDDEN = 32
N_HEADS = 4
HEAD_DIM = HIDDEN // N_HEADS
INTERMEDIATE = 64
N_LAYERS = 2
LN_EPS = 1e-12


# ----------------------------- helpers --------------------------------------
def _ln(x, g, b):
    mean = jnp.mean(x, axis=-1, keepdims=True)
    var = jnp.mean(jnp.square(x - mean), axis=-1, keepdims=True)
    return (x - mean) * jax.lax.rsqrt(var + LN_EPS) * g + b


def _gelu(y):
    # TODO(synk): HF/Chinese-CLIP BERT uses exact erf-GELU; tanh approximation
    # used here since erf is not guaranteed to lower in Mosaic (~1e-3 deviation).
    c = jnp.float32(0.7978845608028654)  # sqrt(2/pi)
    return 0.5 * y * (1.0 + jnp.tanh(c * (y + 0.044715 * y * y * y)))


# ----------------------------- fused kernel ---------------------------------
def _encoder_kernel(x_ref, bias_ref, embg_ref, embb_ref,
                    wqkv_ref, bqkv_ref, wao_ref, bao_ref,
                    ln1g_ref, ln1b_ref, wi_ref, bi_ref, wo_ref, bo_ref,
                    ln2g_ref, ln2b_ref,
                    o_ref, *, batch, seq, n_layers):
    bs = batch * seq

    # Embedding LayerNorm seeds the running activation; it stays resident for
    # the whole (unrolled) layer stack — no HBM round-trips between layers.
    x = _ln(x_ref[...].astype(jnp.float32), embg_ref[...], embb_ref[...])
    bias = bias_ref[...]            # [nH*B, S, S] dense additive mask, loaded once

    for l in range(n_layers):       # L == 2: fully unrolled, single kernel launch
        # ---- fused QKV projection (1/sqrt(Dh) folded into the Q columns) ----
        qkv = jnp.dot(x, wqkv_ref[l], preferred_element_type=jnp.float32) + bqkv_ref[l]
        q = qkv[:, 0:HIDDEN]
        k = qkv[:, HIDDEN:2 * HIDDEN]
        v = qkv[:, 2 * HIDDEN:3 * HIDDEN]

        # ---- head-batched attention over all (head, batch) groups ----
        def to_groups(t):           # [B*S, H] -> [nH*B, S, Dh]  (group g = h*B + b)
            return jnp.concatenate(
                [t[:, h * HEAD_DIM:(h + 1) * HEAD_DIM].reshape(batch, seq, HEAD_DIM)
                 for h in range(N_HEADS)], axis=0)

        qh, kh, vh = to_groups(q), to_groups(k), to_groups(v)

        s = jnp.einsum('gqd,gkd->gqk', qh, kh,
                       preferred_element_type=jnp.float32) + bias   # [nH*B, S, S]
        s = s - jnp.max(s, axis=-1, keepdims=True)
        p = jnp.exp(s)
        p = p / jnp.sum(p, axis=-1, keepdims=True)                  # exact softmax
        ctx = jnp.einsum('gqk,gkd->gqd', p, vh,
                         preferred_element_type=jnp.float32)        # [nH*B, S, Dh]

        # [nH*B, S, Dh] -> [B*S, H]: head blocks back into the lane dim, then a
        # single attention-output projection matmul.
        ctx2 = jnp.concatenate(
            [ctx[h * batch:(h + 1) * batch].reshape(bs, HEAD_DIM)
             for h in range(N_HEADS)], axis=1)
        ao = jnp.dot(ctx2, wao_ref[l], preferred_element_type=jnp.float32) + bao_ref[l]
        h1 = _ln(ao + x, ln1g_ref[l], ln1b_ref[l])

        # ---- feed-forward ----
        inter = _gelu(jnp.dot(h1, wi_ref[l],
                              preferred_element_type=jnp.float32) + bi_ref[l])
        out = jnp.dot(inter, wo_ref[l],
                      preferred_element_type=jnp.float32) + bo_ref[l]
        x = _ln(out + h1, ln2g_ref[l], ln2b_ref[l])

    # The module only needs last_hidden_state[:, 0, :]: store just the CLS rows.
    o_ref[...] = x.reshape(batch, seq, HIDDEN)[:, 0, :].astype(o_ref.dtype)


# ----------------------------- wrapper ---------------------------------------
def text_intent_encoder(input_ids, attention_mask, params):
    B, S = input_ids.shape
    assert S <= MAX_POS
    BS = B * S
    L = len(params["layers"])

    # ---- embeddings (tiny data-dependent gather stays in XLA) ----
    we = jnp.take(params["word_emb"], input_ids, axis=0)          # [B, S, H]
    pe = params["pos_emb"][:S][None, :, :]                        # [1, S, H]
    te = params["type_emb"][0][None, None, :]                     # token_type_ids == 0
    x_emb = (we + pe + te).astype(jnp.float32).reshape(BS, HIDDEN)

    # Dense additive mask, precomputed once:  (1 - mask) * -1e9, [nH*B, S, S]
    neg = (1.0 - attention_mask.astype(jnp.float32)) * jnp.float32(-1e9)   # [B, S]
    bias = jnp.broadcast_to(neg[:, None, :], (B, S, S))
    bias = jnp.tile(bias, (N_HEADS, 1, 1))                                 # [nH*B, S, S]

    # ---- stack per-layer weights; fuse QKV and fold 1/sqrt(Dh) into Q ----
    scale = jnp.float32(1.0 / (HEAD_DIM ** 0.5))

    def stack(f):
        return jnp.stack([f(lp) for lp in params["layers"]], axis=0)

    wqkv = stack(lambda p: jnp.concatenate([p["q_w"] * scale, p["k_w"], p["v_w"]], axis=1))
    bqkv = stack(lambda p: jnp.concatenate([p["q_b"] * scale, p["k_b"], p["v_b"]])
                 ).reshape(L, 1, 3 * HIDDEN)
    wao = stack(lambda p: p["ao_w"])
    bao = stack(lambda p: p["ao_b"]).reshape(L, 1, HIDDEN)
    ln1g = stack(lambda p: p["ln1_g"]).reshape(L, 1, HIDDEN)
    ln1b = stack(lambda p: p["ln1_b"]).reshape(L, 1, HIDDEN)
    wi = stack(lambda p: p["i_w"])
    bi = stack(lambda p: p["i_b"]).reshape(L, 1, INTERMEDIATE)
    wo = stack(lambda p: p["o_w"])
    bo = stack(lambda p: p["o_b"]).reshape(L, 1, HIDDEN)
    ln2g = stack(lambda p: p["ln2_g"]).reshape(L, 1, HIDDEN)
    ln2b = stack(lambda p: p["ln2_b"]).reshape(L, 1, HIDDEN)

    embg = params["emb_ln_g"].reshape(1, HIDDEN)
    embb = params["emb_ln_b"].reshape(1, HIDDEN)

    kernel = functools.partial(_encoder_kernel, batch=B, seq=S, n_layers=L)
    vmem = pl.BlockSpec(memory_space=pltpu.MemorySpace.VMEM)

    # TODO(synk): for production Chinese-CLIP sizes (H=768, I=3072, 12 layers)
    # add K/N-tiled BlockSpecs with an f32 accumulator, bf16 weights, an
    # explicit vmem_limit_bytes, and (on v7x) a batch-'parallel' grid axis for
    # the second TensorCore. At this toy size (~70 KiB of f32 weights) the
    # whole model fits VMEM in one grid step on every TPU generation.
    cls = pl.pallas_call(
        kernel,
        out_shape=jax.ShapeDtypeStruct((B, HIDDEN), jnp.float32),
        in_specs=[vmem] * 16,
        out_specs=vmem,
    )(x_emb, bias, embg, embb, wqkv, bqkv, wao, bao,
      ln1g, ln1b, wi, bi, wo, bo, ln2g, ln2b)

    return cls                       # == last_hidden_state[:, 0, :]


# ----------------------------- params ----------------------------------------
def init_params(key):
    def norm(k, shape, scale=0.02):
        return scale * jax.random.normal(k, shape, dtype=jnp.float32)

    keys = jax.random.split(key, 3 + N_LAYERS)
    params = {
        "word_emb": norm(keys[0], (VOCAB, HIDDEN)),
        "pos_emb": norm(keys[1], (MAX_POS, HIDDEN)),
        "type_emb": norm(keys[2], (2, HIDDEN)),
        "emb_ln_g": jnp.ones((HIDDEN,), jnp.float32),
        "emb_ln_b": jnp.zeros((HIDDEN,), jnp.float32),
        "layers": [],
    }
    for li in range(N_LAYERS):
        ks = jax.random.split(keys[3 + li], 6)
        lp = {
            "q_w": norm(ks[0], (HIDDEN, HIDDEN)), "q_b": jnp.zeros((HIDDEN,), jnp.float32),
            "k_w": norm(ks[1], (HIDDEN, HIDDEN)), "k_b": jnp.zeros((HIDDEN,), jnp.float32),
            "v_w": norm(ks[2], (HIDDEN, HIDDEN)), "v_b": jnp.zeros((HIDDEN,), jnp.float32),
            "ao_w": norm(ks[3], (HIDDEN, HIDDEN)), "ao_b": jnp.zeros((HIDDEN,), jnp.float32),
            "ln1_g": jnp.ones((HIDDEN,), jnp.float32), "ln1_b": jnp.zeros((HIDDEN,), jnp.float32),
            "i_w": norm(ks[4], (HIDDEN, INTERMEDIATE)), "i_b": jnp.zeros((INTERMEDIATE,), jnp.float32),
            "o_w": norm(ks[5], (INTERMEDIATE, HIDDEN)), "o_b": jnp.zeros((HIDDEN,), jnp.float32),
            "ln2_g": jnp.ones((HIDDEN,), jnp.float32), "ln2_b": jnp.zeros((HIDDEN,), jnp.float32),
        }
        params["layers"].append(lp)
    return params


# ----------------------------- main -------------------------------------------
if __name__ == "__main__":
    key = jax.random.PRNGKey(0)
    k_params, k_ids = jax.random.split(key)
    params = init_params(k_params)

    B, S = 2, 8
    input_ids = jax.random.randint(k_ids, (B, S), 0, VOCAB, dtype=jnp.int32)
    attention_mask = jnp.array(
        [[1, 1, 1, 1, 1, 1, 1, 1],
         [1, 1, 1, 1, 1, 1, 0, 0]], dtype=jnp.int32)

    out = text_intent_encoder(input_ids, attention_mask, params)
    out = jax.block_until_ready(out)
    assert out.shape == (B, HIDDEN) and out.dtype == jnp.float32
    print("KERNEL_OK")
</pallas_src>

<mosaic_0001>
module attributes {stable_mosaic.version = 11 : i64} {
  func.func @_encoder_kernel(%arg0: memref<16x32xf32, #tpu.memory_space<vmem>>, %arg1: memref<8x8x8xf32, #tpu.memory_space<vmem>>, %arg2: memref<1x32xf32, #tpu.memory_space<vmem>>, %arg3: memref<1x32xf32, #tpu.memory_space<vmem>>, %arg4: memref<2x32x96xf32, #tpu.memory_space<vmem>>, %arg5: memref<2x1x96xf32, #tpu.memory_space<vmem>>, %arg6: memref<2x32x32xf32, #tpu.memory_space<vmem>>, %arg7: memref<2x1x32xf32, #tpu.memory_space<vmem>>, %arg8: memref<2x1x32xf32, #tpu.memory_space<vmem>>, %arg9: memref<2x1x32xf32, #tpu.memory_space<vmem>>, %arg10: memref<2x32x64xf32, #tpu.memory_space<vmem>>, %arg11: memref<2x1x64xf32, #tpu.memory_space<vmem>>, %arg12: memref<2x64x32xf32, #tpu.memory_space<vmem>>, %arg13: memref<2x1x32xf32, #tpu.memory_space<vmem>>, %arg14: memref<2x1x32xf32, #tpu.memory_space<vmem>>, %arg15: memref<2x1x32xf32, #tpu.memory_space<vmem>>, %arg16: memref<2x32xf32, #tpu.memory_space<vmem>>) attributes {dimension_semantics = [], scalar_prefetch = 0 : i64, scratch_operands = 0 : i64, tpu.core_type = #tpu.core_type<tc>} {
    %c0 = arith.constant 0 : index
    %c0_0 = arith.constant 0 : index
    %0 = vector.load %arg0[%c0, %c0_0] : memref<16x32xf32, #tpu.memory_space<vmem>>, vector<16x32xf32>
    %c0_1 = arith.constant 0 : index
    %c0_2 = arith.constant 0 : index
    %1 = vector.load %arg2[%c0_1, %c0_2] : memref<1x32xf32, #tpu.memory_space<vmem>>, vector<1x32xf32>
    %c0_3 = arith.constant 0 : index
    %c0_4 = arith.constant 0 : index
    %2 = vector.load %arg3[%c0_3, %c0_4] : memref<1x32xf32, #tpu.memory_space<vmem>>, vector<1x32xf32>
    %cst = arith.constant dense<0.000000e+00> : vector<16xf32>
    %3 = vector.multi_reduction <add>, %0, %cst [1] : vector<16x32xf32> to vector<16xf32>
    %4 = vector.shape_cast %3 : vector<16xf32> to vector<16x1xf32>
    %cst_5 = arith.constant 3.200000e+01 : f32
    %5 = vector.broadcast %cst_5 : f32 to vector<16x1xf32>
    %6 = arith.divf %4, %5 : vector<16x1xf32>
    %7 = vector.broadcast %6 : vector<16x1xf32> to vector<16x32xf32>
    %8 = arith.subf %0, %7 : vector<16x32xf32>
    %9 = arith.mulf %8, %8 : vector<16x32xf32>
    %cst_6 = arith.constant dense<0.000000e+00> : vector<16xf32>
    %10 = vector.multi_reduction <add>, %9, %cst_6 [1] : vector<16x32xf32> to vector<16xf32>
    %11 = vector.shape_cast %10 : vector<16xf32> to vector<16x1xf32>
    %cst_7 = arith.constant 3.200000e+01 : f32
    %12 = vector.broadcast %cst_7 : f32 to vector<16x1xf32>
    %13 = arith.divf %11, %12 : vector<16x1xf32>
    %14 = vector.broadcast %6 : vector<16x1xf32> to vector<16x32xf32>
    %15 = arith.subf %0, %14 : vector<16x32xf32>
    %cst_8 = arith.constant 9.99999996E-13 : f32
    %16 = vector.broadcast %cst_8 : f32 to vector<16x1xf32>
    %17 = arith.addf %13, %16 : vector<16x1xf32>
    %18 = math.rsqrt %17 : vector<16x1xf32>
    %19 = vector.broadcast %18 : vector<16x1xf32> to vector<16x32xf32>
    %20 = arith.mulf %15, %19 : vector<16x32xf32>
    %21 = vector.broadcast %1 : vector<1x32xf32> to vector<16x32xf32>
    %22 = arith.mulf %20, %21 : vector<16x32xf32>
    %23 = vector.broadcast %2 : vector<1x32xf32> to vector<16x32xf32>
    %24 = arith.addf %22, %23 : vector<16x32xf32>
    %c0_9 = arith.constant 0 : index
    %c0_10 = arith.constant 0 : index
    %c0_11 = arith.constant 0 : index
    %25 = vector.load %arg1[%c0_9, %c0_10, %c0_11] : memref<8x8x8xf32, #tpu.memory_space<vmem>>, vector<8x8x8xf32>
    %c0_12 = arith.constant 0 : index
    %c0_13 = arith.constant 0 : index
    %c0_14 = arith.constant 0 : index
    %26 = vector.load %arg4[%c0_12, %c0_13, %c0_14] : memref<2x32x96xf32, #tpu.memory_space<vmem>>, vector<1x32x96xf32>
    %27 = vector.shape_cast %26 : vector<1x32x96xf32> to vector<32x96xf32>
    %cst_15 = arith.constant dense<0.000000e+00> : vector<16x96xf32>
    %28 = tpu.matmul %24, %27, %cst_15 {dimension_numbers = #tpu.dot_dimension_numbers<[1], [0], [0], [1], [0, 0, 1, 1], [], []>} : vector<16x32xf32>, vector<32x96xf32>, vector<16x96xf32> -> vector<16x96xf32>
    %c0_16 = arith.constant 0 : index
    %c0_17 = arith.constant 0 : index
    %c0_18 = arith.constant 0 : index
    %29 = vector.load %arg5[%c0_16, %c0_17, %c0_18] : memref<2x1x96xf32, #tpu.memory_space<vmem>>, vector<1x1x96xf32>
    %30 = vector.shape_cast %29 : vector<1x1x96xf32> to vector<1x96xf32>
    %31 = vector.broadcast %30 : vector<1x96xf32> to vector<16x96xf32>
    %32 = arith.addf %28, %31 : vector<16x96xf32>
    %33 = vector.extract_strided_slice %32 {offsets = [0, 0], sizes = [16, 32], strides = [1, 1]} : vector<16x96xf32> to vector<16x32xf32>
    %34 = vector.extract_strided_slice %32 {offsets = [0, 32], sizes = [16, 32], strides = [1, 1]} : vector<16x96xf32> to vector<16x32xf32>
    %35 = vector.extract_strided_slice %32 {offsets = [0, 64], sizes = [16, 32], strides = [1, 1]} : vector<16x96xf32> to vector<16x32xf32>
    %36 = vector.extract_strided_slice %33 {offsets = [0, 0], sizes = [16, 8], strides = [1, 1]} : vector<16x32xf32> to vector<16x8xf32>
    %37 = vector.shape_cast %36 : vector<16x8xf32> to vector<2x8x8xf32>
    %38 = vector.extract_strided_slice %33 {offsets = [0, 8], sizes = [16, 8], strides = [1, 1]} : vector<16x32xf32> to vector<16x8xf32>
    %39 = vector.shape_cast %38 : vector<16x8xf32> to vector<2x8x8xf32>
    %40 = vector.extract_strided_slice %33 {offsets = [0, 16], sizes = [16, 8], strides = [1, 1]} : vector<16x32xf32> to vector<16x8xf32>
    %41 = vector.shape_cast %40 : vector<16x8xf32> to vector<2x8x8xf32>
    %42 = vector.extract_strided_slice %33 {offsets = [0, 24], sizes = [16, 8], strides = [1, 1]} : vector<16x32xf32> to vector<16x8xf32>
    %43 = vector.shape_cast %42 : vector<16x8xf32> to vector<2x8x8xf32>
    %44 = tpu.concatenate %37, %39, %41, %43 in 0 : vector<2x8x8xf32>, vector<2x8x8xf32>, vector<2x8x8xf32>, vector<2x8x8xf32> -> vector<8x8x8xf32>
    %45 = vector.extract_strided_slice %34 {offsets = [0, 0], sizes = [16, 8], strides = [1, 1]} : vector<16x32xf32> to vector<16x8xf32>
    %46 = vector.shape_cast %45 : vector<16x8xf32> to vector<2x8x8xf32>
    %47 = vector.extract_strided_slice %34 {offsets = [0, 8], sizes = [16, 8], strides = [1, 1]} : vector<16x32xf32> to vector<16x8xf32>
    %48 = vector.shape_cast %47 : vector<16x8xf32> to vector<2x8x8xf32>
    %49 = vector.extract_strided_slice %34 {offsets = [0, 16], sizes = [16, 8], strides = [1, 1]} : vector<16x32xf32> to vector<16x8xf32>
    %50 = vector.shape_cast %49 : vector<16x8xf32> to vector<2x8x8xf32>
    %51 = vector.extract_strided_slice %34 {offsets = [0, 24], sizes = [16, 8], strides = [1, 1]} : vector<16x32xf32> to vector<16x8xf32>
    %52 = vector.shape_cast %51 : vector<16x8xf32> to vector<2x8x8xf32>
    %53 = tpu.concatenate %46, %48, %50, %52 in 0 : vector<2x8x8xf32>, vector<2x8x8xf32>, vector<2x8x8xf32>, vector<2x8x8xf32> -> vector<8x8x8xf32>
    %54 = vector.extract_strided_slice %35 {offsets = [0, 0], sizes = [16, 8], strides = [1, 1]} : vector<16x32xf32> to vector<16x8xf32>
    %55 = vector.shape_cast %54 : vector<16x8xf32> to vector<2x8x8xf32>
    %56 = vector.extract_strided_slice %35 {offsets = [0, 8], sizes = [16, 8], strides = [1, 1]} : vector<16x32xf32> to vector<16x8xf32>
    %57 = vector.shape_cast %56 : vector<16x8xf32> to vector<2x8x8xf32>
    %58 = vector.extract_strided_slice %35 {offsets = [0, 16], sizes = [16, 8], strides = [1, 1]} : vector<16x32xf32> to vector<16x8xf32>
    %59 = vector.shape_cast %58 : vector<16x8xf32> to vector<2x8x8xf32>
    %60 = vector.extract_strided_slice %35 {offsets = [0, 24], sizes = [16, 8], strides = [1, 1]} : vector<16x32xf32> to vector<16x8xf32>
    %61 = vector.shape_cast %60 : vector<16x8xf32> to vector<2x8x8xf32>
    %62 = tpu.concatenate %55, %57, %59, %61 in 0 : vector<2x8x8xf32>, vector<2x8x8xf32>, vector<2x8x8xf32>, vector<2x8x8xf32> -> vector<8x8x8xf32>
    "tpu.trace_start"() <{level = 10 : i32, message = "gqd,gkd->gqk"}> : () -> ()
    %cst_19 = arith.constant dense<0.000000e+00> : vector<8x8x8xf32>
    %63 = tpu.matmul %44, %53, %cst_19 {dimension_numbers = #tpu.dot_dimension_numbers<[2], [2], [1], [1], [0, 0, 0, 1, 1, 1], [0], [0]>} : vector<8x8x8xf32>, vector<8x8x8xf32>, vector<8x8x8xf32> -> vector<8x8x8xf32>
    "tpu.trace_stop"() : () -> ()
    %64 = arith.addf %63, %25 : vector<8x8x8xf32>
    %cst_20 = arith.constant dense<0xFF800000> : vector<8x8xf32>
    %65 = vector.multi_reduction <maximumf>, %64, %cst_20 [2] : vector<8x8x8xf32> to vector<8x8xf32>
    %66 = vector.shape_cast %65 : vector<8x8xf32> to vector<8x8x1xf32>
    %67 = vector.broadcast %66 : vector<8x8x1xf32> to vector<8x8x8xf32>
    %68 = arith.subf %64, %67 : vector<8x8x8xf32>
    %69 = math.exp %68 : vector<8x8x8xf32>
    %cst_21 = arith.constant dense<0.000000e+00> : vector<8x8xf32>
    %70 = vector.multi_reduction <add>, %69, %cst_21 [2] : vector<8x8x8xf32> to vector<8x8xf32>
    %71 = vector.shape_cast %70 : vector<8x8xf32> to vector<8x8x1xf32>
    %72 = vector.broadcast %71 : vector<8x8x1xf32> to vector<8x8x8xf32>
    %73 = arith.divf %69, %72 : vector<8x8x8xf32>
    "tpu.trace_start"() <{level = 10 : i32, message = "gqk,gkd->gqd"}> : () -> ()
    %cst_22 = arith.constant dense<0.000000e+00> : vector<8x8x8xf32>
    %74 = tpu.matmul %73, %62, %cst_22 {dimension_numbers = #tpu.dot_dimension_numbers<[2], [1], [1], [2], [0, 0, 0, 1, 1, 2], [0], [0]>} : vector<8x8x8xf32>, vector<8x8x8xf32>, vector<8x8x8xf32> -> vector<8x8x8xf32>
    "tpu.trace_stop"() : () -> ()
    %75 = vector.extract_strided_slice %74 {offsets = [0, 0, 0], sizes = [2, 8, 8], strides = [1, 1, 1]} : vector<8x8x8xf32> to vector<2x8x8xf32>
    %76 = vector.shape_cast %75 : vector<2x8x8xf32> to vector<16x8xf32>
    %77 = vector.extract_strided_slice %74 {offsets = [2, 0, 0], sizes = [2, 8, 8], strides = [1, 1, 1]} : vector<8x8x8xf32> to vector<2x8x8xf32>
    %78 = vector.shape_cast %77 : vector<2x8x8xf32> to vector<16x8xf32>
    %79 = vector.extract_strided_slice %74 {offsets = [4, 0, 0], sizes = [2, 8, 8], strides = [1, 1, 1]} : vector<8x8x8xf32> to vector<2x8x8xf32>
    %80 = vector.shape_cast %79 : vector<2x8x8xf32> to vector<16x8xf32>
    %81 = vector.extract_strided_slice %74 {offsets = [6, 0, 0], sizes = [2, 8, 8], strides = [1, 1, 1]} : vector<8x8x8xf32> to vector<2x8x8xf32>
    %82 = vector.shape_cast %81 : vector<2x8x8xf32> to vector<16x8xf32>
    %83 = tpu.concatenate %76, %78, %80, %82 in 1 : vector<16x8xf32>, vector<16x8xf32>, vector<16x8xf32>, vector<16x8xf32> -> vector<16x32xf32>
    %c0_23 = arith.constant 0 : index
    %c0_24 = arith.constant 0 : index
    %c0_25 = arith.constant 0 : index
    %84 = vector.load %arg6[%c0_23, %c0_24, %c0_25] : memref<2x32x32xf32, #tpu.memory_space<vmem>>, vector<1x32x32xf32>
    %85 = vector.shape_cast %84 : vector<1x32x32xf32> to vector<32x32xf32>
    %cst_26 = arith.constant dense<0.000000e+00> : vector<16x32xf32>
    %86 = tpu.matmul %83, %85, %cst_26 {dimension_numbers = #tpu.dot_dimension_numbers<[1], [0], [0], [1], [0, 0, 1, 1], [], []>} : vector<16x32xf32>, vector<32x32xf32>, vector<16x32xf32> -> vector<16x32xf32>
    %c0_27 = arith.constant 0 : index
    %c0_28 = arith.constant 0 : index
    %c0_29 = arith.constant 0 : index
    %87 = vector.load %arg7[%c0_27, %c0_28, %c0_29] : memref<2x1x32xf32, #tpu.memory_space<vmem>>, vector<1x1x32xf32>
    %88 = vector.shape_cast %87 : vector<1x1x32xf32> to vector<1x32xf32>
    %89 = vector.broadcast %88 : vector<1x32xf32> to vector<16x32xf32>
    %90 = arith.addf %86, %89 : vector<16x32xf32>
    %91 = arith.addf %90, %24 : vector<16x32xf32>
    %c0_30 = arith.constant 0 : index
    %c0_31 = arith.constant 0 : index
    %c0_32 = arith.constant 0 : index
    %92 = vector.load %arg8[%c0_30, %c0_31, %c0_32] : memref<2x1x32xf32, #tpu.memory_space<vmem>>, vector<1x1x32xf32>
    %93 = vector.shape_cast %92 : vector<1x1x32xf32> to vector<1x32xf32>
    %c0_33 = arith.constant 0 : index
    %c0_34 = arith.constant 0 : index
    %c0_35 = arith.constant 0 : index
    %94 = vector.load %arg9[%c0_33, %c0_34, %c0_35] : memref<2x1x32xf32, #tpu.memory_space<vmem>>, vector<1x1x32xf32>
    %95 = vector.shape_cast %94 : vector<1x1x32xf32> to vector<1x32xf32>
    %cst_36 = arith.constant dense<0.000000e+00> : vector<16xf32>
    %96 = vector.multi_reduction <add>, %91, %cst_36 [1] : vector<16x32xf32> to vector<16xf32>
    %97 = vector.shape_cast %96 : vector<16xf32> to vector<16x1xf32>
    %cst_37 = arith.constant 3.200000e+01 : f32
    %98 = vector.broadcast %cst_37 : f32 to vector<16x1xf32>
    %99 = arith.divf %97, %98 : vector<16x1xf32>
    %100 = vector.broadcast %99 : vector<16x1xf32> to vector<16x32xf32>
    %101 = arith.subf %91, %100 : vector<16x32xf32>
    %102 = arith.mulf %101, %101 : vector<16x32xf32>
    %cst_38 = arith.constant dense<0.000000e+00> : vector<16xf32>
    %103 = vector.multi_reduction <add>, %102, %cst_38 [1] : vector<16x32xf32> to vector<16xf32>
    %104 = vector.shape_cast %103 : vector<16xf32> to vector<16x1xf32>
    %cst_39 = arith.constant 3.200000e+01 : f32
    %105 = vector.broadcast %cst_39 : f32 to vector<16x1xf32>
    %106 = arith.divf %104, %105 : vector<16x1xf32>
    %107 = vector.broadcast %99 : vector<16x1xf32> to vector<16x32xf32>
    %108 = arith.subf %91, %107 : vector<16x32xf32>
    %cst_40 = arith.constant 9.99999996E-13 : f32
    %109 = vector.broadcast %cst_40 : f32 to vector<16x1xf32>
    %110 = arith.addf %106, %109 : vector<16x1xf32>
    %111 = math.rsqrt %110 : vector<16x1xf32>
    %112 = vector.broadcast %111 : vector<16x1xf32> to vector<16x32xf32>
    %113 = arith.mulf %108, %112 : vector<16x32xf32>
    %114 = vector.broadcast %93 : vector<1x32xf32> to vector<16x32xf32>
    %115 = arith.mulf %113, %114 : vector<16x32xf32>
    %116 = vector.broadcast %95 : vector<1x32xf32> to vector<16x32xf32>
    %117 = arith.addf %115, %116 : vector<16x32xf32>
    %c0_41 = arith.constant 0 : index
    %c0_42 = arith.constant 0 : index
    %c0_43 = arith.constant 0 : index
    %118 = vector.load %arg10[%c0_41, %c0_42, %c0_43] : memref<2x32x64xf32, #tpu.memory_space<vmem>>, vector<1x32x64xf32>
    %119 = vector.shape_cast %118 : vector<1x32x64xf32> to vector<32x64xf32>
    %cst_44 = arith.constant dense<0.000000e+00> : vector<16x64xf32>
    %120 = tpu.matmul %117, %119, %cst_44 {dimension_numbers = #tpu.dot_dimension_numbers<[1], [0], [0], [1], [0, 0, 1, 1], [], []>} : vector<16x32xf32>, vector<32x64xf32>, vector<16x64xf32> -> vector<16x64xf32>
    %c0_45 = arith.constant 0 : index
    %c0_46 = arith.constant 0 : index
    %c0_47 = arith.constant 0 : index
    %121 = vector.load %arg11[%c0_45, %c0_46, %c0_47] : memref<2x1x64xf32, #tpu.memory_space<vmem>>, vector<1x1x64xf32>
    %122 = vector.shape_cast %121 : vector<1x1x64xf32> to vector<1x64xf32>
    %123 = vector.broadcast %122 : vector<1x64xf32> to vector<16x64xf32>
    %124 = arith.addf %120, %123 : vector<16x64xf32>
    %cst_48 = arith.constant 5.000000e-01 : f32
    %125 = vector.broadcast %cst_48 : f32 to vector<16x64xf32>
    %126 = arith.mulf %125, %124 : vector<16x64xf32>
    %cst_49 = arith.constant 4.471500e-02 : f32
    %127 = vector.broadcast %cst_49 : f32 to vector<16x64xf32>
    %128 = arith.mulf %127, %124 : vector<16x64xf32>
    %129 = arith.mulf %128, %124 : vector<16x64xf32>
    %130 = arith.mulf %129, %124 : vector<16x64xf32>
    %131 = arith.addf %124, %130 : vector<16x64xf32>
    %cst_50 = arith.constant 0.797884583 : f32
    %132 = vector.broadcast %cst_50 : f32 to vector<16x64xf32>
    %133 = arith.mulf %132, %131 : vector<16x64xf32>
    %134 = math.tanh %133 : vector<16x64xf32>
    %cst_51 = arith.constant 1.000000e+00 : f32
    %135 = vector.broadcast %cst_51 : f32 to vector<16x64xf32>
    %136 = arith.addf %135, %134 : vector<16x64xf32>
    %137 = arith.mulf %126, %136 : vector<16x64xf32>
    %c0_52 = arith.constant 0 : index
    %c0_53 = arith.constant 0 : index
    %c0_54 = arith.constant 0 : index
    %138 = vector.load %arg12[%c0_52, %c0_53, %c0_54] : memref<2x64x32xf32, #tpu.memory_space<vmem>>, vector<1x64x32xf32>
    %139 = vector.shape_cast %138 : vector<1x64x32xf32> to vector<64x32xf32>
    %cst_55 = arith.constant dense<0.000000e+00> : vector<16x32xf32>
    %140 = tpu.matmul %137, %139, %cst_55 {dimension_numbers = #tpu.dot_dimension_numbers<[1], [0], [0], [1], [0, 0, 1, 1], [], []>} : vector<16x64xf32>, vector<64x32xf32>, vector<16x32xf32> -> vector<16x32xf32>
    %c0_56 = arith.constant 0 : index
    %c0_57 = arith.constant 0 : index
    %c0_58 = arith.constant 0 : index
    %141 = vector.load %arg13[%c0_56, %c0_57, %c0_58] : memref<2x1x32xf32, #tpu.memory_space<vmem>>, vector<1x1x32xf32>
    %142 = vector.shape_cast %141 : vector<1x1x32xf32> to vector<1x32xf32>
    %143 = vector.broadcast %142 : vector<1x32xf32> to vector<16x32xf32>
    %144 = arith.addf %140, %143 : vector<16x32xf32>
    %145 = arith.addf %144, %117 : vector<16x32xf32>
    %c0_59 = arith.constant 0 : index
    %c0_60 = arith.constant 0 : index
    %c0_61 = arith.constant 0 : index
    %146 = vector.load %arg14[%c0_59, %c0_60, %c0_61] : memref<2x1x32xf32, #tpu.memory_space<vmem>>, vector<1x1x32xf32>
    %147 = vector.shape_cast %146 : vector<1x1x32xf32> to vector<1x32xf32>
    %c0_62 = arith.constant 0 : index
    %c0_63 = arith.constant 0 : index
    %c0_64 = arith.constant 0 : index
    %148 = vector.load %arg15[%c0_62, %c0_63, %c0_64] : memref<2x1x32xf32, #tpu.memory_space<vmem>>, vector<1x1x32xf32>
    %149 = vector.shape_cast %148 : vector<1x1x32xf32> to vector<1x32xf32>
    %cst_65 = arith.constant dense<0.000000e+00> : vector<16xf32>
    %150 = vector.multi_reduction <add>, %145, %cst_65 [1] : vector<16x32xf32> to vector<16xf32>
    %151 = vector.shape_cast %150 : vector<16xf32> to vector<16x1xf32>
    %cst_66 = arith.constant 3.200000e+01 : f32
    %152 = vector.broadcast %cst_66 : f32 to vector<16x1xf32>
    %153 = arith.divf %151, %152 : vector<16x1xf32>
    %154 = vector.broadcast %153 : vector<16x1xf32> to vector<16x32xf32>
    %155 = arith.subf %145, %154 : vector<16x32xf32>
    %156 = arith.mulf %155, %155 : vector<16x32xf32>
    %cst_67 = arith.constant dense<0.000000e+00> : vector<16xf32>
    %157 = vector.multi_reduction <add>, %156, %cst_67 [1] : vector<16x32xf32> to vector<16xf32>
    %158 = vector.shape_cast %157 : vector<16xf32> to vector<16x1xf32>
    %cst_68 = arith.constant 3.200000e+01 : f32
    %159 = vector.broadcast %cst_68 : f32 to vector<16x1xf32>
    %160 = arith.divf %158, %159 : vector<16x1xf32>
    %161 = vector.broadcast %153 : vector<16x1xf32> to vector<16x32xf32>
    %162 = arith.subf %145, %161 : vector<16x32xf32>
    %cst_69 = arith.constant 9.99999996E-13 : f32
    %163 = vector.broadcast %cst_69 : f32 to vector<16x1xf32>
    %164 = arith.addf %160, %163 : vector<16x1xf32>
    %165 = math.rsqrt %164 : vector<16x1xf32>
    %166 = vector.broadcast %165 : vector<16x1xf32> to vector<16x32xf32>
    %167 = arith.mulf %162, %166 : vector<16x32xf32>
    %168 = vector.broadcast %147 : vector<1x32xf32> to vector<16x32xf32>
    %169 = arith.mulf %167, %168 : vector<16x32xf32>
    %170 = vector.broadcast %149 : vector<1x32xf32> to vector<16x32xf32>
    %171 = arith.addf %169, %170 : vector<16x32xf32>
    %c1 = arith.constant 1 : index
    %c0_70 = arith.constant 0 : index
    %c0_71 = arith.constant 0 : index
    %172 = vector.load %arg4[%c1, %c0_70, %c0_71] : memref<2x32x96xf32, #tpu.memory_space<vmem>>, vector<1x32x96xf32>
    %173 = vector.shape_cast %172 : vector<1x32x96xf32> to vector<32x96xf32>
    %cst_72 = arith.constant dense<0.000000e+00> : vector<16x96xf32>
    %174 = tpu.matmul %171, %173, %cst_72 {dimension_numbers = #tpu.dot_dimension_numbers<[1], [0], [0], [1], [0, 0, 1, 1], [], []>} : vector<16x32xf32>, vector<32x96xf32>, vector<16x96xf32> -> vector<16x96xf32>
    %c1_73 = arith.constant 1 : index
    %c0_74 = arith.constant 0 : index
    %c0_75 = arith.constant 0 : index
    %175 = vector.load %arg5[%c1_73, %c0_74, %c0_75] : memref<2x1x96xf32, #tpu.memory_space<vmem>>, vector<1x1x96xf32>
    %176 = vector.shape_cast %175 : vector<1x1x96xf32> to vector<1x96xf32>
    %177 = vector.broadcast %176 : vector<1x96xf32> to vector<16x96xf32>
    %178 = arith.addf %174, %177 : vector<16x96xf32>
    %179 = vector.extract_strided_slice %178 {offsets = [0, 0], sizes = [16, 32], strides = [1, 1]} : vector<16x96xf32> to vector<16x32xf32>
    %180 = vector.extract_strided_slice %178 {offsets = [0, 32], sizes = [16, 32], strides = [1, 1]} : vector<16x96xf32> to vector<16x32xf32>
    %181 = vector.extract_strided_slice %178 {offsets = [0, 64], sizes = [16, 32], strides = [1, 1]} : vector<16x96xf32> to vector<16x32xf32>
    %182 = vector.extract_strided_slice %179 {offsets = [0, 0], sizes = [16, 8], strides = [1, 1]} : vector<16x32xf32> to vector<16x8xf32>
    %183 = vector.shape_cast %182 : vector<16x8xf32> to vector<2x8x8xf32>
    %184 = vector.extract_strided_slice %179 {offsets = [0, 8], sizes = [16, 8], strides = [1, 1]} : vector<16x32xf32> to vector<16x8xf32>
    %185 = vector.shape_cast %184 : vector<16x8xf32> to vector<2x8x8xf32>
    %186 = vector.extract_strided_slice %179 {offsets = [0, 16], sizes = [16, 8], strides = [1, 1]} : vector<16x32xf32> to vector<16x8xf32>
    %187 = vector.shape_cast %186 : vector<16x8xf32> to vector<2x8x8xf32>
    %188 = vector.extract_strided_slice %179 {offsets = [0, 24], sizes = [16, 8], strides = [1, 1]} : vector<16x32xf32> to vector<16x8xf32>
    %189 = vector.shape_cast %188 : vector<16x8xf32> to vector<2x8x8xf32>
    %190 = tpu.concatenate %183, %185, %187, %189 in 0 : vector<2x8x8xf32>, vector<2x8x8xf32>, vector<2x8x8xf32>, vector<2x8x8xf32> -> vector<8x8x8xf32>
    %191 = vector.extract_strided_slice %180 {offsets = [0, 0], sizes = [16, 8], strides = [1, 1]} : vector<16x32xf32> to vector<16x8xf32>
    %192 = vector.shape_cast %191 : vector<16x8xf32> to vector<2x8x8xf32>
    %193 = vector.extract_strided_slice %180 {offsets = [0, 8], sizes = [16, 8], strides = [1, 1]} : vector<16x32xf32> to vector<16x8xf32>
    %194 = vector.shape_cast %193 : vector<16x8xf32> to vector<2x8x8xf32>
    %195 = vector.extract_strided_slice %180 {offsets = [0, 16], sizes = [16, 8], strides = [1, 1]} : vector<16x32xf32> to vector<16x8xf32>
    %196 = vector.shape_cast %195 : vector<16x8xf32> to vector<2x8x8xf32>
    %197 = vector.extract_strided_slice %180 {offsets = [0, 24], sizes = [16, 8], strides = [1, 1]} : vector<16x32xf32> to vector<16x8xf32>
    %198 = vector.shape_cast %197 : vector<16x8xf32> to vector<2x8x8xf32>
    %199 = tpu.concatenate %192, %194, %196, %198 in 0 : vector<2x8x8xf32>, vector<2x8x8xf32>, vector<2x8x8xf32>, vector<2x8x8xf32> -> vector<8x8x8xf32>
    %200 = vector.extract_strided_slice %181 {offsets = [0, 0], sizes = [16, 8], strides = [1, 1]} : vector<16x32xf32> to vector<16x8xf32>
    %201 = vector.shape_cast %200 : vector<16x8xf32> to vector<2x8x8xf32>
    %202 = vector.extract_strided_slice %181 {offsets = [0, 8], sizes = [16, 8], strides = [1, 1]} : vector<16x32xf32> to vector<16x8xf32>
    %203 = vector.shape_cast %202 : vector<16x8xf32> to vector<2x8x8xf32>
    %204 = vector.extract_strided_slice %181 {offsets = [0, 16], sizes = [16, 8], strides = [1, 1]} : vector<16x32xf32> to vector<16x8xf32>
    %205 = vector.shape_cast %204 : vector<16x8xf32> to vector<2x8x8xf32>
    %206 = vector.extract_strided_slice %181 {offsets = [0, 24], sizes = [16, 8], strides = [1, 1]} : vector<16x32xf32> to vector<16x8xf32>
    %207 = vector.shape_cast %206 : vector<16x8xf32> to vector<2x8x8xf32>
    %208 = tpu.concatenate %201, %203, %205, %207 in 0 : vector<2x8x8xf32>, vector<2x8x8xf32>, vector<2x8x8xf32>, vector<2x8x8xf32> -> vector<8x8x8xf32>
    "tpu.trace_start"() <{level = 10 : i32, message = "gqd,gkd->gqk"}> : () -> ()
    %cst_76 = arith.constant dense<0.000000e+00> : vector<8x8x8xf32>
    %209 = tpu.matmul %190, %199, %cst_76 {dimension_numbers = #tpu.dot_dimension_numbers<[2], [2], [1], [1], [0, 0, 0, 1, 1, 1], [0], [0]>} : vector<8x8x8xf32>, vector<8x8x8xf32>, vector<8x8x8xf32> -> vector<8x8x8xf32>
    "tpu.trace_stop"() : () -> ()
    %210 = arith.addf %209, %25 : vector<8x8x8xf32>
    %cst_77 = arith.constant dense<0xFF800000> : vector<8x8xf32>
    %211 = vector.multi_reduction <maximumf>, %210, %cst_77 [2] : vector<8x8x8xf32> to vector<8x8xf32>
    %212 = vector.shape_cast %211 : vector<8x8xf32> to vector<8x8x1xf32>
    %213 = vector.broadcast %212 : vector<8x8x1xf32> to vector<8x8x8xf32>
    %214 = arith.subf %210, %213 : vector<8x8x8xf32>
    %215 = math.exp %214 : vector<8x8x8xf32>
    %cst_78 = arith.constant dense<0.000000e+00> : vector<8x8xf32>
    %216 = vector.multi_reduction <add>, %215, %cst_78 [2] : vector<8x8x8xf32> to vector<8x8xf32>
    %217 = vector.shape_cast %216 : vector<8x8xf32> to vector<8x8x1xf32>
    %218 = vector.broadcast %217 : vector<8x8x1xf32> to vector<8x8x8xf32>
    %219 = arith.divf %215, %218 : vector<8x8x8xf32>
    "tpu.trace_start"() <{level = 10 : i32, message = "gqk,gkd->gqd"}> : () -> ()
    %cst_79 = arith.constant dense<0.000000e+00> : vector<8x8x8xf32>
    %220 = tpu.matmul %219, %208, %cst_79 {dimension_numbers = #tpu.dot_dimension_numbers<[2], [1], [1], [2], [0, 0, 0, 1, 1, 2], [0], [0]>} : vector<8x8x8xf32>, vector<8x8x8xf32>, vector<8x8x8xf32> -> vector<8x8x8xf32>
    "tpu.trace_stop"() : () -> ()
    %221 = vector.extract_strided_slice %220 {offsets = [0, 0, 0], sizes = [2, 8, 8], strides = [1, 1, 1]} : vector<8x8x8xf32> to vector<2x8x8xf32>
    %222 = vector.shape_cast %221 : vector<2x8x8xf32> to vector<16x8xf32>
    %223 = vector.extract_strided_slice %220 {offsets = [2, 0, 0], sizes = [2, 8, 8], strides = [1, 1, 1]} : vector<8x8x8xf32> to vector<2x8x8xf32>
    %224 = vector.shape_cast %223 : vector<2x8x8xf32> to vector<16x8xf32>
    %225 = vector.extract_strided_slice %220 {offsets = [4, 0, 0], sizes = [2, 8, 8], strides = [1, 1, 1]} : vector<8x8x8xf32> to vector<2x8x8xf32>
    %226 = vector.shape_cast %225 : vector<2x8x8xf32> to vector<16x8xf32>
    %227 = vector.extract_strided_slice %220 {offsets = [6, 0, 0], sizes = [2, 8, 8], strides = [1, 1, 1]} : vector<8x8x8xf32> to vector<2x8x8xf32>
    %228 = vector.shape_cast %227 : vector<2x8x8xf32> to vector<16x8xf32>
    %229 = tpu.concatenate %222, %224, %226, %228 in 1 : vector<16x8xf32>, vector<16x8xf32>, vector<16x8xf32>, vector<16x8xf32> -> vector<16x32xf32>
    %c1_80 = arith.constant 1 : index
    %c0_81 = arith.constant 0 : index
    %c0_82 = arith.constant 0 : index
    %230 = vector.load %arg6[%c1_80, %c0_81, %c0_82] : memref<2x32x32xf32, #tpu.memory_space<vmem>>, vector<1x32x32xf32>
    %231 = vector.shape_cast %230 : vector<1x32x32xf32> to vector<32x32xf32>
    %cst_83 = arith.constant dense<0.000000e+00> : vector<16x32xf32>
    %232 = tpu.matmul %229, %231, %cst_83 {dimension_numbers = #tpu.dot_dimension_numbers<[1], [0], [0], [1], [0, 0, 1, 1], [], []>} : vector<16x32xf32>, vector<32x32xf32>, vector<16x32xf32> -> vector<16x32xf32>
    %c1_84 = arith.constant 1 : index
    %c0_85 = arith.constant 0 : index
    %c0_86 = arith.constant 0 : index
    %233 = vector.load %arg7[%c1_84, %c0_85, %c0_86] : memref<2x1x32xf32, #tpu.memory_space<vmem>>, vector<1x1x32xf32>
    %234 = vector.shape_cast %233 : vector<1x1x32xf32> to vector<1x32xf32>
    %235 = vector.broadcast %234 : vector<1x32xf32> to vector<16x32xf32>
    %236 = arith.addf %232, %235 : vector<16x32xf32>
    %237 = arith.addf %236, %171 : vector<16x32xf32>
    %c1_87 = arith.constant 1 : index
    %c0_88 = arith.constant 0 : index
    %c0_89 = arith.constant 0 : index
    %238 = vector.load %arg8[%c1_87, %c0_88, %c0_89] : memref<2x1x32xf32, #tpu.memory_space<vmem>>, vector<1x1x32xf32>
    %239 = vector.shape_cast %238 : vector<1x1x32xf32> to vector<1x32xf32>
    %c1_90 = arith.constant 1 : index
    %c0_91 = arith.constant 0 : index
    %c0_92 = arith.constant 0 : index
    %240 = vector.load %arg9[%c1_90, %c0_91, %c0_92] : memref<2x1x32xf32, #tpu.memory_space<vmem>>, vector<1x1x32xf32>
    %241 = vector.shape_cast %240 : vector<1x1x32xf32> to vector<1x32xf32>
    %cst_93 = arith.constant dense<0.000000e+00> : vector<16xf32>
    %242 = vector.multi_reduction <add>, %237, %cst_93 [1] : vector<16x32xf32> to vector<16xf32>
    %243 = vector.shape_cast %242 : vector<16xf32> to vector<16x1xf32>
    %cst_94 = arith.constant 3.200000e+01 : f32
    %244 = vector.broadcast %cst_94 : f32 to vector<16x1xf32>
    %245 = arith.divf %243, %244 : vector<16x1xf32>
    %246 = vector.broadcast %245 : vector<16x1xf32> to vector<16x32xf32>
    %247 = arith.subf %237, %246 : vector<16x32xf32>
    %248 = arith.mulf %247, %247 : vector<16x32xf32>
    %cst_95 = arith.constant dense<0.000000e+00> : vector<16xf32>
    %249 = vector.multi_reduction <add>, %248, %cst_95 [1] : vector<16x32xf32> to vector<16xf32>
    %250 = vector.shape_cast %249 : vector<16xf32> to vector<16x1xf32>
    %cst_96 = arith.constant 3.200000e+01 : f32
    %251 = vector.broadcast %cst_96 : f32 to vector<16x1xf32>
    %252 = arith.divf %250, %251 : vector<16x1xf32>
    %253 = vector.broadcast %245 : vector<16x1xf32> to vector<16x32xf32>
    %254 = arith.subf %237, %253 : vector<16x32xf32>
    %cst_97 = arith.constant 9.99999996E-13 : f32
    %255 = vector.broadcast %cst_97 : f32 to vector<16x1xf32>
    %256 = arith.addf %252, %255 : vector<16x1xf32>
    %257 = math.rsqrt %256 : vector<16x1xf32>
    %258 = vector.broadcast %257 : vector<16x1xf32> to vector<16x32xf32>
    %259 = arith.mulf %254, %258 : vector<16x32xf32>
    %260 = vector.broadcast %239 : vector<1x32xf32> to vector<16x32xf32>
    %261 = arith.mulf %259, %260 : vector<16x32xf32>
    %262 = vector.broadcast %241 : vector<1x32xf32> to vector<16x32xf32>
    %263 = arith.addf %261, %262 : vector<16x32xf32>
    %c1_98 = arith.constant 1 : index
    %c0_99 = arith.constant 0 : index
    %c0_100 = arith.constant 0 : index
    %264 = vector.load %arg10[%c1_98, %c0_99, %c0_100] : memref<2x32x64xf32, #tpu.memory_space<vmem>>, vector<1x32x64xf32>
    %265 = vector.shape_cast %264 : vector<1x32x64xf32> to vector<32x64xf32>
    %cst_101 = arith.constant dense<0.000000e+00> : vector<16x64xf32>
    %266 = tpu.matmul %263, %265, %cst_101 {dimension_numbers = #tpu.dot_dimension_numbers<[1], [0], [0], [1], [0, 0, 1, 1], [], []>} : vector<16x32xf32>, vector<32x64xf32>, vector<16x64xf32> -> vector<16x64xf32>
    %c1_102 = arith.constant 1 : index
    %c0_103 = arith.constant 0 : index
    %c0_104 = arith.constant 0 : index
    %267 = vector.load %arg11[%c1_102, %c0_103, %c0_104] : memref<2x1x64xf32, #tpu.memory_space<vmem>>, vector<1x1x64xf32>
    %268 = vector.shape_cast %267 : vector<1x1x64xf32> to vector<1x64xf32>
    %269 = vector.broadcast %268 : vector<1x64xf32> to vector<16x64xf32>
    %270 = arith.addf %266, %269 : vector<16x64xf32>
    %cst_105 = arith.constant 5.000000e-01 : f32
    %271 = vector.broadcast %cst_105 : f32 to vector<16x64xf32>
    %272 = arith.mulf %271, %270 : vector<16x64xf32>
    %cst_106 = arith.constant 4.471500e-02 : f32
    %273 = vector.broadcast %cst_106 : f32 to vector<16x64xf32>
    %274 = arith.mulf %273, %270 : vector<16x64xf32>
    %275 = arith.mulf %274, %270 : vector<16x64xf32>
    %276 = arith.mulf %275, %270 : vector<16x64xf32>
    %277 = arith.addf %270, %276 : vector<16x64xf32>
    %cst_107 = arith.constant 0.797884583 : f32
    %278 = vector.broadcast %cst_107 : f32 to vector<16x64xf32>
    %279 = arith.mulf %278, %277 : vector<16x64xf32>
    %280 = math.tanh %279 : vector<16x64xf32>
    %cst_108 = arith.constant 1.000000e+00 : f32
    %281 = vector.broadcast %cst_108 : f32 to vector<16x64xf32>
    %282 = arith.addf %281, %280 : vector<16x64xf32>
    %283 = arith.mulf %272, %282 : vector<16x64xf32>
    %c1_109 = arith.constant 1 : index
    %c0_110 = arith.constant 0 : index
    %c0_111 = arith.constant 0 : index
    %284 = vector.load %arg12[%c1_109, %c0_110, %c0_111] : memref<2x64x32xf32, #tpu.memory_space<vmem>>, vector<1x64x32xf32>
    %285 = vector.shape_cast %284 : vector<1x64x32xf32> to vector<64x32xf32>
    %cst_112 = arith.constant dense<0.000000e+00> : vector<16x32xf32>
    %286 = tpu.matmul %283, %285, %cst_112 {dimension_numbers = #tpu.dot_dimension_numbers<[1], [0], [0], [1], [0, 0, 1, 1], [], []>} : vector<16x64xf32>, vector<64x32xf32>, vector<16x32xf32> -> vector<16x32xf32>
    %c1_113 = arith.constant 1 : index
    %c0_114 = arith.constant 0 : index
    %c0_115 = arith.constant 0 : index
    %287 = vector.load %arg13[%c1_113, %c0_114, %c0_115] : memref<2x1x32xf32, #tpu.memory_space<vmem>>, vector<1x1x32xf32>
    %288 = vector.shape_cast %287 : vector<1x1x32xf32> to vector<1x32xf32>
    %289 = vector.broadcast %288 : vector<1x32xf32> to vector<16x32xf32>
    %290 = arith.addf %286, %289 : vector<16x32xf32>
    %291 = arith.addf %290, %263 : vector<16x32xf32>
    %c1_116 = arith.constant 1 : index
    %c0_117 = arith.constant 0 : index
    %c0_118 = arith.constant 0 : index
    %292 = vector.load %arg14[%c1_116, %c0_117, %c0_118] : memref<2x1x32xf32, #tpu.memory_space<vmem>>, vector<1x1x32xf32>
    %293 = vector.shape_cast %292 : vector<1x1x32xf32> to vector<1x32xf32>
    %c1_119 = arith.constant 1 : index
    %c0_120 = arith.constant 0 : index
    %c0_121 = arith.constant 0 : index
    %294 = vector.load %arg15[%c1_119, %c0_120, %c0_121] : memref<2x1x32xf32, #tpu.memory_space<vmem>>, vector<1x1x32xf32>
    %295 = vector.shape_cast %294 : vector<1x1x32xf32> to vector<1x32xf32>
    %cst_122 = arith.constant dense<0.000000e+00> : vector<16xf32>
    %296 = vector.multi_reduction <add>, %291, %cst_122 [1] : vector<16x32xf32> to vector<16xf32>
    %297 = vector.shape_cast %296 : vector<16xf32> to vector<16x1xf32>
    %cst_123 = arith.constant 3.200000e+01 : f32
    %298 = vector.broadcast %cst_123 : f32 to vector<16x1xf32>
    %299 = arith.divf %297, %298 : vector<16x1xf32>
    %300 = vector.broadcast %299 : vector<16x1xf32> to vector<16x32xf32>
    %301 = arith.subf %291, %300 : vector<16x32xf32>
    %302 = arith.mulf %301, %301 : vector<16x32xf32>
    %cst_124 = arith.constant dense<0.000000e+00> : vector<16xf32>
    %303 = vector.multi_reduction <add>, %302, %cst_124 [1] : vector<16x32xf32> to vector<16xf32>
    %304 = vector.shape_cast %303 : vector<16xf32> to vector<16x1xf32>
    %cst_125 = arith.constant 3.200000e+01 : f32
    %305 = vector.broadcast %cst_125 : f32 to vector<16x1xf32>
    %306 = arith.divf %304, %305 : vector<16x1xf32>
    %307 = vector.broadcast %299 : vector<16x1xf32> to vector<16x32xf32>
    %308 = arith.subf %291, %307 : vector<16x32xf32>
    %cst_126 = arith.constant 9.99999996E-13 : f32
    %309 = vector.broadcast %cst_126 : f32 to vector<16x1xf32>
    %310 = arith.addf %306, %309 : vector<16x1xf32>
    %311 = math.rsqrt %310 : vector<16x1xf32>
    %312 = vector.broadcast %311 : vector<16x1xf32> to vector<16x32xf32>
    %313 = arith.mulf %308, %312 : vector<16x32xf32>
    %314 = vector.broadcast %293 : vector<1x32xf32> to vector<16x32xf32>
    %315 = arith.mulf %313, %314 : vector<16x32xf32>
    %316 = vector.broadcast %295 : vector<1x32xf32> to vector<16x32xf32>
    %317 = arith.addf %315, %316 : vector<16x32xf32>
    %318 = vector.shape_cast %317 : vector<16x32xf32> to vector<2x8x32xf32>
    %319 = vector.extract_strided_slice %318 {offsets = [0, 0, 0], sizes = [2, 1, 32], strides = [1, 1, 1]} : vector<2x8x32xf32> to vector<2x1x32xf32>
    %320 = vector.shape_cast %319 : vector<2x1x32xf32> to vector<2x32xf32>
    %c0_127 = arith.constant 0 : index
    %c0_128 = arith.constant 0 : index
    %321 = vector.load %arg16[%c0_127, %c0_128] : memref<2x32xf32, #tpu.memory_space<vmem>>, vector<2x32xf32>
    tpu.vector_store %arg16[%c0_127, %c0_128], %320 {strides = array<i32>} : memref<2x32xf32, #tpu.memory_space<vmem>>, vector<2x32xf32>,
    return
  }
}

</mosaic_0001>

<llo_original>
// kernel: tpu_custom_call.1
$region0: #{tpu_custom_call.1}
  #allocation0 [shape = 'u32[]', space=smem, size = 0x4, offset = 0x4, fixed_abs, tag = 'smem constant byte address 0x4 - core index']
  #allocation1 [shape = 'u32[144,128]{1,0:T(1,128)}', space=vmem, size = 0x12000, scoped, tag = 'internal scratch']
  %s0 = inlined_call_operand.hbm [shape: f32[16,32], index: 0, kind: input, shape index: {}]
  %s1 = inlined_call_operand.vmem [shape: f32[8,8,8], index: 1, kind: input, shape index: {}]
  %s2 = inlined_call_operand.vmem [shape: f32[1,32], index: 2, kind: input, shape index: {}]
  %s3 = inlined_call_operand.hbm [shape: f32[1,32], index: 3, kind: input, shape index: {}]
  %s4 = inlined_call_operand.vmem [shape: f32[2,32,96], index: 4, kind: input, shape index: {}]
  %s5 = inlined_call_operand.vmem [shape: f32[2,1,96], index: 5, kind: input, shape index: {}]
  %s6 = inlined_call_operand.vmem [shape: f32[2,32,32], index: 6, kind: input, shape index: {}]
  %s7 = inlined_call_operand.vmem [shape: f32[2,1,32], index: 7, kind: input, shape index: {}]
  %s8 = inlined_call_operand.vmem [shape: f32[2,1,32], index: 8, kind: input, shape index: {}]
  %s9 = inlined_call_operand.vmem [shape: f32[2,1,32], index: 9, kind: input, shape index: {}]
  %s10 = inlined_call_operand.hbm [shape: f32[2,32,64], index: 10, kind: input, shape index: {}]
  %s11 = inlined_call_operand.vmem [shape: f32[2,1,64], index: 11, kind: input, shape index: {}]
  %s12 = inlined_call_operand.vmem [shape: f32[2,64,32], index: 12, kind: input, shape index: {}]
  %s13 = inlined_call_operand.vmem [shape: f32[2,1,32], index: 13, kind: input, shape index: {}]
  %s14 = inlined_call_operand.vmem [shape: f32[2,1,32], index: 14, kind: input, shape index: {}]
  %s15 = inlined_call_operand.vmem [shape: f32[2,1,32], index: 15, kind: input, shape index: {}]
  %s16 = inlined_call_operand.hbm [shape: f32[2,32], index: 16, kind: output, shape index: {}]
  %s17 = sld [smem:[#allocation0]]
  $region86: #{tpu_custom_call.1} parent=0
    _
  %s19 = ssub.s32 1, %s17
  %s20 = scalar_select 0, %s19, %s17
  $region1: #{tpu_custom_call.1} parent=0
    #allocation2 [shape = 'u8[8192]{0}', space=vmem, size = 0x2000, scoped, tag = 'input window, operand 0, single buffered']
    #allocation3 [shape = 's32[1]{0}', space=sflag, size = 0x4, scoped, tag = 'scoped memory for tpu_custom_call.1']
    #allocation4 [shape = 's32[1]{0}', space=sflag, size = 0x4, scoped, tag = 'scoped memory for tpu_custom_call.1']
    #allocation5 [shape = 'u8[512]{0}', space=vmem, size = 0x400, scoped, tag = 'input window, operand 3, single buffered']
    #allocation6 [shape = 's32[1]{0}', space=sflag, size = 0x4, scoped, tag = 'scoped memory for tpu_custom_call.1']
    #allocation7 [shape = 'u8[32768]{0}', space=vmem, size = 0x8000, scoped, tag = 'input window, operand 10, single buffered']
    #allocation8 [shape = 'u8[1024]{0}', space=vmem, size = 0x400, scoped, tag = 'output window, operand 0, single buffered']
    %21 = vsyncpa [#allocation3], 0
    %22 = vsyncpa [#allocation6], 0
    %23 = vsyncpa [#allocation4], 0
    // Predicated region
    $region2: #{tpu_custom_call.1} parent=1 // pred_check
      _
    $region3: #{tpu_custom_call.1} parent=1 // pred_check_branch
      %25 = sbr.rel (0) target = $region5
    $region4: #{tpu_custom_call.1} parent=1 // pred_region
      %s27 = ssub.s32 256, 256
      %28 = vsyncadd [#allocation3], %s27
      %s29 = sshll.u32 [#allocation2], 4
      %s30 = int_to_ptr.vmem [resolvable:$true] %s29
      %35 = dma.hbm_to_vmem [thread:$0]  %s0, 256, %s30, [#allocation3], 128, 128, 8
    $region5: #{tpu_custom_call.1} parent=1 // pred_fallthru
      _
    // Predicated region
    $region6: #{tpu_custom_call.1} parent=1 // pred_check
      _
    $region7: #{tpu_custom_call.1} parent=1 // pred_check_branch
      %37 = sbr.rel (0) target = $region9
    $region8: #{tpu_custom_call.1} parent=1 // pred_region
      _
    $region9: #{tpu_custom_call.1} parent=1 // pred_fallthru
      _
    // Predicated region
    $region10: #{tpu_custom_call.1} parent=1 // pred_check
      _
    $region11: #{tpu_custom_call.1} parent=1 // pred_check_branch
      %39 = sbr.rel (0) target = $region13
    $region12: #{tpu_custom_call.1} parent=1 // pred_region
      _
    $region13: #{tpu_custom_call.1} parent=1 // pred_fallthru
      _
    // Predicated region
    $region14: #{tpu_custom_call.1} parent=1 // pred_check
      _
    $region15: #{tpu_custom_call.1} parent=1 // pred_check_branch
      %41 = sbr.rel (0) target = $region17
    $region16: #{tpu_custom_call.1} parent=1 // pred_region
      %s43 = ssub.s32 16, 16
      %44 = vsyncadd [#allocation6], %s43
      %s46 = sshll.u32 [#allocation5], 4
      %s47 = int_to_ptr.vmem [resolvable:$true] %s46
      %49 = dma.hbm_to_vmem [thread:$0]  %s3, 16, %s47, [#allocation6]
    $region17: #{tpu_custom_call.1} parent=1 // pred_fallthru
      _
    // Predicated region
    $region18: #{tpu_custom_call.1} parent=1 // pred_check
      _
    $region19: #{tpu_custom_call.1} parent=1 // pred_check_branch
      %51 = sbr.rel (0) target = $region21
    $region20: #{tpu_custom_call.1} parent=1 // pred_region
      _
    $region21: #{tpu_custom_call.1} parent=1 // pred_fallthru
      _
    // Predicated region
    $region22: #{tpu_custom_call.1} parent=1 // pred_check
      _
    $region23: #{tpu_custom_call.1} parent=1 // pred_check_branch
      %53 = sbr.rel (0) target = $region25
    $region24: #{tpu_custom_call.1} parent=1 // pred_region
      _
    $region25: #{tpu_custom_call.1} parent=1 // pred_fallthru
      _
    // Predicated region
    $region26: #{tpu_custom_call.1} parent=1 // pred_check
      _
    $region27: #{tpu_custom_call.1} parent=1 // pred_check_branch
      %55 = sbr.rel (0) target = $region29
    $region28: #{tpu_custom_call.1} parent=1 // pred_region
      _
    $region29: #{tpu_custom_call.1} parent=1 // pred_fallthru
      _
    // Predicated region
    $region30: #{tpu_custom_call.1} parent=1 // pred_check
      _
    $region31: #{tpu_custom_call.1} parent=1 // pred_check_branch
      %57 = sbr.rel (0) target = $region33
    $region32: #{tpu_custom_call.1} parent=1 // pred_region
      _
    $region33: #{tpu_custom_call.1} parent=1 // pred_fallthru
      _
    // Predicated region
    $region34: #{tpu_custom_call.1} parent=1 // pred_check
      _
    $region35: #{tpu_custom_call.1} parent=1 // pred_check_branch
      %59 = sbr.rel (0) target = $region37
    $region36: #{tpu_custom_call.1} parent=1 // pred_region
      _
    $region37: #{tpu_custom_call.1} parent=1 // pred_fallthru
      _
    // Predicated region
    $region38: #{tpu_custom_call.1} parent=1 // pred_check
      _
    $region39: #{tpu_custom_call.1} parent=1 // pred_check_branch
      %61 = sbr.rel (0) target = $region41
    $region40: #{tpu_custom_call.1} parent=1 // pred_region
      _
    $region41: #{tpu_custom_call.1} parent=1 // pred_fallthru
      _
    // Predicated region
    $region42: #{tpu_custom_call.1} parent=1 // pred_check
      _
    $region43: #{tpu_custom_call.1} parent=1 // pred_check_branch
      %63 = sbr.rel (0) target = $region45
    $region44: #{tpu_custom_call.1} parent=1 // pred_region
      %s65 = ssub.s32 1024, 1024
      %66 = vsyncadd [#allocation6], %s65
      %s67 = sshll.u32 [#allocation7], 4
      %s68 = int_to_ptr.vmem [resolvable:$true] %s67
      %73 = dma.hbm_to_vmem [thread:$0]  %s10, 1024, %s68, [#allocation6], 128, 128, 8
    $region45: #{tpu_custom_call.1} parent=1 // pred_fallthru
      _
    // Predicated region
    $region46: #{tpu_custom_call.1} parent=1 // pred_check
      _
    $region47: #{tpu_custom_call.1} parent=1 // pred_check_branch
      %75 = sbr.rel (0) target = $region49
    $region48: #{tpu_custom_call.1} parent=1 // pred_region
      _
    $region49: #{tpu_custom_call.1} parent=1 // pred_fallthru
      _
    // Predicated region
    $region50: #{tpu_custom_call.1} parent=1 // pred_check
      _
    $region51: #{tpu_custom_call.1} parent=1 // pred_check_branch
      %77 = sbr.rel (0) target = $region53
    $region52: #{tpu_custom_call.1} parent=1 // pred_region
      _
    $region53: #{tpu_custom_call.1} parent=1 // pred_fallthru
      _
    // Predicated region
    $region54: #{tpu_custom_call.1} parent=1 // pred_check
      _
    $region55: #{tpu_custom_call.1} parent=1 // pred_check_branch
      %79 = sbr.rel (0) target = $region57
    $region56: #{tpu_custom_call.1} parent=1 // pred_region
      _
    $region57: #{tpu_custom_call.1} parent=1 // pred_fallthru
      _
    // Predicated region
    $region58: #{tpu_custom_call.1} parent=1 // pred_check
      _
    $region59: #{tpu_custom_call.1} parent=1 // pred_check_branch
      %81 = sbr.rel (0) target = $region61
    $region60: #{tpu_custom_call.1} parent=1 // pred_region
      _
    $region61: #{tpu_custom_call.1} parent=1 // pred_fallthru
      _
    // Predicated region
    $region62: #{tpu_custom_call.1} parent=1 // pred_check
      _
    $region63: #{tpu_custom_call.1} parent=1 // pred_check_branch
      %83 = sbr.rel (0) target = $region65
    $region64: #{tpu_custom_call.1} parent=1 // pred_region
      _
    $region65: #{tpu_custom_call.1} parent=1 // pred_fallthru
      _
    // Predicated region
    $region66: #{tpu_custom_call.1} parent=1 // pred_check
      _
    $region67: #{tpu_custom_call.1} parent=1 // pred_check_branch
      %85 = sbr.rel (0) target = $region69
    $region68: #{tpu_custom_call.1} parent=1 // pred_region
      %86 = dma.done [#allocation3], 256
    $region69: #{tpu_custom_call.1} parent=1 // pred_fallthru
      _
    // Predicated region
    $region70: #{tpu_custom_call.1} parent=1 // pred_check
      _
    $region71: #{tpu_custom_call.1} parent=1 // pred_check_branch
      %88 = sbr.rel (0) target = $region73
    $region72: #{tpu_custom_call.1} parent=1 // pred_region
      %89 = dma.done [#allocation6], 16
    $region73: #{tpu_custom_call.1} parent=1 // pred_fallthru
      _
    // Predicated region
    $region74: #{tpu_custom_call.1} parent=1 // pred_check
      _
    $region75: #{tpu_custom_call.1} parent=1 // pred_check_branch
      %91 = sbr.rel (0) target = $region77
    $region76: #{tpu_custom_call.1} parent=1 // pred_region
      %92 = dma.done [#allocation6], 1024
    $region77: #{tpu_custom_call.1} parent=1 // pred_fallthru
      _
    %v93 = vld [vmem:[#allocation2] sm:$0xff]
    %v94 = vld [vmem:[#allocation2 + $0x8] sm:$0xff]
    %v95 = vld [vmem:[%s2] sm:$0x1]
    %v96 = vld [vmem:[#allocation5] sm:$0x1]
    %vm97 = vcmask 261120
    %v98 = vsel %vm97, %v93, 0.0
    %99 = vadd.xlane.f32.xlu0 %v98
    %v100 = vpop.xlane.xlu0 %99
    %v101 = vsel %vm97, %v94, 0.0
    %102 = vadd.xlane.f32.xlu0 %v101
    %v103 = vpop.xlane.xlu0 %102
    %v104 = vrcp.pop 32.0
    %v105 = vmul.f32 %v100, %v104
    %v106 = vmul.f32 %v103, %v104
    %v107 = vsub.f32 %v93, %v105
    %v108 = vsub.f32 %v94, %v106
    %v109 = vmul.f32 %v107, %v107
    %v110 = vmul.f32 %v108, %v108
    %v111 = vsel %vm97, %v109, 0.0
    %112 = vadd.xlane.f32.xlu0 %v111
    %v113 = vpop.xlane.xlu0 %112
    %v114 = vsel %vm97, %v110, 0.0
    %115 = vadd.xlane.f32.xlu0 %v114
    %v116 = vpop.xlane.xlu0 %115
    %v117 = vmul.f32 %v113, %v104
    %v118 = vmul.f32 %v116, %v104
    %v119 = vadd.f32 %v117, 1e-12
    %v120 = vadd.f32 %v118, 1e-12
    %v121 = vrsqrt.pop %v119
    %v122 = vrsqrt.pop %v120
    %v123 = vmul.f32 %v107, %v121
    %v124 = vmul.f32 %v108, %v122
    %v126 = vlaneseq
    %v127 = vshrl.u32 %v126, 7
    %v128 = vsub.s32 0, %v127
    %v129 = vrot.slane %v95, %v128
    %v131 = vmul.f32 %v123, %v129
    %v132 = vmul.f32 %v124, %v129
    %v134 = vlaneseq
    %v135 = vshrl.u32 %v134, 7
    %v136 = vsub.s32 0, %v135
    %v137 = vrot.slane %v96, %v136
    %v139 = vadd.f32 %v131, %v137
    %v140 = vadd.f32 %v132, %v137
    %v141 = vld [vmem:[%s1] sm:$0xff]
    %v142 = vld [vmem:[%s1 + $0x8] sm:$0xff]
    %v143 = vld [vmem:[%s1 + $0x10] sm:$0xff]
    %v144 = vld [vmem:[%s1 + $0x18] sm:$0xff]
    %v145 = vld [vmem:[%s1 + $0x20] sm:$0xff]
    %v146 = vld [vmem:[%s1 + $0x28] sm:$0xff]
    %v147 = vld [vmem:[%s1 + $0x30] sm:$0xff]
    %v148 = vld [vmem:[%s1 + $0x38] sm:$0xff]
    %v149 = vld [vmem:[%s4] sm:$0xff]
    %v150 = vld [vmem:[%s4 + $0x8] sm:$0xff]
    %v151 = vld [vmem:[%s4 + $0x10] sm:$0xff]
    %v152 = vld [vmem:[%s4 + $0x18] sm:$0xff]
    %v153 = vld [vmem:[%s5] sm:$0x1]
    %v155 = vlaneseq
    %v156 = vshrl.u32 %v155, 7
    %v157 = vsub.s32 0, %v156
    %v158 = vrot.slane %v153, %v157
    %v161 = vsel %vm97, %v139, 0
    %v164 = vsel %vm97, %v140, 0
    %166 = vmatprep.subr.mxu0 0.0
    %167 = vmatpush1.msra.mxu0 %v149
    %168 = vmatprep.subr.mxu0 0.0
    %169 = vmatpush1.msra.mxu0 %v150
    %170 = vmatprep.subr.mxu0 0.0
    %171 = vmatpush1.msra.mxu0 %v151
    %172 = vmatprep.subr.mxu0 0.0
    %173 = vmatpush1.msra.mxu0 %v152
    %174 = vmatprep.subr.mxu0 0.0
    %175 = vmatpush1.msra.mxu0 0.0
    %176 = vmatprep.subr.mxu0 0.0
    %177 = vmatpush1.msra.mxu0 0.0
    %178 = vmatprep.subr.mxu0 0.0
    %179 = vmatpush1.msra.mxu0 0.0
    %180 = vmatprep.subr.mxu0 0.0
    %181 = vmatpush1.msra.mxu0 0.0
    %182 = vmatprep.subr.mxu0 0.0
    %183 = vmatpush1.msra.mxu0 0.0
    %184 = vmatprep.subr.mxu0 0.0
    %185 = vmatpush1.msra.mxu0 0.0
    %186 = vmatprep.subr.mxu0 0.0
    %187 = vmatpush1.msra.mxu0 0.0
    %188 = vmatprep.subr.mxu0 0.0
    %189 = vmatpush1.msra.mxu0 0.0
    %190 = vmatprep.subr.mxu0 0.0
    %191 = vmatpush1.msra.mxu0 0.0
    %192 = vmatprep.subr.mxu0 0.0
    %193 = vmatpush1.msra.mxu0 0.0
    %194 = vmatprep.subr.mxu0 0.0
    %195 = vmatpush1.msra.mxu0 0.0
    %196 = vmatprep.subr.mxu0 0.0
    %197 = vmatpush1.msra.mxu0 0.0
    %198 = vmatprep.subr.mxu0 0.0
    %199 = vmatpush1.msra.mxu0 0.0
    %200 = vmatprep.subr.mxu0 0.0
    %201 = vmatpush1.msra.mxu0 0.0
    %202 = vmatprep.subr.mxu0 0.0
    %203 = vmatpush1.msra.mxu0 0.0
    %204 = vmatprep.subr.mxu0 0.0
    %205 = vmatpush1.msra.mxu0 0.0
    %206 = vmatprep.subr.mxu0 0.0
    %207 = vmatpush1.msra.mxu0 0.0
    %208 = vmatprep.subr.mxu0 0.0
    %209 = vmatpush1.msra.mxu0 0.0
    %210 = vmatprep.subr.mxu0 0.0
    %211 = vmatpush1.msra.mxu0 0.0
    %212 = vmatprep.subr.mxu0 0.0
    %213 = vmatpush1.msra.mxu0 0.0
    %214 = vmatprep.subr.mxu0 0.0
    %215 = vmatpush1.msra.mxu0 0.0
    %216 = vmatprep.subr.mxu0 0.0
    %217 = vmatpush1.msra.mxu0 0.0
    %218 = vmatprep.subr.mxu0 0.0
    %219 = vmatpush1.msra.mxu0 0.0
    %220 = vmatprep.subr.mxu0 0.0
    %221 = vmatpush1.msra.mxu0 0.0
    %222 = vmatprep.subr.mxu0 0.0
    %223 = vmatpush1.msra.mxu0 0.0
    %224 = vmatprep.subr.mxu0 0.0
    %225 = vmatpush1.msra.mxu0 0.0
    %226 = vmatprep.subr.mxu0 0.0
    %227 = vmatpush1.msra.mxu0 0.0
    %228 = vmatprep.subr.mxu0 0.0
    %229 = vmatpush1.msra.mxu0 0.0
    %230 = vmatprep.mubr.f32.mxu0 0.0
    %231 = vmatmul.mubr.f32.gmra.mrb[0].mxu0 %v161
    %v232 = vpop.f32.mrb[0].mxu0
    %v233 = vadd.f32 %v158, %v232
    %v234 = vpop.f32.mrb[0].mxu0
    %235 = vmatprep.mubr.f32.mxu0 0.0
    %236 = vmatmul.mubr.f32.gmra.mrb[0].mxu0 %v164
    %v237 = vpop.f32.mrb[0].mxu0
    %v238 = vadd.f32 %v158, %v237
    %v239 = vpop.f32.mrb[0].mxu0
    %240 = vdwg.mxu0
    %243 = vrot.lane.b32.xlu0 %v233, 120
    %v244 = vpop.permute.xlu0 %243
    %245 = vrot.lane.b32.xlu0 %v238, 120
    %v246 = vpop.permute.xlu0 %245
    %247 = vrot.lane.b32.xlu0 %v233, 112
    %v248 = vpop.permute.xlu0 %247
    %249 = vrot.lane.b32.xlu0 %v238, 112
    %v250 = vpop.permute.xlu0 %249
    %251 = vrot.lane.b32.xlu0 %v233, 104
    %v252 = vpop.permute.xlu0 %251
    %253 = vrot.lane.b32.xlu0 %v238, 104
    %v254 = vpop.permute.xlu0 %253
    %255 = vrot.lane.b32.xlu0 %v233, 96
    %v256 = vpop.permute.xlu0 %255
    %vm257 = vcmask 64512
    %v258 = vsel %vm257, %v233, 0
    %v260 = vsel %vm257, %v256, 0
    %262 = vmatprep.subr.mxu0 0.0
    %263 = vmatpush1.xpose.msra.mxu0 %v260
    %264 = vmatprep.subr.mxu0 0.0
    %265 = vmatpush1.xpose.msra.mxu0 0.0
    %266 = vmatprep.subr.mxu0 0.0
    %267 = vmatpush1.xpose.msra.mxu0 0.0
    %268 = vmatprep.subr.mxu0 0.0
    %269 = vmatpush1.xpose.msra.mxu0 0.0
    %270 = vmatprep.subr.mxu0 0.0
    %271 = vmatpush1.xpose.msra.mxu0 0.0
    %272 = vmatprep.subr.mxu0 0.0
    %273 = vmatpush1.xpose.msra.mxu0 0.0
    %274 = vmatprep.subr.mxu0 0.0
    %275 = vmatpush1.xpose.msra.mxu0 0.0
    %276 = vmatprep.subr.mxu0 0.0
    %277 = vmatpush1.xpose.msra.mxu0 0.0
    %278 = vmatprep.subr.mxu0 0.0
    %279 = vmatpush1.xpose.msra.mxu0 0.0
    %280 = vmatprep.subr.mxu0 0.0
    %281 = vmatpush1.xpose.msra.mxu0 0.0
    %282 = vmatprep.subr.mxu0 0.0
    %283 = vmatpush1.xpose.msra.mxu0 0.0
    %284 = vmatprep.subr.mxu0 0.0
    %285 = vmatpush1.xpose.msra.mxu0 0.0
    %286 = vmatprep.subr.mxu0 0.0
    %287 = vmatpush1.xpose.msra.mxu0 0.0
    %288 = vmatprep.subr.mxu0 0.0
    %289 = vmatpush1.xpose.msra.mxu0 0.0
    %290 = vmatprep.subr.mxu0 0.0
    %291 = vmatpush1.xpose.msra.mxu0 0.0
    %292 = vmatprep.subr.mxu0 0.0
    %293 = vmatpush1.xpose.msra.mxu0 0.0
    %294 = vmatprep.subr.mxu0 0.0
    %295 = vmatpush1.xpose.msra.mxu0 0.0
    %296 = vmatprep.subr.mxu0 0.0
    %297 = vmatpush1.xpose.msra.mxu0 0.0
    %298 = vmatprep.subr.mxu0 0.0
    %299 = vmatpush1.xpose.msra.mxu0 0.0
    %300 = vmatprep.subr.mxu0 0.0
    %301 = vmatpush1.xpose.msra.mxu0 0.0
    %302 = vmatprep.subr.mxu0 0.0
    %303 = vmatpush1.xpose.msra.mxu0 0.0
    %304 = vmatprep.subr.mxu0 0.0
    %305 = vmatpush1.xpose.msra.mxu0 0.0
    %306 = vmatprep.subr.mxu0 0.0
    %307 = vmatpush1.xpose.msra.mxu0 0.0
    %308 = vmatprep.subr.mxu0 0.0
    %309 = vmatpush1.xpose.msra.mxu0 0.0
    %310 = vmatprep.subr.mxu0 0.0
    %311 = vmatpush1.xpose.msra.mxu0 0.0
    %312 = vmatprep.subr.mxu0 0.0
    %313 = vmatpush1.xpose.msra.mxu0 0.0
    %314 = vmatprep.subr.mxu0 0.0
    %315 = vmatpush1.xpose.msra.mxu0 0.0
    %316 = vmatprep.subr.mxu0 0.0
    %317 = vmatpush1.xpose.msra.mxu0 0.0
    %318 = vmatprep.subr.mxu0 0.0
    %319 = vmatpush1.xpose.msra.mxu0 0.0
    %320 = vmatprep.subr.mxu0 0.0
    %321 = vmatpush1.xpose.msra.mxu0 0.0
    %322 = vmatprep.subr.mxu0 0.0
    %323 = vmatpush1.xpose.msra.mxu0 0.0
    %324 = vmatprep.subr.mxu0 0.0
    %325 = vmatpush1.xpose.msra.mxu0 0.0
    %326 = vmatprep.mubr.f32.mxu0 0.0
    %327 = vmatmul.mubr.f32.gmra.mrb[0].mxu0 %v258
    %v328 = vpop.f32.mrb[0].mxu0
    %v329 = vadd.f32 %v141, %v328
    %v330 = vpop.f32.mrb[0].mxu0
    %331 = vdwg.mxu0
    %332 = vrot.lane.b32.xlu0 %v238, 96
    %v333 = vpop.permute.xlu0 %332
    %v334 = vsel %vm257, %v238, 0
    %v336 = vsel %vm257, %v333, 0
    %338 = vmatprep.subr.mxu0 0.0
    %339 = vmatpush1.xpose.msra.mxu0 %v336
    %340 = vmatprep.subr.mxu0 0.0
    %341 = vmatpush1.xpose.msra.mxu0 0.0
    %342 = vmatprep.subr.mxu0 0.0
    %343 = vmatpush1.xpose.msra.mxu0 0.0
    %344 = vmatprep.subr.mxu0 0.0
    %345 = vmatpush1.xpose.msra.mxu0 0.0
    %346 = vmatprep.subr.mxu0 0.0
    %347 = vmatpush1.xpose.msra.mxu0 0.0
    %348 = vmatprep.subr.mxu0 0.0
    %349 = vmatpush1.xpose.msra.mxu0 0.0
    %350 = vmatprep.subr.mxu0 0.0
    %351 = vmatpush1.xpose.msra.mxu0 0.0
    %352 = vmatprep.subr.mxu0 0.0
    %353 = vmatpush1.xpose.msra.mxu0 0.0
    %354 = vmatprep.subr.mxu0 0.0
    %355 = vmatpush1.xpose.msra.mxu0 0.0
    %356 = vmatprep.subr.mxu0 0.0
    %357 = vmatpush1.xpose.msra.mxu0 0.0
    %358 = vmatprep.subr.mxu0 0.0
    %359 = vmatpush1.xpose.msra.mxu0 0.0
    %360 = vmatprep.subr.mxu0 0.0
    %361 = vmatpush1.xpose.msra.mxu0 0.0
    %362 = vmatprep.subr.mxu0 0.0
    %363 = vmatpush1.xpose.msra.mxu0 0.0
    %364 = vmatprep.subr.mxu0 0.0
    %365 = vmatpush1.xpose.msra.mxu0 0.0
    %366 = vmatprep.subr.mxu0 0.0
    %367 = vmatpush1.xpose.msra.mxu0 0.0
    %368 = vmatprep.subr.mxu0 0.0
    %369 = vmatpush1.xpose.msra.mxu0 0.0
    %370 = vmatprep.subr.mxu0 0.0
    %371 = vmatpush1.xpose.msra.mxu0 0.0
    %372 = vmatprep.subr.mxu0 0.0
    %373 = vmatpush1.xpose.msra.mxu0 0.0
    %374 = vmatprep.subr.mxu0 0.0
    %375 = vmatpush1.xpose.msra.mxu0 0.0
    %376 = vmatprep.subr.mxu0 0.0
    %377 = vmatpush1.xpose.msra.mxu0 0.0
    %378 = vmatprep.subr.mxu0 0.0
    %379 = vmatpush1.xpose.msra.mxu0 0.0
    %380 = vmatprep.subr.mxu0 0.0
    %381 = vmatpush1.xpose.msra.mxu0 0.0
    %382 = vmatprep.subr.mxu0 0.0
    %383 = vmatpush1.xpose.msra.mxu0 0.0
    %384 = vmatprep.subr.mxu0 0.0
    %385 = vmatpush1.xpose.msra.mxu0 0.0
    %386 = vmatprep.subr.mxu0 0.0
    %387 = vmatpush1.xpose.msra.mxu0 0.0
    %388 = vmatprep.subr.mxu0 0.0
    %389 = vmatpush1.xpose.msra.mxu0 0.0
    %390 = vmatprep.subr.mxu0 0.0
    %391 = vmatpush1.xpose.msra.mxu0 0.0
    %392 = vmatprep.subr.mxu0 0.0
    %393 = vmatpush1.xpose.msra.mxu0 0.0
    %394 = vmatprep.subr.mxu0 0.0
    %395 = vmatpush1.xpose.msra.mxu0 0.0
    %396 = vmatprep.subr.mxu0 0.0
    %397 = vmatpush1.xpose.msra.mxu0 0.0
    %398 = vmatprep.subr.mxu0 0.0
    %399 = vmatpush1.xpose.msra.mxu0 0.0
    %400 = vmatprep.subr.mxu0 0.0
    %401 = vmatpush1.xpose.msra.mxu0 0.0
    %402 = vmatprep.mubr.f32.mxu0 0.0
    %403 = vmatmul.mubr.f32.gmra.mrb[0].mxu0 %v334
    %v404 = vpop.f32.mrb[0].mxu0
    %v405 = vadd.f32 %v142, %v404
    %v406 = vpop.f32.mrb[0].mxu0
    %407 = vdwg.mxu0
    %408 = vrot.lane.b32.xlu0 %v244, 96
    %v409 = vpop.permute.xlu0 %408
    %v410 = vsel %vm257, %v244, 0
    %v412 = vsel %vm257, %v409, 0
    %414 = vmatprep.subr.mxu0 0.0
    %415 = vmatpush1.xpose.msra.mxu0 %v412
    %416 = vmatprep.subr.mxu0 0.0
    %417 = vmatpush1.xpose.msra.mxu0 0.0
    %418 = vmatprep.subr.mxu0 0.0
    %419 = vmatpush1.xpose.msra.mxu0 0.0
    %420 = vmatprep.subr.mxu0 0.0
    %421 = vmatpush1.xpose.msra.mxu0 0.0
    %422 = vmatprep.subr.mxu0 0.0
    %423 = vmatpush1.xpose.msra.mxu0 0.0
    %424 = vmatprep.subr.mxu0 0.0
    %425 = vmatpush1.xpose.msra.mxu0 0.0
    %426 = vmatprep.subr.mxu0 0.0
    %427 = vmatpush1.xpose.msra.mxu0 0.0
    %428 = vmatprep.subr.mxu0 0.0
    %429 = vmatpush1.xpose.msra.mxu0 0.0
    %430 = vmatprep.subr.mxu0 0.0
    %431 = vmatpush1.xpose.msra.mxu0 0.0
    %432 = vmatprep.subr.mxu0 0.0
    %433 = vmatpush1.xpose.msra.mxu0 0.0
    %434 = vmatprep.subr.mxu0 0.0
    %435 = vmatpush1.xpose.msra.mxu0 0.0
    %436 = vmatprep.subr.mxu0 0.0
    %437 = vmatpush1.xpose.msra.mxu0 0.0
    %438 = vmatprep.subr.mxu0 0.0
    %439 = vmatpush1.xpose.msra.mxu0 0.0
    %440 = vmatprep.subr.mxu0 0.0
    %441 = vmatpush1.xpose.msra.mxu0 0.0
    %442 = vmatprep.subr.mxu0 0.0
    %443 = vmatpush1.xpose.msra.mxu0 0.0
    %444 = vmatprep.subr.mxu0 0.0
    %445 = vmatpush1.xpose.msra.mxu0 0.0
    %446 = vmatprep.subr.mxu0 0.0
    %447 = vmatpush1.xpose.msra.mxu0 0.0
    %448 = vmatprep.subr.mxu0 0.0
    %449 = vmatpush1.xpose.msra.mxu0 0.0
    %450 = vmatprep.subr.mxu0 0.0
    %451 = vmatpush1.xpose.msra.mxu0 0.0
    %452 = vmatprep.subr.mxu0 0.0
    %453 = vmatpush1.xpose.msra.mxu0 0.0
    %454 = vmatprep.subr.mxu0 0.0
    %455 = vmatpush1.xpose.msra.mxu0 0.0
    %456 = vmatprep.subr.mxu0 0.0
    %457 = vmatpush1.xpose.msra.mxu0 0.0
    %458 = vmatprep.subr.mxu0 0.0
    %459 = vmatpush1.xpose.msra.mxu0 0.0
    %460 = vmatprep.subr.mxu0 0.0
    %461 = vmatpush1.xpose.msra.mxu0 0.0
    %462 = vmatprep.subr.mxu0 0.0
    %463 = vmatpush1.xpose.msra.mxu0 0.0
    %464 = vmatprep.subr.mxu0 0.0
    %465 = vmatpush1.xpose.msra.mxu0 0.0
    %466 = vmatprep.subr.mxu0 0.0
    %467 = vmatpush1.xpose.msra.mxu0 0.0
    %468 = vmatprep.subr.mxu0 0.0
    %469 = vmatpush1.xpose.msra.mxu0 0.0
    %470 = vmatprep.subr.mxu0 0.0
    %471 = vmatpush1.xpose.msra.mxu0 0.0
    %472 = vmatprep.subr.mxu0 0.0
    %473 = vmatpush1.xpose.msra.mxu0 0.0
    %474 = vmatprep.subr.mxu0 0.0
    %475 = vmatpush1.xpose.msra.mxu0 0.0
    %476 = vmatprep.subr.mxu0 0.0
    %477 = vmatpush1.xpose.msra.mxu0 0.0
    %478 = vmatprep.mubr.f32.mxu0 0.0
    %479 = vmatmul.mubr.f32.gmra.mrb[0].mxu0 %v410
    %v480 = vpop.f32.mrb[0].mxu0
    %v481 = vadd.f32 %v143, %v480
    %v482 = vpop.f32.mrb[0].mxu0
    %483 = vdwg.mxu0
    %484 = vrot.lane.b32.xlu0 %v246, 96
    %v485 = vpop.permute.xlu0 %484
    %v486 = vsel %vm257, %v246, 0
    %v488 = vsel %vm257, %v485, 0
    %490 = vmatprep.subr.mxu0 0.0
    %491 = vmatpush1.xpose.msra.mxu0 %v488
    %492 = vmatprep.subr.mxu0 0.0
    %493 = vmatpush1.xpose.msra.mxu0 0.0
    %494 = vmatprep.subr.mxu0 0.0
    %495 = vmatpush1.xpose.msra.mxu0 0.0
    %496 = vmatprep.subr.mxu0 0.0
    %497 = vmatpush1.xpose.msra.mxu0 0.0
    %498 = vmatprep.subr.mxu0 0.0
    %499 = vmatpush1.xpose.msra.mxu0 0.0
    %500 = vmatprep.subr.mxu0 0.0
    %501 = vmatpush1.xpose.msra.mxu0 0.0
    %502 = vmatprep.subr.mxu0 0.0
    %503 = vmatpush1.xpose.msra.mxu0 0.0
    %504 = vmatprep.subr.mxu0 0.0
    %505 = vmatpush1.xpose.msra.mxu0 0.0
    %506 = vmatprep.subr.mxu0 0.0
    %507 = vmatpush1.xpose.msra.mxu0 0.0
    %508 = vmatprep.subr.mxu0 0.0
    %509 = vmatpush1.xpose.msra.mxu0 0.0
    %510 = vmatprep.subr.mxu0 0.0
    %511 = vmatpush1.xpose.msra.mxu0 0.0
    %512 = vmatprep.subr.mxu0 0.0
    %513 = vmatpush1.xpose.msra.mxu0 0.0
    %514 = vmatprep.subr.mxu0 0.0
    %515 = vmatpush1.xpose.msra.mxu0 0.0
    %516 = vmatprep.subr.mxu0 0.0
    %517 = vmatpush1.xpose.msra.mxu0 0.0
    %518 = vmatprep.subr.mxu0 0.0
    %519 = vmatpush1.xpose.msra.mxu0 0.0
    %520 = vmatprep.subr.mxu0 0.0
    %521 = vmatpush1.xpose.msra.mxu0 0.0
    %522 = vmatprep.subr.mxu0 0.0
    %523 = vmatpush1.xpose.msra.mxu0 0.0
    %524 = vmatprep.subr.mxu0 0.0
    %525 = vmatpush1.xpose.msra.mxu0 0.0
    %526 = vmatprep.subr.mxu0 0.0
    %527 = vmatpush1.xpose.msra.mxu0 0.0
    %528 = vmatprep.subr.mxu0 0.0
    %529 = vmatpush1.xpose.msra.mxu0 0.0
    %530 = vmatprep.subr.mxu0 0.0
    %531 = vmatpush1.xpose.msra.mxu0 0.0
    %532 = vmatprep.subr.mxu0 0.0
    %533 = vmatpush1.xpose.msra.mxu0 0.0
    %534 = vmatprep.subr.mxu0 0.0
    %535 = vmatpush1.xpose.msra.mxu0 0.0
    %536 = vmatprep.subr.mxu0 0.0
    %537 = vmatpush1.xpose.msra.mxu0 0.0
    %538 = vmatprep.subr.mxu0 0.0
    %539 = vmatpush1.xpose.msra.mxu0 0.0
    %540 = vmatprep.subr.mxu0 0.0
    %541 = vmatpush1.xpose.msra.mxu0 0.0
    %542 = vmatprep.subr.mxu0 0.0
    %543 = vmatpush1.xpose.msra.mxu0 0.0
    %544 = vmatprep.subr.mxu0 0.0
    %545 = vmatpush1.xpose.msra.mxu0 0.0
    %546 = vmatprep.subr.mxu0 0.0
    %547 = vmatpush1.xpose.msra.mxu0 0.0
    %548 = vmatprep.subr.mxu0 0.0
    %549 = vmatpush1.xpose.msra.mxu0 0.0
    %550 = vmatprep.subr.mxu0 0.0
    %551 = vmatpush1.xpose.msra.mxu0 0.0
    %552 = vmatprep.subr.mxu0 0.0
    %553 = vmatpush1.xpose.msra.mxu0 0.0
    %554 = vmatprep.mubr.f32.mxu0 0.0
    %555 = vmatmul.mubr.f32.gmra.mrb[0].mxu0 %v486
    %v556 = vpop.f32.mrb[0].mxu0
    %v557 = vadd.f32 %v144, %v556
    %v558 = vpop.f32.mrb[0].mxu0
    %559 = vdwg.mxu0
    %560 = vrot.lane.b32.xlu0 %v248, 96
    %v561 = vpop.permute.xlu0 %560
    %v562 = vsel %vm257, %v248, 0
    %v564 = vsel %vm257, %v561, 0
    %566 = vmatprep.subr.mxu0 0.0
    %567 = vmatpush1.xpose.msra.mxu0 %v564
    %568 = vmatprep.subr.mxu0 0.0
    %569 = vmatpush1.xpose.msra.mxu0 0.0
    %570 = vmatprep.subr.mxu0 0.0
    %571 = vmatpush1.xpose.msra.mxu0 0.0
    %572 = vmatprep.subr.mxu0 0.0
    %573 = vmatpush1.xpose.msra.mxu0 0.0
    %574 = vmatprep.subr.mxu0 0.0
    %575 = vmatpush1.xpose.msra.mxu0 0.0
    %576 = vmatprep.subr.mxu0 0.0
    %577 = vmatpush1.xpose.msra.mxu0 0.0
    %578 = vmatprep.subr.mxu0 0.0
    %579 = vmatpush1.xpose.msra.mxu0 0.0
    %580 = vmatprep.subr.mxu0 0.0
    %581 = vmatpush1.xpose.msra.mxu0 0.0
    %582 = vmatprep.subr.mxu0 0.0
    %583 = vmatpush1.xpose.msra.mxu0 0.0
    %584 = vmatprep.subr.mxu0 0.0
    %585 = vmatpush1.xpose.msra.mxu0 0.0
    %586 = vmatprep.subr.mxu0 0.0
    %587 = vmatpush1.xpose.msra.mxu0 0.0
    %588 = vmatprep.subr.mxu0 0.0
    %589 = vmatpush1.xpose.msra.mxu0 0.0
    %590 = vmatprep.subr.mxu0 0.0
    %591 = vmatpush1.xpose.msra.mxu0 0.0
    %592 = vmatprep.subr.mxu0 0.0
    %593 = vmatpush1.xpose.msra.mxu0 0.0
    %594 = vmatprep.subr.mxu0 0.0
    %595 = vmatpush1.xpose.msra.mxu0 0.0
    %596 = vmatprep.subr.mxu0 0.0
    %597 = vmatpush1.xpose.msra.mxu0 0.0
    %598 = vmatprep.subr.mxu0 0.0
    %599 = vmatpush1.xpose.msra.mxu0 0.0
    %600 = vmatprep.subr.mxu0 0.0
    %601 = vmatpush1.xpose.msra.mxu0 0.0
    %602 = vmatprep.subr.mxu0 0.0
    %603 = vmatpush1.xpose.msra.mxu0 0.0
    %604 = vmatprep.subr.mxu0 0.0
    %605 = vmatpush1.xpose.msra.mxu0 0.0
    %606 = vmatprep.subr.mxu0 0.0
    %607 = vmatpush1.xpose.msra.mxu0 0.0
    %608 = vmatprep.subr.mxu0 0.0
    %609 = vmatpush1.xpose.msra.mxu0 0.0
    %610 = vmatprep.subr.mxu0 0.0
    %611 = vmatpush1.xpose.msra.mxu0 0.0
    %612 = vmatprep.subr.mxu0 0.0
    %613 = vmatpush1.xpose.msra.mxu0 0.0
    %614 = vmatprep.subr.mxu0 0.0
    %615 = vmatpush1.xpose.msra.mxu0 0.0
    %616 = vmatprep.subr.mxu0 0.0
    %617 = vmatpush1.xpose.msra.mxu0 0.0
    %618 = vmatprep.subr.mxu0 0.0
    %619 = vmatpush1.xpose.msra.mxu0 0.0
    %620 = vmatprep.subr.mxu0 0.0
    %621 = vmatpush1.xpose.msra.mxu0 0.0
    %622 = vmatprep.subr.mxu0 0.0
    %623 = vmatpush1.xpose.msra.mxu0 0.0
    %624 = vmatprep.subr.mxu0 0.0
    %625 = vmatpush1.xpose.msra.mxu0 0.0
    %626 = vmatprep.subr.mxu0 0.0
    %627 = vmatpush1.xpose.msra.mxu0 0.0
    %628 = vmatprep.subr.mxu0 0.0
    %629 = vmatpush1.xpose.msra.mxu0 0.0
    %630 = vmatprep.mubr.f32.mxu0 0.0
    %631 = vmatmul.mubr.f32.gmra.mrb[0].mxu0 %v562
    %v632 = vpop.f32.mrb[0].mxu0
    %v633 = vadd.f32 %v145, %v632
    %v634 = vpop.f32.mrb[0].mxu0
    %635 = vdwg.mxu0
    %636 = vrot.lane.b32.xlu0 %v250, 96
    %v637 = vpop.permute.xlu0 %636
    %v638 = vsel %vm257, %v250, 0
    %v640 = vsel %vm257, %v637, 0
    %642 = vmatprep.subr.mxu0 0.0
    %643 = vmatpush1.xpose.msra.mxu0 %v640
    %644 = vmatprep.subr.mxu0 0.0
    %645 = vmatpush1.xpose.msra.mxu0 0.0
    %646 = vmatprep.subr.mxu0 0.0
    %647 = vmatpush1.xpose.msra.mxu0 0.0
    %648 = vmatprep.subr.mxu0 0.0
    %649 = vmatpush1.xpose.msra.mxu0 0.0
    %650 = vmatprep.subr.mxu0 0.0
    %651 = vmatpush1.xpose.msra.mxu0 0.0
    %652 = vmatprep.subr.mxu0 0.0
    %653 = vmatpush1.xpose.msra.mxu0 0.0
    %654 = vmatprep.subr.mxu0 0.0
    %655 = vmatpush1.xpose.msra.mxu0 0.0
    %656 = vmatprep.subr.mxu0 0.0
    %657 = vmatpush1.xpose.msra.mxu0 0.0
    %658 = vmatprep.subr.mxu0 0.0
    %659 = vmatpush1.xpose.msra.mxu0 0.0
    %660 = vmatprep.subr.mxu0 0.0
    %661 = vmatpush1.xpose.msra.mxu0 0.0
    %662 = vmatprep.subr.mxu0 0.0
    %663 = vmatpush1.xpose.msra.mxu0 0.0
    %664 = vmatprep.subr.mxu0 0.0
    %665 = vmatpush1.xpose.msra.mxu0 0.0
    %666 = vmatprep.subr.mxu0 0.0
    %667 = vmatpush1.xpose.msra.mxu0 0.0
    %668 = vmatprep.subr.mxu0 0.0
    %669 = vmatpush1.xpose.msra.mxu0 0.0
    %670 = vmatprep.subr.mxu0 0.0
    %671 = vmatpush1.xpose.msra.mxu0 0.0
    %672 = vmatprep.subr.mxu0 0.0
    %673 = vmatpush1.xpose.msra.mxu0 0.0
    %674 = vmatprep.subr.mxu0 0.0
    %675 = vmatpush1.xpose.msra.mxu0 0.0
    %676 = vmatprep.subr.mxu0 0.0
    %677 = vmatpush1.xpose.msra.mxu0 0.0
    %678 = vmatprep.subr.mxu0 0.0
    %679 = vmatpush1.xpose.msra.mxu0 0.0
    %680 = vmatprep.subr.mxu0 0.0
    %681 = vmatpush1.xpose.msra.mxu0 0.0
    %682 = vmatprep.subr.mxu0 0.0
    %683 = vmatpush1.xpose.msra.mxu0 0.0
    %684 = vmatprep.subr.mxu0 0.0
    %685 = vmatpush1.xpose.msra.mxu0 0.0
    %686 = vmatprep.subr.mxu0 0.0
    %687 = vmatpush1.xpose.msra.mxu0 0.0
    %688 = vmatprep.subr.mxu0 0.0
    %689 = vmatpush1.xpose.msra.mxu0 0.0
    %690 = vmatprep.subr.mxu0 0.0
    %691 = vmatpush1.xpose.msra.mxu0 0.0
    %692 = vmatprep.subr.mxu0 0.0
    %693 = vmatpush1.xpose.msra.mxu0 0.0
    %694 = vmatprep.subr.mxu0 0.0
    %695 = vmatpush1.xpose.msra.mxu0 0.0
    %696 = vmatprep.subr.mxu0 0.0
    %697 = vmatpush1.xpose.msra.mxu0 0.0
    %698 = vmatprep.subr.mxu0 0.0
    %699 = vmatpush1.xpose.msra.mxu0 0.0
    %700 = vmatprep.subr.mxu0 0.0
    %701 = vmatpush1.xpose.msra.mxu0 0.0
    %702 = vmatprep.subr.mxu0 0.0
    %703 = vmatpush1.xpose.msra.mxu0 0.0
    %704 = vmatprep.subr.mxu0 0.0
    %705 = vmatpush1.xpose.msra.mxu0 0.0
    %706 = vmatprep.mubr.f32.mxu0 0.0
    %707 = vmatmul.mubr.f32.gmra.mrb[0].mxu0 %v638
    %v708 = vpop.f32.mrb[0].mxu0
    %v709 = vadd.f32 %v146, %v708
    %v710 = vpop.f32.mrb[0].mxu0
    %711 = vdwg.mxu0
    %712 = vrot.lane.b32.xlu0 %v252, 96
    %v713 = vpop.permute.xlu0 %712
    %v714 = vsel %vm257, %v252, 0
    %v716 = vsel %vm257, %v713, 0
    %718 = vmatprep.subr.mxu0 0.0
    %719 = vmatpush1.xpose.msra.mxu0 %v716
    %720 = vmatprep.subr.mxu0 0.0
    %721 = vmatpush1.xpose.msra.mxu0 0.0
    %722 = vmatprep.subr.mxu0 0.0
    %723 = vmatpush1.xpose.msra.mxu0 0.0
    %724 = vmatprep.subr.mxu0 0.0
    %725 = vmatpush1.xpose.msra.mxu0 0.0
    %726 = vmatprep.subr.mxu0 0.0
    %727 = vmatpush1.xpose.msra.mxu0 0.0
    %728 = vmatprep.subr.mxu0 0.0
    %729 = vmatpush1.xpose.msra.mxu0 0.0
    %730 = vmatprep.subr.mxu0 0.0
    %731 = vmatpush1.xpose.msra.mxu0 0.0
    %732 = vmatprep.subr.mxu0 0.0
    %733 = vmatpush1.xpose.msra.mxu0 0.0
    %734 = vmatprep.subr.mxu0 0.0
    %735 = vmatpush1.xpose.msra.mxu0 0.0
    %736 = vmatprep.subr.mxu0 0.0
    %737 = vmatpush1.xpose.msra.mxu0 0.0
    %738 = vmatprep.subr.mxu0 0.0
    %739 = vmatpush1.xpose.msra.mxu0 0.0
    %740 = vmatprep.subr.mxu0 0.0
    %741 = vmatpush1.xpose.msra.mxu0 0.0
    %742 = vmatprep.subr.mxu0 0.0
    %743 = vmatpush1.xpose.msra.mxu0 0.0
    %744 = vmatprep.subr.mxu0 0.0
    %745 = vmatpush1.xpose.msra.mxu0 0.0
    %746 = vmatprep.subr.mxu0 0.0
    %747 = vmatpush1.xpose.msra.mxu0 0.0
    %748 = vmatprep.subr.mxu0 0.0
    %749 = vmatpush1.xpose.msra.mxu0 0.0
    %750 = vmatprep.subr.mxu0 0.0
    %751 = vmatpush1.xpose.msra.mxu0 0.0
    %752 = vmatprep.subr.mxu0 0.0
    %753 = vmatpush1.xpose.msra.mxu0 0.0
    %754 = vmatprep.subr.mxu0 0.0
    %755 = vmatpush1.xpose.msra.mxu0 0.0
    %756 = vmatprep.subr.mxu0 0.0
    %757 = vmatpush1.xpose.msra.mxu0 0.0
    %758 = vmatprep.subr.mxu0 0.0
    %759 = vmatpush1.xpose.msra.mxu0 0.0
    %760 = vmatprep.subr.mxu0 0.0
    %761 = vmatpush1.xpose.msra.mxu0 0.0
    %762 = vmatprep.subr.mxu0 0.0
    %763 = vmatpush1.xpose.msra.mxu0 0.0
    %764 = vmatprep.subr.mxu0 0.0
    %765 = vmatpush1.xpose.msra.mxu0 0.0
    %766 = vmatprep.subr.mxu0 0.0
    %767 = vmatpush1.xpose.msra.mxu0 0.0
    %768 = vmatprep.subr.mxu0 0.0
    %769 = vmatpush1.xpose.msra.mxu0 0.0
    %770 = vmatprep.subr.mxu0 0.0
    %771 = vmatpush1.xpose.msra.mxu0 0.0
    %772 = vmatprep.subr.mxu0 0.0
    %773 = vmatpush1.xpose.msra.mxu0 0.0
    %774 = vmatprep.subr.mxu0 0.0
    %775 = vmatpush1.xpose.msra.mxu0 0.0
    %776 = vmatprep.subr.mxu0 0.0
    %777 = vmatpush1.xpose.msra.mxu0 0.0
    %778 = vmatprep.subr.mxu0 0.0
    %779 = vmatpush1.xpose.msra.mxu0 0.0
    %780 = vmatprep.subr.mxu0 0.0
    %781 = vmatpush1.xpose.msra.mxu0 0.0
    %782 = vmatprep.mubr.f32.mxu0 0.0
    %783 = vmatmul.mubr.f32.gmra.mrb[0].mxu0 %v714
    %v784 = vpop.f32.mrb[0].mxu0
    %v785 = vadd.f32 %v147, %v784
    %v786 = vpop.f32.mrb[0].mxu0
    %787 = vdwg.mxu0
    %788 = vrot.lane.b32.xlu0 %v254, 96
    %v789 = vpop.permute.xlu0 %788
    %v790 = vsel %vm257, %v254, 0
    %v792 = vsel %vm257, %v789, 0
    %794 = vmatprep.subr.mxu0 0.0
    %795 = vmatpush1.xpose.msra.mxu0 %v792
    %796 = vmatprep.subr.mxu0 0.0
    %797 = vmatpush1.xpose.msra.mxu0 0.0
    %798 = vmatprep.subr.mxu0 0.0
    %799 = vmatpush1.xpose.msra.mxu0 0.0
    %800 = vmatprep.subr.mxu0 0.0
    %801 = vmatpush1.xpose.msra.mxu0 0.0
    %802 = vmatprep.subr.mxu0 0.0
    %803 = vmatpush1.xpose.msra.mxu0 0.0
    %804 = vmatprep.subr.mxu0 0.0
    %805 = vmatpush1.xpose.msra.mxu0 0.0
    %806 = vmatprep.subr.mxu0 0.0
    %807 = vmatpush1.xpose.msra.mxu0 0.0
    %808 = vmatprep.subr.mxu0 0.0
    %809 = vmatpush1.xpose.msra.mxu0 0.0
    %810 = vmatprep.subr.mxu0 0.0
    %811 = vmatpush1.xpose.msra.mxu0 0.0
    %812 = vmatprep.subr.mxu0 0.0
    %813 = vmatpush1.xpose.msra.mxu0 0.0
    %814 = vmatprep.subr.mxu0 0.0
    %815 = vmatpush1.xpose.msra.mxu0 0.0
    %816 = vmatprep.subr.mxu0 0.0
    %817 = vmatpush1.xpose.msra.mxu0 0.0
    %818 = vmatprep.subr.mxu0 0.0
    %819 = vmatpush1.xpose.msra.mxu0 0.0
    %820 = vmatprep.subr.mxu0 0.0
    %821 = vmatpush1.xpose.msra.mxu0 0.0
    %822 = vmatprep.subr.mxu0 0.0
    %823 = vmatpush1.xpose.msra.mxu0 0.0
    %824 = vmatprep.subr.mxu0 0.0
    %825 = vmatpush1.xpose.msra.mxu0 0.0
    %826 = vmatprep.subr.mxu0 0.0
    %827 = vmatpush1.xpose.msra.mxu0 0.0
    %828 = vmatprep.subr.mxu0 0.0
    %829 = vmatpush1.xpose.msra.mxu0 0.0
    %830 = vmatprep.subr.mxu0 0.0
    %831 = vmatpush1.xpose.msra.mxu0 0.0
    %832 = vmatprep.subr.mxu0 0.0
    %833 = vmatpush1.xpose.msra.mxu0 0.0
    %834 = vmatprep.subr.mxu0 0.0
    %835 = vmatpush1.xpose.msra.mxu0 0.0
    %836 = vmatprep.subr.mxu0 0.0
    %837 = vmatpush1.xpose.msra.mxu0 0.0
    %838 = vmatprep.subr.mxu0 0.0
    %839 = vmatpush1.xpose.msra.mxu0 0.0
    %840 = vmatprep.subr.mxu0 0.0
    %841 = vmatpush1.xpose.msra.mxu0 0.0
    %842 = vmatprep.subr.mxu0 0.0
    %843 = vmatpush1.xpose.msra.mxu0 0.0
    %844 = vmatprep.subr.mxu0 0.0
    %845 = vmatpush1.xpose.msra.mxu0 0.0
    %846 = vmatprep.subr.mxu0 0.0
    %847 = vmatpush1.xpose.msra.mxu0 0.0
    %848 = vmatprep.subr.mxu0 0.0
    %849 = vmatpush1.xpose.msra.mxu0 0.0
    %850 = vmatprep.subr.mxu0 0.0
    %851 = vmatpush1.xpose.msra.mxu0 0.0
    %852 = vmatprep.subr.mxu0 0.0
    %853 = vmatpush1.xpose.msra.mxu0 0.0
    %854 = vmatprep.subr.mxu0 0.0
    %855 = vmatpush1.xpose.msra.mxu0 0.0
    %856 = vmatprep.subr.mxu0 0.0
    %857 = vmatpush1.xpose.msra.mxu0 0.0
    %858 = vmatprep.mubr.f32.mxu0 0.0
    %859 = vmatmul.mubr.f32.gmra.mrb[0].mxu0 %v790
    %v860 = vpop.f32.mrb[0].mxu0
    %v861 = vadd.f32 %v148, %v860
    %v862 = vpop.f32.mrb[0].mxu0
    %863 = vdwg.mxu0
    %v864 = vsel %vm257, %v329, -inf
    %865 = vmax.xlane.f32.xlu0 %v864
    %v866 = vpop.xlane.xlu0 %865
    %v867 = vsel %vm257, %v405, -inf
    %868 = vmax.xlane.f32.xlu0 %v867
    %v869 = vpop.xlane.xlu0 %868
    %v870 = vsel %vm257, %v481, -inf
    %871 = vmax.xlane.f32.xlu0 %v870
    %v872 = vpop.xlane.xlu0 %871
    %v873 = vsel %vm257, %v557, -inf
    %874 = vmax.xlane.f32.xlu0 %v873
    %v875 = vpop.xlane.xlu0 %874
    %v876 = vsel %vm257, %v633, -inf
    %877 = vmax.xlane.f32.xlu0 %v876
    %v878 = vpop.xlane.xlu0 %877
    %v879 = vsel %vm257, %v709, -inf
    %880 = vmax.xlane.f32.xlu0 %v879
    %v881 = vpop.xlane.xlu0 %880
    %v882 = vsel %vm257, %v785, -inf
    %883 = vmax.xlane.f32.xlu0 %v882
    %v884 = vpop.xlane.xlu0 %883
    %v885 = vsel %vm257, %v861, -inf
    %886 = vmax.xlane.f32.xlu0 %v885
    %v887 = vpop.xlane.xlu0 %886
    %v888 = vsub.f32 %v329, %v866
    %v889 = vsub.f32 %v405, %v869
    %v890 = vsub.f32 %v481, %v872
    %v891 = vsub.f32 %v557, %v875
    %v892 = vsub.f32 %v633, %v878
    %v893 = vsub.f32 %v709, %v881
    %v894 = vsub.f32 %v785, %v884
    %v895 = vsub.f32 %v861, %v887
    %v896 = vmul.f32 %v888, 1.442695
    %v897 = vpow.pop %v896
    %v898 = vmul.f32 %v889, 1.442695
    %v899 = vpow.pop %v898
    %v900 = vmul.f32 %v890, 1.442695
    %v901 = vpow.pop %v900
    %v902 = vmul.f32 %v891, 1.442695
    %v903 = vpow.pop %v902
    %v904 = vmul.f32 %v892, 1.442695
    %v905 = vpow.pop %v904
    %v906 = vmul.f32 %v893, 1.442695
    %v907 = vpow.pop %v906
    %v908 = vmul.f32 %v894, 1.442695
    %v909 = vpow.pop %v908
    %v910 = vmul.f32 %v895, 1.442695
    %v911 = vpow.pop %v910
    %v912 = vsel %vm257, %v897, 0.0
    %913 = vadd.xlane.f32.xlu0 %v912
    %v914 = vpop.xlane.xlu0 %913
    %v915 = vsel %vm257, %v899, 0.0
    %916 = vadd.xlane.f32.xlu0 %v915
    %v917 = vpop.xlane.xlu0 %916
    %v918 = vsel %vm257, %v901, 0.0
    %919 = vadd.xlane.f32.xlu0 %v918
    %v920 = vpop.xlane.xlu0 %919
    %v921 = vsel %vm257, %v903, 0.0
    %922 = vadd.xlane.f32.xlu0 %v921
    %v923 = vpop.xlane.xlu0 %922
    %v924 = vsel %vm257, %v905, 0.0
    %925 = vadd.xlane.f32.xlu0 %v924
    %v926 = vpop.xlane.xlu0 %925
    %v927 = vsel %vm257, %v907, 0.0
    %928 = vadd.xlane.f32.xlu0 %v927
    %v929 = vpop.xlane.xlu0 %928
    %v930 = vsel %vm257, %v909, 0.0
    %931 = vadd.xlane.f32.xlu0 %v930
    %v932 = vpop.xlane.xlu0 %931
    %v933 = vsel %vm257, %v911, 0.0
    %934 = vadd.xlane.f32.xlu0 %v933
    %v935 = vpop.xlane.xlu0 %934
    %v936 = vrcp.pop %v914
    %v937 = vmul.f32 %v897, %v936
    %v938 = vrcp.pop %v917
    %v939 = vmul.f32 %v899, %v938
    %v940 = vrcp.pop %v920
    %v941 = vmul.f32 %v901, %v940
    %v942 = vrcp.pop %v923
    %v943 = vmul.f32 %v903, %v942
    %v944 = vrcp.pop %v926
    %v945 = vmul.f32 %v905, %v944
    %v946 = vrcp.pop %v929
    %v947 = vmul.f32 %v907, %v946
    %v948 = vrcp.pop %v932
    %v949 = vmul.f32 %v909, %v948
    %v950 = vrcp.pop %v935
    %v951 = vmul.f32 %v911, %v950
    %952 = vrot.lane.b32.xlu0 %v233, 64
    %v953 = vpop.permute.xlu0 %952
    %v956 = vsel %vm257, %v937, 0
    %958 = vmatprep.subr.mxu0 0.0
    %959 = vmatpush1.msra.mxu0 %v953
    %960 = vmatprep.subr.mxu0 0.0
    %961 = vmatpush1.msra.mxu0 0.0
    %962 = vmatprep.subr.mxu0 0.0
    %963 = vmatpush1.msra.mxu0 0.0
    %964 = vmatprep.subr.mxu0 0.0
    %965 = vmatpush1.msra.mxu0 0.0
    %966 = vmatprep.subr.mxu0 0.0
    %967 = vmatpush1.msra.mxu0 0.0
    %968 = vmatprep.subr.mxu0 0.0
    %969 = vmatpush1.msra.mxu0 0.0
    %970 = vmatprep.subr.mxu0 0.0
    %971 = vmatpush1.msra.mxu0 0.0
    %972 = vmatprep.subr.mxu0 0.0
    %973 = vmatpush1.msra.mxu0 0.0
    %974 = vmatprep.subr.mxu0 0.0
    %975 = vmatpush1.msra.mxu0 0.0
    %976 = vmatprep.subr.mxu0 0.0
    %977 = vmatpush1.msra.mxu0 0.0
    %978 = vmatprep.subr.mxu0 0.0
    %979 = vmatpush1.msra.mxu0 0.0
    %980 = vmatprep.subr.mxu0 0.0
    %981 = vmatpush1.msra.mxu0 0.0
    %982 = vmatprep.subr.mxu0 0.0
    %983 = vmatpush1.msra.mxu0 0.0
    %984 = vmatprep.subr.mxu0 0.0
    %985 = vmatpush1.msra.mxu0 0.0
    %986 = vmatprep.subr.mxu0 0.0
    %987 = vmatpush1.msra.mxu0 0.0
    %988 = vmatprep.subr.mxu0 0.0
    %989 = vmatpush1.msra.mxu0 0.0
    %990 = vmatprep.subr.mxu0 0.0
    %991 = vmatpush1.msra.mxu0 0.0
    %992 = vmatprep.subr.mxu0 0.0
    %993 = vmatpush1.msra.mxu0 0.0
    %994 = vmatprep.subr.mxu0 0.0
    %995 = vmatpush1.msra.mxu0 0.0
    %996 = vmatprep.subr.mxu0 0.0
    %997 = vmatpush1.msra.mxu0 0.0
    %998 = vmatprep.subr.mxu0 0.0
    %999 = vmatpush1.msra.mxu0 0.0
    %1000 = vmatprep.subr.mxu0 0.0
    %1001 = vmatpush1.msra.mxu0 0.0
    %1002 = vmatprep.subr.mxu0 0.0
    %1003 = vmatpush1.msra.mxu0 0.0
    %1004 = vmatprep.subr.mxu0 0.0
    %1005 = vmatpush1.msra.mxu0 0.0
    %1006 = vmatprep.subr.mxu0 0.0
    %1007 = vmatpush1.msra.mxu0 0.0
    %1008 = vmatprep.subr.mxu0 0.0
    %1009 = vmatpush1.msra.mxu0 0.0
    %1010 = vmatprep.subr.mxu0 0.0
    %1011 = vmatpush1.msra.mxu0 0.0
    %1012 = vmatprep.subr.mxu0 0.0
    %1013 = vmatpush1.msra.mxu0 0.0
    %1014 = vmatprep.subr.mxu0 0.0
    %1015 = vmatpush1.msra.mxu0 0.0
    %1016 = vmatprep.subr.mxu0 0.0
    %1017 = vmatpush1.msra.mxu0 0.0
    %1018 = vmatprep.subr.mxu0 0.0
    %1019 = vmatpush1.msra.mxu0 0.0
    %1020 = vmatprep.subr.mxu0 0.0
    %1021 = vmatpush1.msra.mxu0 0.0
    %1022 = vmatprep.mubr.f32.mxu0 0.0
    %1023 = vmatmul.mubr.f32.gmra.mrb[0].mxu0 %v956
    %v1024 = vpop.f32.mrb[0].mxu0
    %v1025 = vadd.f32 0.0, %v1024
    %v1026 = vpop.f32.mrb[0].mxu0
    %1027 = vdwg.mxu0
    %1028 = vrot.lane.b32.xlu0 %v238, 64
    %v1029 = vpop.permute.xlu0 %1028
    %v1032 = vsel %vm257, %v939, 0
    %1034 = vmatprep.subr.mxu0 0.0
    %1035 = vmatpush1.msra.mxu0 %v1029
    %1036 = vmatprep.subr.mxu0 0.0
    %1037 = vmatpush1.msra.mxu0 0.0
    %1038 = vmatprep.subr.mxu0 0.0
    %1039 = vmatpush1.msra.mxu0 0.0
    %1040 = vmatprep.subr.mxu0 0.0
    %1041 = vmatpush1.msra.mxu0 0.0
    %1042 = vmatprep.subr.mxu0 0.0
    %1043 = vmatpush1.msra.mxu0 0.0
    %1044 = vmatprep.subr.mxu0 0.0
    %1045 = vmatpush1.msra.mxu0 0.0
    %1046 = vmatprep.subr.mxu0 0.0
    %1047 = vmatpush1.msra.mxu0 0.0
    %1048 = vmatprep.subr.mxu0 0.0
    %1049 = vmatpush1.msra.mxu0 0.0
    %1050 = vmatprep.subr.mxu0 0.0
    %1051 = vmatpush1.msra.mxu0 0.0
    %1052 = vmatprep.subr.mxu0 0.0
    %1053 = vmatpush1.msra.mxu0 0.0
    %1054 = vmatprep.subr.mxu0 0.0
    %1055 = vmatpush1.msra.mxu0 0.0
    %1056 = vmatprep.subr.mxu0 0.0
    %1057 = vmatpush1.msra.mxu0 0.0
    %1058 = vmatprep.subr.mxu0 0.0
    %1059 = vmatpush1.msra.mxu0 0.0
    %1060 = vmatprep.subr.mxu0 0.0
    %1061 = vmatpush1.msra.mxu0 0.0
    %1062 = vmatprep.subr.mxu0 0.0
    %1063 = vmatpush1.msra.mxu0 0.0
    %1064 = vmatprep.subr.mxu0 0.0
    %1065 = vmatpush1.msra.mxu0 0.0
    %1066 = vmatprep.subr.mxu0 0.0
    %1067 = vmatpush1.msra.mxu0 0.0
    %1068 = vmatprep.subr.mxu0 0.0
    %1069 = vmatpush1.msra.mxu0 0.0
    %1070 = vmatprep.subr.mxu0 0.0
    %1071 = vmatpush1.msra.mxu0 0.0
    %1072 = vmatprep.subr.mxu0 0.0
    %1073 = vmatpush1.msra.mxu0 0.0
    %1074 = vmatprep.subr.mxu0 0.0
    %1075 = vmatpush1.msra.mxu0 0.0
    %1076 = vmatprep.subr.mxu0 0.0
    %1077 = vmatpush1.msra.mxu0 0.0
    %1078 = vmatprep.subr.mxu0 0.0
    %1079 = vmatpush1.msra.mxu0 0.0
    %1080 = vmatprep.subr.mxu0 0.0
    %1081 = vmatpush1.msra.mxu0 0.0
    %1082 = vmatprep.subr.mxu0 0.0
    %1083 = vmatpush1.msra.mxu0 0.0
    %1084 = vmatprep.subr.mxu0 0.0
    %1085 = vmatpush1.msra.mxu0 0.0
    %1086 = vmatprep.subr.mxu0 0.0
    %1087 = vmatpush1.msra.mxu0 0.0
    %1088 = vmatprep.subr.mxu0 0.0
    %1089 = vmatpush1.msra.mxu0 0.0
    %1090 = vmatprep.subr.mxu0 0.0
    %1091 = vmatpush1.msra.mxu0 0.0
    %1092 = vmatprep.subr.mxu0 0.0
    %1093 = vmatpush1.msra.mxu0 0.0
    %1094 = vmatprep.subr.mxu0 0.0
    %1095 = vmatpush1.msra.mxu0 0.0
    %1096 = vmatprep.subr.mxu0 0.0
    %1097 = vmatpush1.msra.mxu0 0.0
    %1098 = vmatprep.mubr.f32.mxu0 0.0
    %1099 = vmatmul.mubr.f32.gmra.mrb[0].mxu0 %v1032
    %v1100 = vpop.f32.mrb[0].mxu0
    %v1101 = vadd.f32 0.0, %v1100
    %v1102 = vpop.f32.mrb[0].mxu0
    %1103 = vdwg.mxu0
    %1104 = vrot.lane.b32.xlu0 %v244, 64
    %v1105 = vpop.permute.xlu0 %1104
    %v1108 = vsel %vm257, %v941, 0
    %1110 = vmatprep.subr.mxu0 0.0
    %1111 = vmatpush1.msra.mxu0 %v1105
    %1112 = vmatprep.subr.mxu0 0.0
    %1113 = vmatpush1.msra.mxu0 0.0
    %1114 = vmatprep.subr.mxu0 0.0
    %1115 = vmatpush1.msra.mxu0 0.0
    %1116 = vmatprep.subr.mxu0 0.0
    %1117 = vmatpush1.msra.mxu0 0.0
    %1118 = vmatprep.subr.mxu0 0.0
    %1119 = vmatpush1.msra.mxu0 0.0
    %1120 = vmatprep.subr.mxu0 0.0
    %1121 = vmatpush1.msra.mxu0 0.0
    %1122 = vmatprep.subr.mxu0 0.0
    %1123 = vmatpush1.msra.mxu0 0.0
    %1124 = vmatprep.subr.mxu0 0.0
    %1125 = vmatpush1.msra.mxu0 0.0
    %1126 = vmatprep.subr.mxu0 0.0
    %1127 = vmatpush1.msra.mxu0 0.0
    %1128 = vmatprep.subr.mxu0 0.0
    %1129 = vmatpush1.msra.mxu0 0.0
    %1130 = vmatprep.subr.mxu0 0.0
    %1131 = vmatpush1.msra.mxu0 0.0
    %1132 = vmatprep.subr.mxu0 0.0
    %1133 = vmatpush1.msra.mxu0 0.0
    %1134 = vmatprep.subr.mxu0 0.0
    %1135 = vmatpush1.msra.mxu0 0.0
    %1136 = vmatprep.subr.mxu0 0.0
    %1137 = vmatpush1.msra.mxu0 0.0
    %1138 = vmatprep.subr.mxu0 0.0
    %1139 = vmatpush1.msra.mxu0 0.0
    %1140 = vmatprep.subr.mxu0 0.0
    %1141 = vmatpush1.msra.mxu0 0.0
    %1142 = vmatprep.subr.mxu0 0.0
    %1143 = vmatpush1.msra.mxu0 0.0
    %1144 = vmatprep.subr.mxu0 0.0
    %1145 = vmatpush1.msra.mxu0 0.0
    %1146 = vmatprep.subr.mxu0 0.0
    %1147 = vmatpush1.msra.mxu0 0.0
    %1148 = vmatprep.subr.mxu0 0.0
    %1149 = vmatpush1.msra.mxu0 0.0
    %1150 = vmatprep.subr.mxu0 0.0
    %1151 = vmatpush1.msra.mxu0 0.0
    %1152 = vmatprep.subr.mxu0 0.0
    %1153 = vmatpush1.msra.mxu0 0.0
    %1154 = vmatprep.subr.mxu0 0.0
    %1155 = vmatpush1.msra.mxu0 0.0
    %1156 = vmatprep.subr.mxu0 0.0
    %1157 = vmatpush1.msra.mxu0 0.0
    %1158 = vmatprep.subr.mxu0 0.0
    %1159 = vmatpush1.msra.mxu0 0.0
    %1160 = vmatprep.subr.mxu0 0.0
    %1161 = vmatpush1.msra.mxu0 0.0
    %1162 = vmatprep.subr.mxu0 0.0
    %1163 = vmatpush1.msra.mxu0 0.0
    %1164 = vmatprep.subr.mxu0 0.0
    %1165 = vmatpush1.msra.mxu0 0.0
    %1166 = vmatprep.subr.mxu0 0.0
    %1167 = vmatpush1.msra.mxu0 0.0
    %1168 = vmatprep.subr.mxu0 0.0
    %1169 = vmatpush1.msra.mxu0 0.0
    %1170 = vmatprep.subr.mxu0 0.0
    %1171 = vmatpush1.msra.mxu0 0.0
    %1172 = vmatprep.subr.mxu0 0.0
    %1173 = vmatpush1.msra.mxu0 0.0
    %1174 = vmatprep.mubr.f32.mxu0 0.0
    %1175 = vmatmul.mubr.f32.gmra.mrb[0].mxu0 %v1108
    %v1176 = vpop.f32.mrb[0].mxu0
    %v1177 = vadd.f32 0.0, %v1176
    %v1178 = vpop.f32.mrb[0].mxu0
    %1179 = vdwg.mxu0
    %1180 = vrot.lane.b32.xlu0 %v246, 64
    %v1181 = vpop.permute.xlu0 %1180
    %v1184 = vsel %vm257, %v943, 0
    %1186 = vmatprep.subr.mxu0 0.0
    %1187 = vmatpush1.msra.mxu0 %v1181
    %1188 = vmatprep.subr.mxu0 0.0
    %1189 = vmatpush1.msra.mxu0 0.0
    %1190 = vmatprep.subr.mxu0 0.0
    %1191 = vmatpush1.msra.mxu0 0.0
    %1192 = vmatprep.subr.mxu0 0.0
    %1193 = vmatpush1.msra.mxu0 0.0
    %1194 = vmatprep.subr.mxu0 0.0
    %1195 = vmatpush1.msra.mxu0 0.0
    %1196 = vmatprep.subr.mxu0 0.0
    %1197 = vmatpush1.msra.mxu0 0.0
    %1198 = vmatprep.subr.mxu0 0.0
    %1199 = vmatpush1.msra.mxu0 0.0
    %1200 = vmatprep.subr.mxu0 0.0
    %1201 = vmatpush1.msra.mxu0 0.0
    %1202 = vmatprep.subr.mxu0 0.0
    %1203 = vmatpush1.msra.mxu0 0.0
    %1204 = vmatprep.subr.mxu0 0.0
    %1205 = vmatpush1.msra.mxu0 0.0
    %1206 = vmatprep.subr.mxu0 0.0
    %1207 = vmatpush1.msra.mxu0 0.0
    %1208 = vmatprep.subr.mxu0 0.0
    %1209 = vmatpush1.msra.mxu0 0.0
    %1210 = vmatprep.subr.mxu0 0.0
    %1211 = vmatpush1.msra.mxu0 0.0
    %1212 = vmatprep.subr.mxu0 0.0
    %1213 = vmatpush1.msra.mxu0 0.0
    %1214 = vmatprep.subr.mxu0 0.0
    %1215 = vmatpush1.msra.mxu0 0.0
    %1216 = vmatprep.subr.mxu0 0.0
    %1217 = vmatpush1.msra.mxu0 0.0
    %1218 = vmatprep.subr.mxu0 0.0
    %1219 = vmatpush1.msra.mxu0 0.0
    %1220 = vmatprep.subr.mxu0 0.0
    %1221 = vmatpush1.msra.mxu0 0.0
    %1222 = vmatprep.subr.mxu0 0.0
    %1223 = vmatpush1.msra.mxu0 0.0
    %1224 = vmatprep.subr.mxu0 0.0
    %1225 = vmatpush1.msra.mxu0 0.0
    %1226 = vmatprep.subr.mxu0 0.0
    %1227 = vmatpush1.msra.mxu0 0.0
    %1228 = vmatprep.subr.mxu0 0.0
    %1229 = vmatpush1.msra.mxu0 0.0
    %1230 = vmatprep.subr.mxu0 0.0
    %1231 = vmatpush1.msra.mxu0 0.0
    %1232 = vmatprep.subr.mxu0 0.0
    %1233 = vmatpush1.msra.mxu0 0.0
    %1234 = vmatprep.subr.mxu0 0.0
    %1235 = vmatpush1.msra.mxu0 0.0
    %1236 = vmatprep.subr.mxu0 0.0
    %1237 = vmatpush1.msra.mxu0 0.0
    %1238 = vmatprep.subr.mxu0 0.0
    %1239 = vmatpush1.msra.mxu0 0.0
    %1240 = vmatprep.subr.mxu0 0.0
    %1241 = vmatpush1.msra.mxu0 0.0
    %1242 = vmatprep.subr.mxu0 0.0
    %1243 = vmatpush1.msra.mxu0 0.0
    %1244 = vmatprep.subr.mxu0 0.0
    %1245 = vmatpush1.msra.mxu0 0.0
    %1246 = vmatprep.subr.mxu0 0.0
    %1247 = vmatpush1.msra.mxu0 0.0
    %1248 = vmatprep.subr.mxu0 0.0
    %1249 = vmatpush1.msra.mxu0 0.0
    %1250 = vmatprep.mubr.f32.mxu0 0.0
    %1251 = vmatmul.mubr.f32.gmra.mrb[0].mxu0 %v1184
    %v1252 = vpop.f32.mrb[0].mxu0
    %v1253 = vadd.f32 0.0, %v1252
    %v1254 = vpop.f32.mrb[0].mxu0
    %1255 = vdwg.mxu0
    %1256 = vrot.lane.b32.xlu0 %v248, 64
    %v1257 = vpop.permute.xlu0 %1256
    %v1260 = vsel %vm257, %v945, 0
    %1262 = vmatprep.subr.mxu0 0.0
    %1263 = vmatpush1.msra.mxu0 %v1257
    %1264 = vmatprep.subr.mxu0 0.0
    %1265 = vmatpush1.msra.mxu0 0.0
    %1266 = vmatprep.subr.mxu0 0.0
    %1267 = vmatpush1.msra.mxu0 0.0
    %1268 = vmatprep.subr.mxu0 0.0
    %1269 = vmatpush1.msra.mxu0 0.0
    %1270 = vmatprep.subr.mxu0 0.0
    %1271 = vmatpush1.msra.mxu0 0.0
    %1272 = vmatprep.subr.mxu0 0.0
    %1273 = vmatpush1.msra.mxu0 0.0
    %1274 = vmatprep.subr.mxu0 0.0
    %1275 = vmatpush1.msra.mxu0 0.0
    %1276 = vmatprep.subr.mxu0 0.0
    %1277 = vmatpush1.msra.mxu0 0.0
    %1278 = vmatprep.subr.mxu0 0.0
    %1279 = vmatpush1.msra.mxu0 0.0
    %1280 = vmatprep.subr.mxu0 0.0
    %1281 = vmatpush1.msra.mxu0 0.0
    %1282 = vmatprep.subr.mxu0 0.0
    %1283 = vmatpush1.msra.mxu0 0.0
    %1284 = vmatprep.subr.mxu0 0.0
    %1285 = vmatpush1.msra.mxu0 0.0
    %1286 = vmatprep.subr.mxu0 0.0
    %1287 = vmatpush1.msra.mxu0 0.0
    %1288 = vmatprep.subr.mxu0 0.0
    %1289 = vmatpush1.msra.mxu0 0.0
    %1290 = vmatprep.subr.mxu0 0.0
    %1291 = vmatpush1.msra.mxu0 0.0
    %1292 = vmatprep.subr.mxu0 0.0
    %1293 = vmatpush1.msra.mxu0 0.0
    %1294 = vmatprep.subr.mxu0 0.0
    %1295 = vmatpush1.msra.mxu0 0.0
    %1296 = vmatprep.subr.mxu0 0.0
    %1297 = vmatpush1.msra.mxu0 0.0
    %1298 = vmatprep.subr.mxu0 0.0
    %1299 = vmatpush1.msra.mxu0 0.0
    %1300 = vmatprep.subr.mxu0 0.0
    %1301 = vmatpush1.msra.mxu0 0.0
    %1302 = vmatprep.subr.mxu0 0.0
    %1303 = vmatpush1.msra.mxu0 0.0
    %1304 = vmatprep.subr.mxu0 0.0
    %1305 = vmatpush1.msra.mxu0 0.0
    %1306 = vmatprep.subr.mxu0 0.0
    %1307 = vmatpush1.msra.mxu0 0.0
    %1308 = vmatprep.subr.mxu0 0.0
    %1309 = vmatpush1.msra.mxu0 0.0
    %1310 = vmatprep.subr.mxu0 0.0
    %1311 = vmatpush1.msra.mxu0 0.0
    %1312 = vmatprep.subr.mxu0 0.0
    %1313 = vmatpush1.msra.mxu0 0.0
    %1314 = vmatprep.subr.mxu0 0.0
    %1315 = vmatpush1.msra.mxu0 0.0
    %1316 = vmatprep.subr.mxu0 0.0
    %1317 = vmatpush1.msra.mxu0 0.0
    %1318 = vmatprep.subr.mxu0 0.0
    %1319 = vmatpush1.msra.mxu0 0.0
    %1320 = vmatprep.subr.mxu0 0.0
    %1321 = vmatpush1.msra.mxu0 0.0
    %1322 = vmatprep.subr.mxu0 0.0
    %1323 = vmatpush1.msra.mxu0 0.0
    %1324 = vmatprep.subr.mxu0 0.0
    %1325 = vmatpush1.msra.mxu0 0.0
    %1326 = vmatprep.mubr.f32.mxu0 0.0
    %1327 = vmatmul.mubr.f32.gmra.mrb[0].mxu0 %v1260
    %v1328 = vpop.f32.mrb[0].mxu0
    %v1329 = vadd.f32 0.0, %v1328
    %v1330 = vpop.f32.mrb[0].mxu0
    %1331 = vdwg.mxu0
    %1332 = vrot.lane.b32.xlu0 %v250, 64
    %v1333 = vpop.permute.xlu0 %1332
    %v1336 = vsel %vm257, %v947, 0
    %1338 = vmatprep.subr.mxu0 0.0
    %1339 = vmatpush1.msra.mxu0 %v1333
    %1340 = vmatprep.subr.mxu0 0.0
    %1341 = vmatpush1.msra.mxu0 0.0
    %1342 = vmatprep.subr.mxu0 0.0
    %1343 = vmatpush1.msra.mxu0 0.0
    %1344 = vmatprep.subr.mxu0 0.0
    %1345 = vmatpush1.msra.mxu0 0.0
    %1346 = vmatprep.subr.mxu0 0.0
    %1347 = vmatpush1.msra.mxu0 0.0
    %1348 = vmatprep.subr.mxu0 0.0
    %1349 = vmatpush1.msra.mxu0 0.0
    %1350 = vmatprep.subr.mxu0 0.0
    %1351 = vmatpush1.msra.mxu0 0.0
    %1352 = vmatprep.subr.mxu0 0.0
    %1353 = vmatpush1.msra.mxu0 0.0
    %1354 = vmatprep.subr.mxu0 0.0
    %1355 = vmatpush1.msra.mxu0 0.0
    %1356 = vmatprep.subr.mxu0 0.0
    %1357 = vmatpush1.msra.mxu0 0.0
    %1358 = vmatprep.subr.mxu0 0.0
    %1359 = vmatpush1.msra.mxu0 0.0
    %1360 = vmatprep.subr.mxu0 0.0
    %1361 = vmatpush1.msra.mxu0 0.0
    %1362 = vmatprep.subr.mxu0 0.0
    %1363 = vmatpush1.msra.mxu0 0.0
    %1364 = vmatprep.subr.mxu0 0.0
    %1365 = vmatpush1.msra.mxu0 0.0
    %1366 = vmatprep.subr.mxu0 0.0
    %1367 = vmatpush1.msra.mxu0 0.0
    %1368 = vmatprep.subr.mxu0 0.0
    %1369 = vmatpush1.msra.mxu0 0.0
    %1370 = vmatprep.subr.mxu0 0.0
    %1371 = vmatpush1.msra.mxu0 0.0
    %1372 = vmatprep.subr.mxu0 0.0
    %1373 = vmatpush1.msra.mxu0 0.0
    %1374 = vmatprep.subr.mxu0 0.0
    %1375 = vmatpush1.msra.mxu0 0.0
    %1376 = vmatprep.subr.mxu0 0.0
    %1377 = vmatpush1.msra.mxu0 0.0
    %1378 = vmatprep.subr.mxu0 0.0
    %1379 = vmatpush1.msra.mxu0 0.0
    %1380 = vmatprep.subr.mxu0 0.0
    %1381 = vmatpush1.msra.mxu0 0.0
    %1382 = vmatprep.subr.mxu0 0.0
    %1383 = vmatpush1.msra.mxu0 0.0
    %1384 = vmatprep.subr.mxu0 0.0
    %1385 = vmatpush1.msra.mxu0 0.0
    %1386 = vmatprep.subr.mxu0 0.0
    %1387 = vmatpush1.msra.mxu0 0.0
    %1388 = vmatprep.subr.mxu0 0.0
    %1389 = vmatpush1.msra.mxu0 0.0
    %1390 = vmatprep.subr.mxu0 0.0
    %1391 = vmatpush1.msra.mxu0 0.0
    %1392 = vmatprep.subr.mxu0 0.0
    %1393 = vmatpush1.msra.mxu0 0.0
    %1394 = vmatprep.subr.mxu0 0.0
    %1395 = vmatpush1.msra.mxu0 0.0
    %1396 = vmatprep.subr.mxu0 0.0
    %1397 = vmatpush1.msra.mxu0 0.0
    %1398 = vmatprep.subr.mxu0 0.0
    %1399 = vmatpush1.msra.mxu0 0.0
    %1400 = vmatprep.subr.mxu0 0.0
    %1401 = vmatpush1.msra.mxu0 0.0
    %1402 = vmatprep.mubr.f32.mxu0 0.0
    %1403 = vmatmul.mubr.f32.gmra.mrb[0].mxu0 %v1336
    %v1404 = vpop.f32.mrb[0].mxu0
    %v1405 = vadd.f32 0.0, %v1404
    %v1406 = vpop.f32.mrb[0].mxu0
    %1407 = vdwg.mxu0
    %1408 = vrot.lane.b32.xlu0 %v252, 64
    %v1409 = vpop.permute.xlu0 %1408
    %v1412 = vsel %vm257, %v949, 0
    %1414 = vmatprep.subr.mxu0 0.0
    %1415 = vmatpush1.msra.mxu0 %v1409
    %1416 = vmatprep.subr.mxu0 0.0
    %1417 = vmatpush1.msra.mxu0 0.0
    %1418 = vmatprep.subr.mxu0 0.0
    %1419 = vmatpush1.msra.mxu0 0.0
    %1420 = vmatprep.subr.mxu0 0.0
    %1421 = vmatpush1.msra.mxu0 0.0
    %1422 = vmatprep.subr.mxu0 0.0
    %1423 = vmatpush1.msra.mxu0 0.0
    %1424 = vmatprep.subr.mxu0 0.0
    %1425 = vmatpush1.msra.mxu0 0.0
    %1426 = vmatprep.subr.mxu0 0.0
    %1427 = vmatpush1.msra.mxu0 0.0
    %1428 = vmatprep.subr.mxu0 0.0
    %1429 = vmatpush1.msra.mxu0 0.0
    %1430 = vmatprep.subr.mxu0 0.0
    %1431 = vmatpush1.msra.mxu0 0.0
    %1432 = vmatprep.subr.mxu0 0.0
    %1433 = vmatpush1.msra.mxu0 0.0
    %1434 = vmatprep.subr.mxu0 0.0
    %1435 = vmatpush1.msra.mxu0 0.0
    %1436 = vmatprep.subr.mxu0 0.0
    %1437 = vmatpush1.msra.mxu0 0.0
    %1438 = vmatprep.subr.mxu0 0.0
    %1439 = vmatpush1.msra.mxu0 0.0
    %1440 = vmatprep.subr.mxu0 0.0
    %1441 = vmatpush1.msra.mxu0 0.0
    %1442 = vmatprep.subr.mxu0 0.0
    %1443 = vmatpush1.msra.mxu0 0.0
    %1444 = vmatprep.subr.mxu0 0.0
    %1445 = vmatpush1.msra.mxu0 0.0
    %1446 = vmatprep.subr.mxu0 0.0
    %1447 = vmatpush1.msra.mxu0 0.0
    %1448 = vmatprep.subr.mxu0 0.0
    %1449 = vmatpush1.msra.mxu0 0.0
    %1450 = vmatprep.subr.mxu0 0.0
    %1451 = vmatpush1.msra.mxu0 0.0
    %1452 = vmatprep.subr.mxu0 0.0
    %1453 = vmatpush1.msra.mxu0 0.0
    %1454 = vmatprep.subr.mxu0 0.0
    %1455 = vmatpush1.msra.mxu0 0.0
    %1456 = vmatprep.subr.mxu0 0.0
    %1457 = vmatpush1.msra.mxu0 0.0
    %1458 = vmatprep.subr.mxu0 0.0
    %1459 = vmatpush1.msra.mxu0 0.0
    %1460 = vmatprep.subr.mxu0 0.0
    %1461 = vmatpush1.msra.mxu0 0.0
    %1462 = vmatprep.subr.mxu0 0.0
    %1463 = vmatpush1.msra.mxu0 0.0
    %1464 = vmatprep.subr.mxu0 0.0
    %1465 = vmatpush1.msra.mxu0 0.0
    %1466 = vmatprep.subr.mxu0 0.0
    %1467 = vmatpush1.msra.mxu0 0.0
    %1468 = vmatprep.subr.mxu0 0.0
    %1469 = vmatpush1.msra.mxu0 0.0
    %1470 = vmatprep.subr.mxu0 0.0
    %1471 = vmatpush1.msra.mxu0 0.0
    %1472 = vmatprep.subr.mxu0 0.0
    %1473 = vmatpush1.msra.mxu0 0.0
    %1474 = vmatprep.subr.mxu0 0.0
    %1475 = vmatpush1.msra.mxu0 0.0
    %1476 = vmatprep.subr.mxu0 0.0
    %1477 = vmatpush1.msra.mxu0 0.0
    %1478 = vmatprep.mubr.f32.mxu0 0.0
    %1479 = vmatmul.mubr.f32.gmra.mrb[0].mxu0 %v1412
    %v1480 = vpop.f32.mrb[0].mxu0
    %v1481 = vadd.f32 0.0, %v1480
    %v1482 = vpop.f32.mrb[0].mxu0
    %1483 = vdwg.mxu0
    %1484 = vrot.lane.b32.xlu0 %v254, 64
    %v1485 = vpop.permute.xlu0 %1484
    %v1488 = vsel %vm257, %v951, 0
    %1490 = vmatprep.subr.mxu0 0.0
    %1491 = vmatpush1.msra.mxu0 %v1485
    %1492 = vmatprep.subr.mxu0 0.0
    %1493 = vmatpush1.msra.mxu0 0.0
    %1494 = vmatprep.subr.mxu0 0.0
    %1495 = vmatpush1.msra.mxu0 0.0
    %1496 = vmatprep.subr.mxu0 0.0
    %1497 = vmatpush1.msra.mxu0 0.0
    %1498 = vmatprep.subr.mxu0 0.0
    %1499 = vmatpush1.msra.mxu0 0.0
    %1500 = vmatprep.subr.mxu0 0.0
    %1501 = vmatpush1.msra.mxu0 0.0
    %1502 = vmatprep.subr.mxu0 0.0
    %1503 = vmatpush1.msra.mxu0 0.0
    %1504 = vmatprep.subr.mxu0 0.0
    %1505 = vmatpush1.msra.mxu0 0.0
    %1506 = vmatprep.subr.mxu0 0.0
    %1507 = vmatpush1.msra.mxu0 0.0
    %1508 = vmatprep.subr.mxu0 0.0
    %1509 = vmatpush1.msra.mxu0 0.0
    %1510 = vmatprep.subr.mxu0 0.0
    %1511 = vmatpush1.msra.mxu0 0.0
    %1512 = vmatprep.subr.mxu0 0.0
    %1513 = vmatpush1.msra.mxu0 0.0
    %1514 = vmatprep.subr.mxu0 0.0
    %1515 = vmatpush1.msra.mxu0 0.0
    %1516 = vmatprep.subr.mxu0 0.0
    %1517 = vmatpush1.msra.mxu0 0.0
    %1518 = vmatprep.subr.mxu0 0.0
    %1519 = vmatpush1.msra.mxu0 0.0
    %1520 = vmatprep.subr.mxu0 0.0
    %1521 = vmatpush1.msra.mxu0 0.0
    %1522 = vmatprep.subr.mxu0 0.0
    %1523 = vmatpush1.msra.mxu0 0.0
    %1524 = vmatprep.subr.mxu0 0.0
    %1525 = vmatpush1.msra.mxu0 0.0
    %1526 = vmatprep.subr.mxu0 0.0
    %1527 = vmatpush1.msra.mxu0 0.0
    %1528 = vmatprep.subr.mxu0 0.0
    %1529 = vmatpush1.msra.mxu0 0.0
    %1530 = vmatprep.subr.mxu0 0.0
    %1531 = vmatpush1.msra.mxu0 0.0
    %1532 = vmatprep.subr.mxu0 0.0
    %1533 = vmatpush1.msra.mxu0 0.0
    %1534 = vmatprep.subr.mxu0 0.0
    %1535 = vmatpush1.msra.mxu0 0.0
    %1536 = vmatprep.subr.mxu0 0.0
    %1537 = vmatpush1.msra.mxu0 0.0
    %1538 = vmatprep.subr.mxu0 0.0
    %1539 = vmatpush1.msra.mxu0 0.0
    %1540 = vmatprep.subr.mxu0 0.0
    %1541 = vmatpush1.msra.mxu0 0.0
    %1542 = vmatprep.subr.mxu0 0.0
    %1543 = vmatpush1.msra.mxu0 0.0
    %1544 = vmatprep.subr.mxu0 0.0
    %1545 = vmatpush1.msra.mxu0 0.0
    %1546 = vmatprep.subr.mxu0 0.0
    %1547 = vmatpush1.msra.mxu0 0.0
    %1548 = vmatprep.subr.mxu0 0.0
    %1549 = vmatpush1.msra.mxu0 0.0
    %1550 = vmatprep.subr.mxu0 0.0
    %1551 = vmatpush1.msra.mxu0 0.0
    %1552 = vmatprep.subr.mxu0 0.0
    %1553 = vmatpush1.msra.mxu0 0.0
    %1554 = vmatprep.mubr.f32.mxu0 0.0
    %1555 = vmatmul.mubr.f32.gmra.mrb[0].mxu0 %v1488
    %v1556 = vpop.f32.mrb[0].mxu0
    %v1557 = vadd.f32 0.0, %v1556
    %v1558 = vpop.f32.mrb[0].mxu0
    %1559 = vdwg.mxu0
    %1562 = vrot.lane.b32.xlu0 %v1177, 8
    %v1563 = vpop.permute.xlu0 %1562
    %1564 = vrot.lane.b32.xlu0 %v1253, 8
    %v1565 = vpop.permute.xlu0 %1564
    %1570 = vrot.lane.b32.xlu0 %v1329, 16
    %v1571 = vpop.permute.xlu0 %1570
    %1572 = vrot.lane.b32.xlu0 %v1405, 16
    %v1573 = vpop.permute.xlu0 %1572
    %1578 = vrot.lane.b32.xlu0 %v1481, 24
    %v1579 = vpop.permute.xlu0 %1578
    %1580 = vrot.lane.b32.xlu0 %v1557, 24
    %v1581 = vpop.permute.xlu0 %1580
    %v1584 = vsel %vm257, %v1025, %v1563
    %v1585 = vsel %vm257, %v1101, %v1565
    %vm1586 = vcmask 130048
    %v1587 = vsel %vm1586, %v1584, %v1571
    %v1588 = vsel %vm1586, %v1585, %v1573
    %vm1589 = vcmask 195584
    %v1590 = vsel %vm1589, %v1587, %v1579
    %v1591 = vsel %vm1589, %v1588, %v1581
    %v1592 = vld [vmem:[%s6] sm:$0xff]
    %v1593 = vld [vmem:[%s6 + $0x8] sm:$0xff]
    %v1594 = vld [vmem:[%s6 + $0x10] sm:$0xff]
    %v1595 = vld [vmem:[%s6 + $0x18] sm:$0xff]
    %v1596 = vld [vmem:[%s7] sm:$0x1]
    %v1598 = vlaneseq
    %v1599 = vshrl.u32 %v1598, 7
    %v1600 = vsub.s32 0, %v1599
    %v1601 = vrot.slane %v1596, %v1600
    %v1604 = vsel %vm97, %v1590, 0
    %v1607 = vsel %vm97, %v1591, 0
    %1609 = vmatprep.subr.mxu0 0.0
    %1610 = vmatpush1.msra.mxu0 %v1592
    %1611 = vmatprep.subr.mxu0 0.0
    %1612 = vmatpush1.msra.mxu0 %v1593
    %1613 = vmatprep.subr.mxu0 0.0
    %1614 = vmatpush1.msra.mxu0 %v1594
    %1615 = vmatprep.subr.mxu0 0.0
    %1616 = vmatpush1.msra.mxu0 %v1595
    %1617 = vmatprep.subr.mxu0 0.0
    %1618 = vmatpush1.msra.mxu0 0.0
    %1619 = vmatprep.subr.mxu0 0.0
    %1620 = vmatpush1.msra.mxu0 0.0
    %1621 = vmatprep.subr.mxu0 0.0
    %1622 = vmatpush1.msra.mxu0 0.0
    %1623 = vmatprep.subr.mxu0 0.0
    %1624 = vmatpush1.msra.mxu0 0.0
    %1625 = vmatprep.subr.mxu0 0.0
    %1626 = vmatpush1.msra.mxu0 0.0
    %1627 = vmatprep.subr.mxu0 0.0
    %1628 = vmatpush1.msra.mxu0 0.0
    %1629 = vmatprep.subr.mxu0 0.0
    %1630 = vmatpush1.msra.mxu0 0.0
    %1631 = vmatprep.subr.mxu0 0.0
    %1632 = vmatpush1.msra.mxu0 0.0
    %1633 = vmatprep.subr.mxu0 0.0
    %1634 = vmatpush1.msra.mxu0 0.0
    %1635 = vmatprep.subr.mxu0 0.0
    %1636 = vmatpush1.msra.mxu0 0.0
    %1637 = vmatprep.subr.mxu0 0.0
    %1638 = vmatpush1.msra.mxu0 0.0
    %1639 = vmatprep.subr.mxu0 0.0
    %1640 = vmatpush1.msra.mxu0 0.0
    %1641 = vmatprep.subr.mxu0 0.0
    %1642 = vmatpush1.msra.mxu0 0.0
    %1643 = vmatprep.subr.mxu0 0.0
    %1644 = vmatpush1.msra.mxu0 0.0
    %1645 = vmatprep.subr.mxu0 0.0
    %1646 = vmatpush1.msra.mxu0 0.0
    %1647 = vmatprep.subr.mxu0 0.0
    %1648 = vmatpush1.msra.mxu0 0.0
    %1649 = vmatprep.subr.mxu0 0.0
    %1650 = vmatpush1.msra.mxu0 0.0
    %1651 = vmatprep.subr.mxu0 0.0
    %1652 = vmatpush1.msra.mxu0 0.0
    %1653 = vmatprep.subr.mxu0 0.0
    %1654 = vmatpush1.msra.mxu0 0.0
    %1655 = vmatprep.subr.mxu0 0.0
    %1656 = vmatpush1.msra.mxu0 0.0
    %1657 = vmatprep.subr.mxu0 0.0
    %1658 = vmatpush1.msra.mxu0 0.0
    %1659 = vmatprep.subr.mxu0 0.0
    %1660 = vmatpush1.msra.mxu0 0.0
    %1661 = vmatprep.subr.mxu0 0.0
    %1662 = vmatpush1.msra.mxu0 0.0
    %1663 = vmatprep.subr.mxu0 0.0
    %1664 = vmatpush1.msra.mxu0 0.0
    %1665 = vmatprep.subr.mxu0 0.0
    %1666 = vmatpush1.msra.mxu0 0.0
    %1667 = vmatprep.subr.mxu0 0.0
    %1668 = vmatpush1.msra.mxu0 0.0
    %1669 = vmatprep.subr.mxu0 0.0
    %1670 = vmatpush1.msra.mxu0 0.0
    %1671 = vmatprep.subr.mxu0 0.0
    %1672 = vmatpush1.msra.mxu0 0.0
    %1673 = vmatprep.mubr.f32.mxu0 0.0
    %1674 = vmatmul.mubr.f32.gmra.mrb[0].mxu0 %v1604
    %v1675 = vpop.f32.mrb[0].mxu0
    %v1676 = vadd.f32 %v1601, %v1675
    %v1677 = vpop.f32.mrb[0].mxu0
    %1678 = vmatprep.mubr.f32.mxu0 0.0
    %1679 = vmatmul.mubr.f32.gmra.mrb[0].mxu0 %v1607
    %v1680 = vpop.f32.mrb[0].mxu0
    %v1681 = vadd.f32 %v1601, %v1680
    %v1682 = vpop.f32.mrb[0].mxu0
    %1683 = vdwg.mxu0
    %v1684 = vadd.f32 %v1676, %v139
    %v1685 = vadd.f32 %v1681, %v140
    %v1686 = vld [vmem:[%s8] sm:$0x1]
    %v1687 = vld [vmem:[%s9] sm:$0x1]
    %v1688 = vsel %vm97, %v1684, 0.0
    %1689 = vadd.xlane.f32.xlu0 %v1688
    %v1690 = vpop.xlane.xlu0 %1689
    %v1691 = vsel %vm97, %v1685, 0.0
    %1692 = vadd.xlane.f32.xlu0 %v1691
    %v1693 = vpop.xlane.xlu0 %1692
    %v1694 = vmul.f32 %v1690, %v104
    %v1695 = vmul.f32 %v1693, %v104
    %v1696 = vsub.f32 %v1684, %v1694
    %v1697 = vsub.f32 %v1685, %v1695
    %v1698 = vmul.f32 %v1696, %v1696
    %v1699 = vmul.f32 %v1697, %v1697
    %v1700 = vsel %vm97, %v1698, 0.0
    %1701 = vadd.xlane.f32.xlu0 %v1700
    %v1702 = vpop.xlane.xlu0 %1701
    %v1703 = vsel %vm97, %v1699, 0.0
    %1704 = vadd.xlane.f32.xlu0 %v1703
    %v1705 = vpop.xlane.xlu0 %1704
    %v1706 = vmul.f32 %v1702, %v104
    %v1707 = vmul.f32 %v1705, %v104
    %v1708 = vadd.f32 %v1706, 1e-12
    %v1709 = vadd.f32 %v1707, 1e-12
    %v1710 = vrsqrt.pop %v1708
    %v1711 = vrsqrt.pop %v1709
    %v1712 = vmul.f32 %v1696, %v1710
    %v1713 = vmul.f32 %v1697, %v1711
    %v1715 = vlaneseq
    %v1716 = vshrl.u32 %v1715, 7
    %v1717 = vsub.s32 0, %v1716
    %v1718 = vrot.slane %v1686, %v1717
    %v1720 = vmul.f32 %v1712, %v1718
    %v1721 = vmul.f32 %v1713, %v1718
    %v1723 = vlaneseq
    %v1724 = vshrl.u32 %v1723, 7
    %v1725 = vsub.s32 0, %v1724
    %v1726 = vrot.slane %v1687, %v1725
    %v1728 = vadd.f32 %v1720, %v1726
    %v1729 = vadd.f32 %v1721, %v1726
    %v1730 = vld [vmem:[#allocation7] sm:$0xff]
    %v1731 = vld [vmem:[#allocation7 + $0x8] sm:$0xff]
    %v1732 = vld [vmem:[#allocation7 + $0x10] sm:$0xff]
    %v1733 = vld [vmem:[#allocation7 + $0x18] sm:$0xff]
    %v1734 = vld [vmem:[%s11] sm:$0x1]
    %v1736 = vlaneseq
    %v1737 = vshrl.u32 %v1736, 7
    %v1738 = vsub.s32 0, %v1737
    %v1739 = vrot.slane %v1734, %v1738
    %v1742 = vsel %vm97, %v1728, 0
    %v1745 = vsel %vm97, %v1729, 0
    %1747 = vmatprep.subr.mxu0 0.0
    %1748 = vmatpush1.msra.mxu0 %v1730
    %1749 = vmatprep.subr.mxu0 0.0
    %1750 = vmatpush1.msra.mxu0 %v1731
    %1751 = vmatprep.subr.mxu0 0.0
    %1752 = vmatpush1.msra.mxu0 %v1732
    %1753 = vmatprep.subr.mxu0 0.0
    %1754 = vmatpush1.msra.mxu0 %v1733
    %1755 = vmatprep.subr.mxu0 0.0
    %1756 = vmatpush1.msra.mxu0 0.0
    %1757 = vmatprep.subr.mxu0 0.0
    %1758 = vmatpush1.msra.mxu0 0.0
    %1759 = vmatprep.subr.mxu0 0.0
    %1760 = vmatpush1.msra.mxu0 0.0
    %1761 = vmatprep.subr.mxu0 0.0
    %1762 = vmatpush1.msra.mxu0 0.0
    %1763 = vmatprep.subr.mxu0 0.0
    %1764 = vmatpush1.msra.mxu0 0.0
    %1765 = vmatprep.subr.mxu0 0.0
    %1766 = vmatpush1.msra.mxu0 0.0
    %1767 = vmatprep.subr.mxu0 0.0
    %1768 = vmatpush1.msra.mxu0 0.0
    %1769 = vmatprep.subr.mxu0 0.0
    %1770 = vmatpush1.msra.mxu0 0.0
    %1771 = vmatprep.subr.mxu0 0.0
    %1772 = vmatpush1.msra.mxu0 0.0
    %1773 = vmatprep.subr.mxu0 0.0
    %1774 = vmatpush1.msra.mxu0 0.0
    %1775 = vmatprep.subr.mxu0 0.0
    %1776 = vmatpush1.msra.mxu0 0.0
    %1777 = vmatprep.subr.mxu0 0.0
    %1778 = vmatpush1.msra.mxu0 0.0
    %1779 = vmatprep.subr.mxu0 0.0
    %1780 = vmatpush1.msra.mxu0 0.0
    %1781 = vmatprep.subr.mxu0 0.0
    %1782 = vmatpush1.msra.mxu0 0.0
    %1783 = vmatprep.subr.mxu0 0.0
    %1784 = vmatpush1.msra.mxu0 0.0
    %1785 = vmatprep.subr.mxu0 0.0
    %1786 = vmatpush1.msra.mxu0 0.0
    %1787 = vmatprep.subr.mxu0 0.0
    %1788 = vmatpush1.msra.mxu0 0.0
    %1789 = vmatprep.subr.mxu0 0.0
    %1790 = vmatpush1.msra.mxu0 0.0
    %1791 = vmatprep.subr.mxu0 0.0
    %1792 = vmatpush1.msra.mxu0 0.0
    %1793 = vmatprep.subr.mxu0 0.0
    %1794 = vmatpush1.msra.mxu0 0.0
    %1795 = vmatprep.subr.mxu0 0.0
    %1796 = vmatpush1.msra.mxu0 0.0
    %1797 = vmatprep.subr.mxu0 0.0
    %1798 = vmatpush1.msra.mxu0 0.0
    %1799 = vmatprep.subr.mxu0 0.0
    %1800 = vmatpush1.msra.mxu0 0.0
    %1801 = vmatprep.subr.mxu0 0.0
    %1802 = vmatpush1.msra.mxu0 0.0
    %1803 = vmatprep.subr.mxu0 0.0
    %1804 = vmatpush1.msra.mxu0 0.0
    %1805 = vmatprep.subr.mxu0 0.0
    %1806 = vmatpush1.msra.mxu0 0.0
    %1807 = vmatprep.subr.mxu0 0.0
    %1808 = vmatpush1.msra.mxu0 0.0
    %1809 = vmatprep.subr.mxu0 0.0
    %1810 = vmatpush1.msra.mxu0 0.0
    %1811 = vmatprep.mubr.f32.mxu0 0.0
    %1812 = vmatmul.mubr.f32.gmra.mrb[0].mxu0 %v1742
    %v1813 = vpop.f32.mrb[0].mxu0
    %v1814 = vadd.f32 %v1739, %v1813
    %v1815 = vpop.f32.mrb[0].mxu0
    %1816 = vmatprep.mubr.f32.mxu0 0.0
    %1817 = vmatmul.mubr.f32.gmra.mrb[0].mxu0 %v1745
    %v1818 = vpop.f32.mrb[0].mxu0
    %v1819 = vadd.f32 %v1739, %v1818
    %v1820 = vpop.f32.mrb[0].mxu0
    %1821 = vdwg.mxu0
    %v1822 = vmul.f32 %v1814, 0.5
    %v1823 = vmul.f32 %v1819, 0.5
    %v1824 = vmul.f32 %v1814, 0.044715
    %v1825 = vmul.f32 %v1819, 0.044715
    %v1826 = vmul.f32 %v1824, %v1814
    %v1827 = vmul.f32 %v1825, %v1819
    %v1828 = vmul.f32 %v1826, %v1814
    %v1829 = vmul.f32 %v1827, %v1819
    %v1830 = vadd.f32 %v1814, %v1828
    %v1831 = vadd.f32 %v1819, %v1829
    %v1832 = vmul.f32 %v1830, 0.7978846
    %v1833 = vmul.f32 %v1831, 0.7978846
    %v1834 = vtanh.pop %v1832
    %v1835 = vtanh.pop %v1833
    %v1836 = vadd.f32 %v1834, 1.0
    %v1837 = vadd.f32 %v1835, 1.0
    %v1838 = vmul.f32 %v1822, %v1836
    %v1839 = vmul.f32 %v1823, %v1837
    %v1840 = vld [vmem:[%s12] sm:$0xff]
    %v1841 = vld [vmem:[%s12 + $0x8] sm:$0xff]
    %v1842 = vld [vmem:[%s12 + $0x10] sm:$0xff]
    %v1843 = vld [vmem:[%s12 + $0x18] sm:$0xff]
    %v1844 = vld [vmem:[%s12 + $0x20] sm:$0xff]
    %v1845 = vld [vmem:[%s12 + $0x28] sm:$0xff]
    %v1846 = vld [vmem:[%s12 + $0x30] sm:$0xff]
    %v1847 = vld [vmem:[%s12 + $0x38] sm:$0xff]
    %v1848 = vld [vmem:[%s13] sm:$0x1]
    %v1850 = vlaneseq
    %v1851 = vshrl.u32 %v1850, 7
    %v1852 = vsub.s32 0, %v1851
    %v1853 = vrot.slane %v1848, %v1852
    %vm1855 = vcmask 523264
    %v1857 = vsel %vm1855, %v1838, 0
    %v1860 = vsel %vm1855, %v1839, 0
    %1862 = vmatprep.subr.mxu0 0.0
    %1863 = vmatpush1.msra.mxu0 %v1840
    %1864 = vmatprep.subr.mxu0 0.0
    %1865 = vmatpush1.msra.mxu0 %v1841
    %1866 = vmatprep.subr.mxu0 0.0
    %1867 = vmatpush1.msra.mxu0 %v1842
    %1868 = vmatprep.subr.mxu0 0.0
    %1869 = vmatpush1.msra.mxu0 %v1843
    %1870 = vmatprep.subr.mxu0 0.0
    %1871 = vmatpush1.msra.mxu0 %v1844
    %1872 = vmatprep.subr.mxu0 0.0
    %1873 = vmatpush1.msra.mxu0 %v1845
    %1874 = vmatprep.subr.mxu0 0.0
    %1875 = vmatpush1.msra.mxu0 %v1846
    %1876 = vmatprep.subr.mxu0 0.0
    %1877 = vmatpush1.msra.mxu0 %v1847
    %1878 = vmatprep.subr.mxu0 0.0
    %1879 = vmatpush1.msra.mxu0 0.0
    %1880 = vmatprep.subr.mxu0 0.0
    %1881 = vmatpush1.msra.mxu0 0.0
    %1882 = vmatprep.subr.mxu0 0.0
    %1883 = vmatpush1.msra.mxu0 0.0
    %1884 = vmatprep.subr.mxu0 0.0
    %1885 = vmatpush1.msra.mxu0 0.0
    %1886 = vmatprep.subr.mxu0 0.0
    %1887 = vmatpush1.msra.mxu0 0.0
    %1888 = vmatprep.subr.mxu0 0.0
    %1889 = vmatpush1.msra.mxu0 0.0
    %1890 = vmatprep.subr.mxu0 0.0
    %1891 = vmatpush1.msra.mxu0 0.0
    %1892 = vmatprep.subr.mxu0 0.0
    %1893 = vmatpush1.msra.mxu0 0.0
    %1894 = vmatprep.subr.mxu0 0.0
    %1895 = vmatpush1.msra.mxu0 0.0
    %1896 = vmatprep.subr.mxu0 0.0
    %1897 = vmatpush1.msra.mxu0 0.0
    %1898 = vmatprep.subr.mxu0 0.0
    %1899 = vmatpush1.msra.mxu0 0.0
    %1900 = vmatprep.subr.mxu0 0.0
    %1901 = vmatpush1.msra.mxu0 0.0
    %1902 = vmatprep.subr.mxu0 0.0
    %1903 = vmatpush1.msra.mxu0 0.0
    %1904 = vmatprep.subr.mxu0 0.0
    %1905 = vmatpush1.msra.mxu0 0.0
    %1906 = vmatprep.subr.mxu0 0.0
    %1907 = vmatpush1.msra.mxu0 0.0
    %1908 = vmatprep.subr.mxu0 0.0
    %1909 = vmatpush1.msra.mxu0 0.0
    %1910 = vmatprep.subr.mxu0 0.0
    %1911 = vmatpush1.msra.mxu0 0.0
    %1912 = vmatprep.subr.mxu0 0.0
    %1913 = vmatpush1.msra.mxu0 0.0
    %1914 = vmatprep.subr.mxu0 0.0
    %1915 = vmatpush1.msra.mxu0 0.0
    %1916 = vmatprep.subr.mxu0 0.0
    %1917 = vmatpush1.msra.mxu0 0.0
    %1918 = vmatprep.subr.mxu0 0.0
    %1919 = vmatpush1.msra.mxu0 0.0
    %1920 = vmatprep.subr.mxu0 0.0
    %1921 = vmatpush1.msra.mxu0 0.0
    %1922 = vmatprep.subr.mxu0 0.0
    %1923 = vmatpush1.msra.mxu0 0.0
    %1924 = vmatprep.subr.mxu0 0.0
    %1925 = vmatpush1.msra.mxu0 0.0
    %1926 = vmatprep.mubr.f32.mxu0 0.0
    %1927 = vmatmul.mubr.f32.gmra.mrb[0].mxu0 %v1857
    %v1928 = vpop.f32.mrb[0].mxu0
    %v1929 = vadd.f32 %v1853, %v1928
    %v1930 = vpop.f32.mrb[0].mxu0
    %1931 = vmatprep.mubr.f32.mxu0 0.0
    %1932 = vmatmul.mubr.f32.gmra.mrb[0].mxu0 %v1860
    %v1933 = vpop.f32.mrb[0].mxu0
    %v1934 = vadd.f32 %v1853, %v1933
    %v1935 = vpop.f32.mrb[0].mxu0
    %1936 = vdwg.mxu0
    %v1937 = vadd.f32 %v1929, %v1728
    %v1938 = vadd.f32 %v1934, %v1729
    %v1939 = vld [vmem:[%s14] sm:$0x1]
    %v1940 = vld [vmem:[%s15] sm:$0x1]
    %v1941 = vsel %vm97, %v1937, 0.0
    %1942 = vadd.xlane.f32.xlu0 %v1941
    %v1943 = vpop.xlane.xlu0 %1942
    %v1944 = vsel %vm97, %v1938, 0.0
    %1945 = vadd.xlane.f32.xlu0 %v1944
    %v1946 = vpop.xlane.xlu0 %1945
    %v1947 = vmul.f32 %v1943, %v104
    %v1948 = vmul.f32 %v1946, %v104
    %v1949 = vsub.f32 %v1937, %v1947
    %v1950 = vsub.f32 %v1938, %v1948
    %v1951 = vmul.f32 %v1949, %v1949
    %v1952 = vmul.f32 %v1950, %v1950
    %v1953 = vsel %vm97, %v1951, 0.0
    %1954 = vadd.xlane.f32.xlu0 %v1953
    %v1955 = vpop.xlane.xlu0 %1954
    %v1956 = vsel %vm97, %v1952, 0.0
    %1957 = vadd.xlane.f32.xlu0 %v1956
    %v1958 = vpop.xlane.xlu0 %1957
    %v1959 = vmul.f32 %v1955, %v104
    %v1960 = vmul.f32 %v1958, %v104
    %v1961 = vadd.f32 %v1959, 1e-12
    %v1962 = vadd.f32 %v1960, 1e-12
    %v1963 = vrsqrt.pop %v1961
    %v1964 = vrsqrt.pop %v1962
    %v1965 = vmul.f32 %v1949, %v1963
    %v1966 = vmul.f32 %v1950, %v1964
    %v1968 = vlaneseq
    %v1969 = vshrl.u32 %v1968, 7
    %v1970 = vsub.s32 0, %v1969
    %v1971 = vrot.slane %v1939, %v1970
    %v1973 = vmul.f32 %v1965, %v1971
    %v1974 = vmul.f32 %v1966, %v1971
    %v1976 = vlaneseq
    %v1977 = vshrl.u32 %v1976, 7
    %v1978 = vsub.s32 0, %v1977
    %v1979 = vrot.slane %v1940, %v1978
    %v1981 = vadd.f32 %v1973, %v1979
    %v1982 = vadd.f32 %v1974, %v1979
    %s1983 = scalar_lea.vmem %s4, 32
    %v1984 = vld [vmem:[%s1983] sm:$0xff]
    %v1985 = vld [vmem:[%s1983 + $0x8] sm:$0xff]
    %v1986 = vld [vmem:[%s1983 + $0x10] sm:$0xff]
    %v1987 = vld [vmem:[%s1983 + $0x18] sm:$0xff]
    %s1988 = scalar_lea.vmem %s5, 1
    %v1989 = vld [vmem:[%s1988] sm:$0x1]
    %v1991 = vlaneseq
    %v1992 = vshrl.u32 %v1991, 7
    %v1993 = vsub.s32 0, %v1992
    %v1994 = vrot.slane %v1989, %v1993
    %v1997 = vsel %vm97, %v1981, 0
    %v2000 = vsel %vm97, %v1982, 0
    %2002 = vmatprep.subr.mxu0 0.0
    %2003 = vmatpush1.msra.mxu0 %v1984
    %2004 = vmatprep.subr.mxu0 0.0
    %2005 = vmatpush1.msra.mxu0 %v1985
    %2006 = vmatprep.subr.mxu0 0.0
    %2007 = vmatpush1.msra.mxu0 %v1986
    %2008 = vmatprep.subr.mxu0 0.0
    %2009 = vmatpush1.msra.mxu0 %v1987
    %2010 = vmatprep.subr.mxu0 0.0
    %2011 = vmatpush1.msra.mxu0 0.0
    %2012 = vmatprep.subr.mxu0 0.0
    %2013 = vmatpush1.msra.mxu0 0.0
    %2014 = vmatprep.subr.mxu0 0.0
    %2015 = vmatpush1.msra.mxu0 0.0
    %2016 = vmatprep.subr.mxu0 0.0
    %2017 = vmatpush1.msra.mxu0 0.0
    %2018 = vmatprep.subr.mxu0 0.0
    %2019 = vmatpush1.msra.mxu0 0.0
    %2020 = vmatprep.subr.mxu0 0.0
    %2021 = vmatpush1.msra.mxu0 0.0
    %2022 = vmatprep.subr.mxu0 0.0
    %2023 = vmatpush1.msra.mxu0 0.0
    %2024 = vmatprep.subr.mxu0 0.0
    %2025 = vmatpush1.msra.mxu0 0.0
    %2026 = vmatprep.subr.mxu0 0.0
    %2027 = vmatpush1.msra.mxu0 0.0
    %2028 = vmatprep.subr.mxu0 0.0
    %2029 = vmatpush1.msra.mxu0 0.0
    %2030 = vmatprep.subr.mxu0 0.0
    %2031 = vmatpush1.msra.mxu0 0.0
    %2032 = vmatprep.subr.mxu0 0.0
    %2033 = vmatpush1.msra.mxu0 0.0
    %2034 = vmatprep.subr.mxu0 0.0
    %2035 = vmatpush1.msra.mxu0 0.0
    %2036 = vmatprep.subr.mxu0 0.0
    %2037 = vmatpush1.msra.mxu0 0.0
    %2038 = vmatprep.subr.mxu0 0.0
    %2039 = vmatpush1.msra.mxu0 0.0
    %2040 = vmatprep.subr.mxu0 0.0
    %2041 = vmatpush1.msra.mxu0 0.0
    %2042 = vmatprep.subr.mxu0 0.0
    %2043 = vmatpush1.msra.mxu0 0.0
    %2044 = vmatprep.subr.mxu0 0.0
    %2045 = vmatpush1.msra.mxu0 0.0
    %2046 = vmatprep.subr.mxu0 0.0
    %2047 = vmatpush1.msra.mxu0 0.0
    %2048 = vmatprep.subr.mxu0 0.0
    %2049 = vmatpush1.msra.mxu0 0.0
    %2050 = vmatprep.subr.mxu0 0.0
    %2051 = vmatpush1.msra.mxu0 0.0
    %2052 = vmatprep.subr.mxu0 0.0
    %2053 = vmatpush1.msra.mxu0 0.0
    %2054 = vmatprep.subr.mxu0 0.0
    %2055 = vmatpush1.msra.mxu0 0.0
    %2056 = vmatprep.subr.mxu0 0.0
    %2057 = vmatpush1.msra.mxu0 0.0
    %2058 = vmatprep.subr.mxu0 0.0
    %2059 = vmatpush1.msra.mxu0 0.0
    %2060 = vmatprep.subr.mxu0 0.0
    %2061 = vmatpush1.msra.mxu0 0.0
    %2062 = vmatprep.subr.mxu0 0.0
    %2063 = vmatpush1.msra.mxu0 0.0
    %2064 = vmatprep.subr.mxu0 0.0
    %2065 = vmatpush1.msra.mxu0 0.0
    %2066 = vmatprep.mubr.f32.mxu0 0.0
    %2067 = vmatmul.mubr.f32.gmra.mrb[0].mxu0 %v1997
    %v2068 = vpop.f32.mrb[0].mxu0
    %v2069 = vadd.f32 %v1994, %v2068
    %v2070 = vpop.f32.mrb[0].mxu0
    %2071 = vmatprep.mubr.f32.mxu0 0.0
    %2072 = vmatmul.mubr.f32.gmra.mrb[0].mxu0 %v2000
    %v2073 = vpop.f32.mrb[0].mxu0
    %v2074 = vadd.f32 %v1994, %v2073
    %v2075 = vpop.f32.mrb[0].mxu0
    %2076 = vdwg.mxu0
    %2079 = vrot.lane.b32.xlu0 %v2069, 120
    %v2080 = vpop.permute.xlu0 %2079
    %2081 = vrot.lane.b32.xlu0 %v2074, 120
    %v2082 = vpop.permute.xlu0 %2081
    %2083 = vrot.lane.b32.xlu0 %v2069, 112
    %v2084 = vpop.permute.xlu0 %2083
    %2085 = vrot.lane.b32.xlu0 %v2074, 112
    %v2086 = vpop.permute.xlu0 %2085
    %2087 = vrot.lane.b32.xlu0 %v2069, 104
    %v2088 = vpop.permute.xlu0 %2087
    %2089 = vrot.lane.b32.xlu0 %v2074, 104
    %v2090 = vpop.permute.xlu0 %2089
    %2091 = vrot.lane.b32.xlu0 %v2069, 96
    %v2092 = vpop.permute.xlu0 %2091
    %v2093 = vsel %vm257, %v2069, 0
    %v2095 = vsel %vm257, %v2092, 0
    %2097 = vmatprep.subr.mxu0 0.0
    %2098 = vmatpush1.xpose.msra.mxu0 %v2095
    %2099 = vmatprep.subr.mxu0 0.0
    %2100 = vmatpush1.xpose.msra.mxu0 0.0
    %2101 = vmatprep.subr.mxu0 0.0
    %2102 = vmatpush1.xpose.msra.mxu0 0.0
    %2103 = vmatprep.subr.mxu0 0.0
    %2104 = vmatpush1.xpose.msra.mxu0 0.0
    %2105 = vmatprep.subr.mxu0 0.0
    %2106 = vmatpush1.xpose.msra.mxu0 0.0
    %2107 = vmatprep.subr.mxu0 0.0
    %2108 = vmatpush1.xpose.msra.mxu0 0.0
    %2109 = vmatprep.subr.mxu0 0.0
    %2110 = vmatpush1.xpose.msra.mxu0 0.0
    %2111 = vmatprep.subr.mxu0 0.0
    %2112 = vmatpush1.xpose.msra.mxu0 0.0
    %2113 = vmatprep.subr.mxu0 0.0
    %2114 = vmatpush1.xpose.msra.mxu0 0.0
    %2115 = vmatprep.subr.mxu0 0.0
    %2116 = vmatpush1.xpose.msra.mxu0 0.0
    %2117 = vmatprep.subr.mxu0 0.0
    %2118 = vmatpush1.xpose.msra.mxu0 0.0
    %2119 = vmatprep.subr.mxu0 0.0
    %2120 = vmatpush1.xpose.msra.mxu0 0.0
    %2121 = vmatprep.subr.mxu0 0.0
    %2122 = vmatpush1.xpose.msra.mxu0 0.0
    %2123 = vmatprep.subr.mxu0 0.0
    %2124 = vmatpush1.xpose.msra.mxu0 0.0
    %2125 = vmatprep.subr.mxu0 0.0
    %2126 = vmatpush1.xpose.msra.mxu0 0.0
    %2127 = vmatprep.subr.mxu0 0.0
    %2128 = vmatpush1.xpose.msra.mxu0 0.0
    %2129 = vmatprep.subr.mxu0 0.0
    %2130 = vmatpush1.xpose.msra.mxu0 0.0
    %2131 = vmatprep.subr.mxu0 0.0
    %2132 = vmatpush1.xpose.msra.mxu0 0.0
    %2133 = vmatprep.subr.mxu0 0.0
    %2134 = vmatpush1.xpose.msra.mxu0 0.0
    %2135 = vmatprep.subr.mxu0 0.0
    %2136 = vmatpush1.xpose.msra.mxu0 0.0
    %2137 = vmatprep.subr.mxu0 0.0
    %2138 = vmatpush1.xpose.msra.mxu0 0.0
    %2139 = vmatprep.subr.mxu0 0.0
    %2140 = vmatpush1.xpose.msra.mxu0 0.0
    %2141 = vmatprep.subr.mxu0 0.0
    %2142 = vmatpush1.xpose.msra.mxu0 0.0
    %2143 = vmatprep.subr.mxu0 0.0
    %2144 = vmatpush1.xpose.msra.mxu0 0.0
    %2145 = vmatprep.subr.mxu0 0.0
    %2146 = vmatpush1.xpose.msra.mxu0 0.0
    %2147 = vmatprep.subr.mxu0 0.0
    %2148 = vmatpush1.xpose.msra.mxu0 0.0
    %2149 = vmatprep.subr.mxu0 0.0
    %2150 = vmatpush1.xpose.msra.mxu0 0.0
    %2151 = vmatprep.subr.mxu0 0.0
    %2152 = vmatpush1.xpose.msra.mxu0 0.0
    %2153 = vmatprep.subr.mxu0 0.0
    %2154 = vmatpush1.xpose.msra.mxu0 0.0
    %2155 = vmatprep.subr.mxu0 0.0
    %2156 = vmatpush1.xpose.msra.mxu0 0.0
    %2157 = vmatprep.subr.mxu0 0.0
    %2158 = vmatpush1.xpose.msra.mxu0 0.0
    %2159 = vmatprep.subr.mxu0 0.0
    %2160 = vmatpush1.xpose.msra.mxu0 0.0
    %2161 = vmatprep.mubr.f32.mxu0 0.0
    %2162 = vmatmul.mubr.f32.gmra.mrb[0].mxu0 %v2093
    %v2163 = vpop.f32.mrb[0].mxu0
    %v2164 = vadd.f32 %v141, %v2163
    %v2165 = vpop.f32.mrb[0].mxu0
    %2166 = vdwg.mxu0
    %2167 = vrot.lane.b32.xlu0 %v2074, 96
    %v2168 = vpop.permute.xlu0 %2167
    %v2169 = vsel %vm257, %v2074, 0
    %v2171 = vsel %vm257, %v2168, 0
    %2173 = vmatprep.subr.mxu0 0.0
    %2174 = vmatpush1.xpose.msra.mxu0 %v2171
    %2175 = vmatprep.subr.mxu0 0.0
    %2176 = vmatpush1.xpose.msra.mxu0 0.0
    %2177 = vmatprep.subr.mxu0 0.0
    %2178 = vmatpush1.xpose.msra.mxu0 0.0
    %2179 = vmatprep.subr.mxu0 0.0
    %2180 = vmatpush1.xpose.msra.mxu0 0.0
    %2181 = vmatprep.subr.mxu0 0.0
    %2182 = vmatpush1.xpose.msra.mxu0 0.0
    %2183 = vmatprep.subr.mxu0 0.0
    %2184 = vmatpush1.xpose.msra.mxu0 0.0
    %2185 = vmatprep.subr.mxu0 0.0
    %2186 = vmatpush1.xpose.msra.mxu0 0.0
    %2187 = vmatprep.subr.mxu0 0.0
    %2188 = vmatpush1.xpose.msra.mxu0 0.0
    %2189 = vmatprep.subr.mxu0 0.0
    %2190 = vmatpush1.xpose.msra.mxu0 0.0
    %2191 = vmatprep.subr.mxu0 0.0
    %2192 = vmatpush1.xpose.msra.mxu0 0.0
    %2193 = vmatprep.subr.mxu0 0.0
    %2194 = vmatpush1.xpose.msra.mxu0 0.0
    %2195 = vmatprep.subr.mxu0 0.0
    %2196 = vmatpush1.xpose.msra.mxu0 0.0
    %2197 = vmatprep.subr.mxu0 0.0
    %2198 = vmatpush1.xpose.msra.mxu0 0.0
    %2199 = vmatprep.subr.mxu0 0.0
    %2200 = vmatpush1.xpose.msra.mxu0 0.0
    %2201 = vmatprep.subr.mxu0 0.0
    %2202 = vmatpush1.xpose.msra.mxu0 0.0
    %2203 = vmatprep.subr.mxu0 0.0
    %2204 = vmatpush1.xpose.msra.mxu0 0.0
    %2205 = vmatprep.subr.mxu0 0.0
    %2206 = vmatpush1.xpose.msra.mxu0 0.0
    %2207 = vmatprep.subr.mxu0 0.0
    %2208 = vmatpush1.xpose.msra.mxu0 0.0
    %2209 = vmatprep.subr.mxu0 0.0
    %2210 = vmatpush1.xpose.msra.mxu0 0.0
    %2211 = vmatprep.subr.mxu0 0.0
    %2212 = vmatpush1.xpose.msra.mxu0 0.0
    %2213 = vmatprep.subr.mxu0 0.0
    %2214 = vmatpush1.xpose.msra.mxu0 0.0
    %2215 = vmatprep.subr.mxu0 0.0
    %2216 = vmatpush1.xpose.msra.mxu0 0.0
    %2217 = vmatprep.subr.mxu0 0.0
    %2218 = vmatpush1.xpose.msra.mxu0 0.0
    %2219 = vmatprep.subr.mxu0 0.0
    %2220 = vmatpush1.xpose.msra.mxu0 0.0
    %2221 = vmatprep.subr.mxu0 0.0
    %2222 = vmatpush1.xpose.msra.mxu0 0.0
    %2223 = vmatprep.subr.mxu0 0.0
    %2224 = vmatpush1.xpose.msra.mxu0 0.0
    %2225 = vmatprep.subr.mxu0 0.0
    %2226 = vmatpush1.xpose.msra.mxu0 0.0
    %2227 = vmatprep.subr.mxu0 0.0
    %2228 = vmatpush1.xpose.msra.mxu0 0.0
    %2229 = vmatprep.subr.mxu0 0.0
    %2230 = vmatpush1.xpose.msra.mxu0 0.0
    %2231 = vmatprep.subr.mxu0 0.0
    %2232 = vmatpush1.xpose.msra.mxu0 0.0
    %2233 = vmatprep.subr.mxu0 0.0
    %2234 = vmatpush1.xpose.msra.mxu0 0.0
    %2235 = vmatprep.subr.mxu0 0.0
    %2236 = vmatpush1.xpose.msra.mxu0 0.0
    %2237 = vmatprep.mubr.f32.mxu0 0.0
    %2238 = vmatmul.mubr.f32.gmra.mrb[0].mxu0 %v2169
    %v2239 = vpop.f32.mrb[0].mxu0
    %v2240 = vadd.f32 %v142, %v2239
    %v2241 = vpop.f32.mrb[0].mxu0
    %2242 = vdwg.mxu0
    %2243 = vrot.lane.b32.xlu0 %v2080, 96
    %v2244 = vpop.permute.xlu0 %2243
    %v2245 = vsel %vm257, %v2080, 0
    %v2247 = vsel %vm257, %v2244, 0
    %2249 = vmatprep.subr.mxu0 0.0
    %2250 = vmatpush1.xpose.msra.mxu0 %v2247
    %2251 = vmatprep.subr.mxu0 0.0
    %2252 = vmatpush1.xpose.msra.mxu0 0.0
    %2253 = vmatprep.subr.mxu0 0.0
    %2254 = vmatpush1.xpose.msra.mxu0 0.0
    %2255 = vmatprep.subr.mxu0 0.0
    %2256 = vmatpush1.xpose.msra.mxu0 0.0
    %2257 = vmatprep.subr.mxu0 0.0
    %2258 = vmatpush1.xpose.msra.mxu0 0.0
    %2259 = vmatprep.subr.mxu0 0.0
    %2260 = vmatpush1.xpose.msra.mxu0 0.0
    %2261 = vmatprep.subr.mxu0 0.0
    %2262 = vmatpush1.xpose.msra.mxu0 0.0
    %2263 = vmatprep.subr.mxu0 0.0
    %2264 = vmatpush1.xpose.msra.mxu0 0.0
    %2265 = vmatprep.subr.mxu0 0.0
    %2266 = vmatpush1.xpose.msra.mxu0 0.0
    %2267 = vmatprep.subr.mxu0 0.0
    %2268 = vmatpush1.xpose.msra.mxu0 0.0
    %2269 = vmatprep.subr.mxu0 0.0
    %2270 = vmatpush1.xpose.msra.mxu0 0.0
    %2271 = vmatprep.subr.mxu0 0.0
    %2272 = vmatpush1.xpose.msra.mxu0 0.0
    %2273 = vmatprep.subr.mxu0 0.0
    %2274 = vmatpush1.xpose.msra.mxu0 0.0
    %2275 = vmatprep.subr.mxu0 0.0
    %2276 = vmatpush1.xpose.msra.mxu0 0.0
    %2277 = vmatprep.subr.mxu0 0.0
    %2278 = vmatpush1.xpose.msra.mxu0 0.0
    %2279 = vmatprep.subr.mxu0 0.0
    %2280 = vmatpush1.xpose.msra.mxu0 0.0
    %2281 = vmatprep.subr.mxu0 0.0
    %2282 = vmatpush1.xpose.msra.mxu0 0.0
    %2283 = vmatprep.subr.mxu0 0.0
    %2284 = vmatpush1.xpose.msra.mxu0 0.0
    %2285 = vmatprep.subr.mxu0 0.0
    %2286 = vmatpush1.xpose.msra.mxu0 0.0
    %2287 = vmatprep.subr.mxu0 0.0
    %2288 = vmatpush1.xpose.msra.mxu0 0.0
    %2289 = vmatprep.subr.mxu0 0.0
    %2290 = vmatpush1.xpose.msra.mxu0 0.0
    %2291 = vmatprep.subr.mxu0 0.0
    %2292 = vmatpush1.xpose.msra.mxu0 0.0
    %2293 = vmatprep.subr.mxu0 0.0
    %2294 = vmatpush1.xpose.msra.mxu0 0.0
    %2295 = vmatprep.subr.mxu0 0.0
    %2296 = vmatpush1.xpose.msra.mxu0 0.0
    %2297 = vmatprep.subr.mxu0 0.0
    %2298 = vmatpush1.xpose.msra.mxu0 0.0
    %2299 = vmatprep.subr.mxu0 0.0
    %2300 = vmatpush1.xpose.msra.mxu0 0.0
    %2301 = vmatprep.subr.mxu0 0.0
    %2302 = vmatpush1.xpose.msra.mxu0 0.0
    %2303 = vmatprep.subr.mxu0 0.0
    %2304 = vmatpush1.xpose.msra.mxu0 0.0
    %2305 = vmatprep.subr.mxu0 0.0
    %2306 = vmatpush1.xpose.msra.mxu0 0.0
    %2307 = vmatprep.subr.mxu0 0.0
    %2308 = vmatpush1.xpose.msra.mxu0 0.0
    %2309 = vmatprep.subr.mxu0 0.0
    %2310 = vmatpush1.xpose.msra.mxu0 0.0
    %2311 = vmatprep.subr.mxu0 0.0
    %2312 = vmatpush1.xpose.msra.mxu0 0.0
    %2313 = vmatprep.mubr.f32.mxu0 0.0
    %2314 = vmatmul.mubr.f32.gmra.mrb[0].mxu0 %v2245
    %v2315 = vpop.f32.mrb[0].mxu0
    %v2316 = vadd.f32 %v143, %v2315
    %v2317 = vpop.f32.mrb[0].mxu0
    %2318 = vdwg.mxu0
    %2319 = vrot.lane.b32.xlu0 %v2082, 96
    %v2320 = vpop.permute.xlu0 %2319
    %v2321 = vsel %vm257, %v2082, 0
    %v2323 = vsel %vm257, %v2320, 0
    %2325 = vmatprep.subr.mxu0 0.0
    %2326 = vmatpush1.xpose.msra.mxu0 %v2323
    %2327 = vmatprep.subr.mxu0 0.0
    %2328 = vmatpush1.xpose.msra.mxu0 0.0
    %2329 = vmatprep.subr.mxu0 0.0
    %2330 = vmatpush1.xpose.msra.mxu0 0.0
    %2331 = vmatprep.subr.mxu0 0.0
    %2332 = vmatpush1.xpose.msra.mxu0 0.0
    %2333 = vmatprep.subr.mxu0 0.0
    %2334 = vmatpush1.xpose.msra.mxu0 0.0
    %2335 = vmatprep.subr.mxu0 0.0
    %2336 = vmatpush1.xpose.msra.mxu0 0.0
    %2337 = vmatprep.subr.mxu0 0.0
    %2338 = vmatpush1.xpose.msra.mxu0 0.0
    %2339 = vmatprep.subr.mxu0 0.0
    %2340 = vmatpush1.xpose.msra.mxu0 0.0
    %2341 = vmatprep.subr.mxu0 0.0
    %2342 = vmatpush1.xpose.msra.mxu0 0.0
    %2343 = vmatprep.subr.mxu0 0.0
    %2344 = vmatpush1.xpose.msra.mxu0 0.0
    %2345 = vmatprep.subr.mxu0 0.0
    %2346 = vmatpush1.xpose.msra.mxu0 0.0
    %2347 = vmatprep.subr.mxu0 0.0
    %2348 = vmatpush1.xpose.msra.mxu0 0.0
    %2349 = vmatprep.subr.mxu0 0.0
    %2350 = vmatpush1.xpose.msra.mxu0 0.0
    %2351 = vmatprep.subr.mxu0 0.0
    %2352 = vmatpush1.xpose.msra.mxu0 0.0
    %2353 = vmatprep.subr.mxu0 0.0
    %2354 = vmatpush1.xpose.msra.mxu0 0.0
    %2355 = vmatprep.subr.mxu0 0.0
    %2356 = vmatpush1.xpose.msra.mxu0 0.0
    %2357 = vmatprep.subr.mxu0 0.0
    %2358 = vmatpush1.xpose.msra.mxu0 0.0
    %2359 = vmatprep.subr.mxu0 0.0
    %2360 = vmatpush1.xpose.msra.mxu0 0.0
    %2361 = vmatprep.subr.mxu0 0.0
    %2362 = vmatpush1.xpose.msra.mxu0 0.0
    %2363 = vmatprep.subr.mxu0 0.0
    %2364 = vmatpush1.xpose.msra.mxu0 0.0
    %2365 = vmatprep.subr.mxu0 0.0
    %2366 = vmatpush1.xpose.msra.mxu0 0.0
    %2367 = vmatprep.subr.mxu0 0.0
    %2368 = vmatpush1.xpose.msra.mxu0 0.0
    %2369 = vmatprep.subr.mxu0 0.0
    %2370 = vmatpush1.xpose.msra.mxu0 0.0
    %2371 = vmatprep.subr.mxu0 0.0
    %2372 = vmatpush1.xpose.msra.mxu0 0.0
    %2373 = vmatprep.subr.mxu0 0.0
    %2374 = vmatpush1.xpose.msra.mxu0 0.0
    %2375 = vmatprep.subr.mxu0 0.0
    %2376 = vmatpush1.xpose.msra.mxu0 0.0
    %2377 = vmatprep.subr.mxu0 0.0
    %2378 = vmatpush1.xpose.msra.mxu0 0.0
    %2379 = vmatprep.subr.mxu0 0.0
    %2380 = vmatpush1.xpose.msra.mxu0 0.0
    %2381 = vmatprep.subr.mxu0 0.0
    %2382 = vmatpush1.xpose.msra.mxu0 0.0
    %2383 = vmatprep.subr.mxu0 0.0
    %2384 = vmatpush1.xpose.msra.mxu0 0.0
    %2385 = vmatprep.subr.mxu0 0.0
    %2386 = vmatpush1.xpose.msra.mxu0 0.0
    %2387 = vmatprep.subr.mxu0 0.0
    %2388 = vmatpush1.xpose.msra.mxu0 0.0
    %2389 = vmatprep.mubr.f32.mxu0 0.0
    %2390 = vmatmul.mubr.f32.gmra.mrb[0].mxu0 %v2321
    %v2391 = vpop.f32.mrb[0].mxu0
    %v2392 = vadd.f32 %v144, %v2391
    %v2393 = vpop.f32.mrb[0].mxu0
    %2394 = vdwg.mxu0
    %2395 = vrot.lane.b32.xlu0 %v2084, 96
    %v2396 = vpop.permute.xlu0 %2395
    %v2397 = vsel %vm257, %v2084, 0
    %v2399 = vsel %vm257, %v2396, 0
    %2401 = vmatprep.subr.mxu0 0.0
    %2402 = vmatpush1.xpose.msra.mxu0 %v2399
    %2403 = vmatprep.subr.mxu0 0.0
    %2404 = vmatpush1.xpose.msra.mxu0 0.0
    %2405 = vmatprep.subr.mxu0 0.0
    %2406 = vmatpush1.xpose.msra.mxu0 0.0
    %2407 = vmatprep.subr.mxu0 0.0
    %2408 = vmatpush1.xpose.msra.mxu0 0.0
    %2409 = vmatprep.subr.mxu0 0.0
    %2410 = vmatpush1.xpose.msra.mxu0 0.0
    %2411 = vmatprep.subr.mxu0 0.0
    %2412 = vmatpush1.xpose.msra.mxu0 0.0
    %2413 = vmatprep.subr.mxu0 0.0
    %2414 = vmatpush1.xpose.msra.mxu0 0.0
    %2415 = vmatprep.subr.mxu0 0.0
    %2416 = vmatpush1.xpose.msra.mxu0 0.0
    %2417 = vmatprep.subr.mxu0 0.0
    %2418 = vmatpush1.xpose.msra.mxu0 0.0
    %2419 = vmatprep.subr.mxu0 0.0
    %2420 = vmatpush1.xpose.msra.mxu0 0.0
    %2421 = vmatprep.subr.mxu0 0.0
    %2422 = vmatpush1.xpose.msra.mxu0 0.0
    %2423 = vmatprep.subr.mxu0 0.0
    %2424 = vmatpush1.xpose.msra.mxu0 0.0
    %2425 = vmatprep.subr.mxu0 0.0
    %2426 = vmatpush1.xpose.msra.mxu0 0.0
    %2427 = vmatprep.subr.mxu0 0.0
    %2428 = vmatpush1.xpose.msra.mxu0 0.0
    %2429 = vmatprep.subr.mxu0 0.0
    %2430 = vmatpush1.xpose.msra.mxu0 0.0
    %2431 = vmatprep.subr.mxu0 0.0
    %2432 = vmatpush1.xpose.msra.mxu0 0.0
    %2433 = vmatprep.subr.mxu0 0.0
    %2434 = vmatpush1.xpose.msra.mxu0 0.0
    %2435 = vmatprep.subr.mxu0 0.0
    %2436 = vmatpush1.xpose.msra.mxu0 0.0
    %2437 = vmatprep.subr.mxu0 0.0
    %2438 = vmatpush1.xpose.msra.mxu0 0.0
    %2439 = vmatprep.subr.mxu0 0.0
    %2440 = vmatpush1.xpose.msra.mxu0 0.0
    %2441 = vmatprep.subr.mxu0 0.0
    %2442 = vmatpush1.xpose.msra.mxu0 0.0
    %2443 = vmatprep.subr.mxu0 0.0
    %2444 = vmatpush1.xpose.msra.mxu0 0.0
    %2445 = vmatprep.subr.mxu0 0.0
    %2446 = vmatpush1.xpose.msra.mxu0 0.0
    %2447 = vmatprep.subr.mxu0 0.0
    %2448 = vmatpush1.xpose.msra.mxu0 0.0
    %2449 = vmatprep.subr.mxu0 0.0
    %2450 = vmatpush1.xpose.msra.mxu0 0.0
    %2451 = vmatprep.subr.mxu0 0.0
    %2452 = vmatpush1.xpose.msra.mxu0 0.0
    %2453 = vmatprep.subr.mxu0 0.0
    %2454 = vmatpush1.xpose.msra.mxu0 0.0
    %2455 = vmatprep.subr.mxu0 0.0
    %2456 = vmatpush1.xpose.msra.mxu0 0.0
    %2457 = vmatprep.subr.mxu0 0.0
    %2458 = vmatpush1.xpose.msra.mxu0 0.0
    %2459 = vmatprep.subr.mxu0 0.0
    %2460 = vmatpush1.xpose.msra.mxu0 0.0
    %2461 = vmatprep.subr.mxu0 0.0
    %2462 = vmatpush1.xpose.msra.mxu0 0.0
    %2463 = vmatprep.subr.mxu0 0.0
    %2464 = vmatpush1.xpose.msra.mxu0 0.0
    %2465 = vmatprep.mubr.f32.mxu0 0.0
    %2466 = vmatmul.mubr.f32.gmra.mrb[0].mxu0 %v2397
    %v2467 = vpop.f32.mrb[0].mxu0
    %v2468 = vadd.f32 %v145, %v2467
    %v2469 = vpop.f32.mrb[0].mxu0
    %2470 = vdwg.mxu0
    %2471 = vrot.lane.b32.xlu0 %v2086, 96
    %v2472 = vpop.permute.xlu0 %2471
    %v2473 = vsel %vm257, %v2086, 0
    %v2475 = vsel %vm257, %v2472, 0
    %2477 = vmatprep.subr.mxu0 0.0
    %2478 = vmatpush1.xpose.msra.mxu0 %v2475
    %2479 = vmatprep.subr.mxu0 0.0
    %2480 = vmatpush1.xpose.msra.mxu0 0.0
    %2481 = vmatprep.subr.mxu0 0.0
    %2482 = vmatpush1.xpose.msra.mxu0 0.0
    %2483 = vmatprep.subr.mxu0 0.0
    %2484 = vmatpush1.xpose.msra.mxu0 0.0
    %2485 = vmatprep.subr.mxu0 0.0
    %2486 = vmatpush1.xpose.msra.mxu0 0.0
    %2487 = vmatprep.subr.mxu0 0.0
    %2488 = vmatpush1.xpose.msra.mxu0 0.0
    %2489 = vmatprep.subr.mxu0 0.0
    %2490 = vmatpush1.xpose.msra.mxu0 0.0
    %2491 = vmatprep.subr.mxu0 0.0
    %2492 = vmatpush1.xpose.msra.mxu0 0.0
    %2493 = vmatprep.subr.mxu0 0.0
    %2494 = vmatpush1.xpose.msra.mxu0 0.0
    %2495 = vmatprep.subr.mxu0 0.0
    %2496 = vmatpush1.xpose.msra.mxu0 0.0
    %2497 = vmatprep.subr.mxu0 0.0
    %2498 = vmatpush1.xpose.msra.mxu0 0.0
    %2499 = vmatprep.subr.mxu0 0.0
    %2500 = vmatpush1.xpose.msra.mxu0 0.0
    %2501 = vmatprep.subr.mxu0 0.0
    %2502 = vmatpush1.xpose.msra.mxu0 0.0
    %2503 = vmatprep.subr.mxu0 0.0
    %2504 = vmatpush1.xpose.msra.mxu0 0.0
    %2505 = vmatprep.subr.mxu0 0.0
    %2506 = vmatpush1.xpose.msra.mxu0 0.0
    %2507 = vmatprep.subr.mxu0 0.0
    %2508 = vmatpush1.xpose.msra.mxu0 0.0
    %2509 = vmatprep.subr.mxu0 0.0
    %2510 = vmatpush1.xpose.msra.mxu0 0.0
    %2511 = vmatprep.subr.mxu0 0.0
    %2512 = vmatpush1.xpose.msra.mxu0 0.0
    %2513 = vmatprep.subr.mxu0 0.0
    %2514 = vmatpush1.xpose.msra.mxu0 0.0
    %2515 = vmatprep.subr.mxu0 0.0
    %2516 = vmatpush1.xpose.msra.mxu0 0.0
    %2517 = vmatprep.subr.mxu0 0.0
    %2518 = vmatpush1.xpose.msra.mxu0 0.0
    %2519 = vmatprep.subr.mxu0 0.0
    %2520 = vmatpush1.xpose.msra.mxu0 0.0
    %2521 = vmatprep.subr.mxu0 0.0
    %2522 = vmatpush1.xpose.msra.mxu0 0.0
    %2523 = vmatprep.subr.mxu0 0.0
    %2524 = vmatpush1.xpose.msra.mxu0 0.0
    %2525 = vmatprep.subr.mxu0 0.0
    %2526 = vmatpush1.xpose.msra.mxu0 0.0
    %2527 = vmatprep.subr.mxu0 0.0
    %2528 = vmatpush1.xpose.msra.mxu0 0.0
    %2529 = vmatprep.subr.mxu0 0.0
    %2530 = vmatpush1.xpose.msra.mxu0 0.0
    %2531 = vmatprep.subr.mxu0 0.0
    %2532 = vmatpush1.xpose.msra.mxu0 0.0
    %2533 = vmatprep.subr.mxu0 0.0
    %2534 = vmatpush1.xpose.msra.mxu0 0.0
    %2535 = vmatprep.subr.mxu0 0.0
    %2536 = vmatpush1.xpose.msra.mxu0 0.0
    %2537 = vmatprep.subr.mxu0 0.0
    %2538 = vmatpush1.xpose.msra.mxu0 0.0
    %2539 = vmatprep.subr.mxu0 0.0
    %2540 = vmatpush1.xpose.msra.mxu0 0.0
    %2541 = vmatprep.mubr.f32.mxu0 0.0
    %2542 = vmatmul.mubr.f32.gmra.mrb[0].mxu0 %v2473
    %v2543 = vpop.f32.mrb[0].mxu0
    %v2544 = vadd.f32 %v146, %v2543
    %v2545 = vpop.f32.mrb[0].mxu0
    %2546 = vdwg.mxu0
    %2547 = vrot.lane.b32.xlu0 %v2088, 96
    %v2548 = vpop.permute.xlu0 %2547
    %v2549 = vsel %vm257, %v2088, 0
    %v2551 = vsel %vm257, %v2548, 0
    %2553 = vmatprep.subr.mxu0 0.0
    %2554 = vmatpush1.xpose.msra.mxu0 %v2551
    %2555 = vmatprep.subr.mxu0 0.0
    %2556 = vmatpush1.xpose.msra.mxu0 0.0
    %2557 = vmatprep.subr.mxu0 0.0
    %2558 = vmatpush1.xpose.msra.mxu0 0.0
    %2559 = vmatprep.subr.mxu0 0.0
    %2560 = vmatpush1.xpose.msra.mxu0 0.0
    %2561 = vmatprep.subr.mxu0 0.0
    %2562 = vmatpush1.xpose.msra.mxu0 0.0
    %2563 = vmatprep.subr.mxu0 0.0
    %2564 = vmatpush1.xpose.msra.mxu0 0.0
    %2565 = vmatprep.subr.mxu0 0.0
    %2566 = vmatpush1.xpose.msra.mxu0 0.0
    %2567 = vmatprep.subr.mxu0 0.0
    %2568 = vmatpush1.xpose.msra.mxu0 0.0
    %2569 = vmatprep.subr.mxu0 0.0
    %2570 = vmatpush1.xpose.msra.mxu0 0.0
    %2571 = vmatprep.subr.mxu0 0.0
    %2572 = vmatpush1.xpose.msra.mxu0 0.0
    %2573 = vmatprep.subr.mxu0 0.0
    %2574 = vmatpush1.xpose.msra.mxu0 0.0
    %2575 = vmatprep.subr.mxu0 0.0
    %2576 = vmatpush1.xpose.msra.mxu0 0.0
    %2577 = vmatprep.subr.mxu0 0.0
    %2578 = vmatpush1.xpose.msra.mxu0 0.0
    %2579 = vmatprep.subr.mxu0 0.0
    %2580 = vmatpush1.xpose.msra.mxu0 0.0
    %2581 = vmatprep.subr.mxu0 0.0
    %2582 = vmatpush1.xpose.msra.mxu0 0.0
    %2583 = vmatprep.subr.mxu0 0.0
    %2584 = vmatpush1.xpose.msra.mxu0 0.0
    %2585 = vmatprep.subr.mxu0 0.0
    %2586 = vmatpush1.xpose.msra.mxu0 0.0
    %2587 = vmatprep.subr.mxu0 0.0
    %2588 = vmatpush1.xpose.msra.mxu0 0.0
    %2589 = vmatprep.subr.mxu0 0.0
    %2590 = vmatpush1.xpose.msra.mxu0 0.0
    %2591 = vmatprep.subr.mxu0 0.0
    %2592 = vmatpush1.xpose.msra.mxu0 0.0
    %2593 = vmatprep.subr.mxu0 0.0
    %2594 = vmatpush1.xpose.msra.mxu0 0.0
    %2595 = vmatprep.subr.mxu0 0.0
    %2596 = vmatpush1.xpose.msra.mxu0 0.0
    %2597 = vmatprep.subr.mxu0 0.0
    %2598 = vmatpush1.xpose.msra.mxu0 0.0
    %2599 = vmatprep.subr.mxu0 0.0
    %2600 = vmatpush1.xpose.msra.mxu0 0.0
    %2601 = vmatprep.subr.mxu0 0.0
    %2602 = vmatpush1.xpose.msra.mxu0 0.0
    %2603 = vmatprep.subr.mxu0 0.0
    %2604 = vmatpush1.xpose.msra.mxu0 0.0
    %2605 = vmatprep.subr.mxu0 0.0
    %2606 = vmatpush1.xpose.msra.mxu0 0.0
    %2607 = vmatprep.subr.mxu0 0.0
    %2608 = vmatpush1.xpose.msra.mxu0 0.0
    %2609 = vmatprep.subr.mxu0 0.0
    %2610 = vmatpush1.xpose.msra.mxu0 0.0
    %2611 = vmatprep.subr.mxu0 0.0
    %2612 = vmatpush1.xpose.msra.mxu0 0.0
    %2613 = vmatprep.subr.mxu0 0.0
    %2614 = vmatpush1.xpose.msra.mxu0 0.0
    %2615 = vmatprep.subr.mxu0 0.0
    %2616 = vmatpush1.xpose.msra.mxu0 0.0
    %2617 = vmatprep.mubr.f32.mxu0 0.0
    %2618 = vmatmul.mubr.f32.gmra.mrb[0].mxu0 %v2549
    %v2619 = vpop.f32.mrb[0].mxu0
    %v2620 = vadd.f32 %v147, %v2619
    %v2621 = vpop.f32.mrb[0].mxu0
    %2622 = vdwg.mxu0
    %2623 = vrot.lane.b32.xlu0 %v2090, 96
    %v2624 = vpop.permute.xlu0 %2623
    %v2625 = vsel %vm257, %v2090, 0
    %v2627 = vsel %vm257, %v2624, 0
    %2629 = vmatprep.subr.mxu0 0.0
    %2630 = vmatpush1.xpose.msra.mxu0 %v2627
    %2631 = vmatprep.subr.mxu0 0.0
    %2632 = vmatpush1.xpose.msra.mxu0 0.0
    %2633 = vmatprep.subr.mxu0 0.0
    %2634 = vmatpush1.xpose.msra.mxu0 0.0
    %2635 = vmatprep.subr.mxu0 0.0
    %2636 = vmatpush1.xpose.msra.mxu0 0.0
    %2637 = vmatprep.subr.mxu0 0.0
    %2638 = vmatpush1.xpose.msra.mxu0 0.0
    %2639 = vmatprep.subr.mxu0 0.0
    %2640 = vmatpush1.xpose.msra.mxu0 0.0
    %2641 = vmatprep.subr.mxu0 0.0
    %2642 = vmatpush1.xpose.msra.mxu0 0.0
    %2643 = vmatprep.subr.mxu0 0.0
    %2644 = vmatpush1.xpose.msra.mxu0 0.0
    %2645 = vmatprep.subr.mxu0 0.0
    %2646 = vmatpush1.xpose.msra.mxu0 0.0
    %2647 = vmatprep.subr.mxu0 0.0
    %2648 = vmatpush1.xpose.msra.mxu0 0.0
    %2649 = vmatprep.subr.mxu0 0.0
    %2650 = vmatpush1.xpose.msra.mxu0 0.0
    %2651 = vmatprep.subr.mxu0 0.0
    %2652 = vmatpush1.xpose.msra.mxu0 0.0
    %2653 = vmatprep.subr.mxu0 0.0
    %2654 = vmatpush1.xpose.msra.mxu0 0.0
    %2655 = vmatprep.subr.mxu0 0.0
    %2656 = vmatpush1.xpose.msra.mxu0 0.0
    %2657 = vmatprep.subr.mxu0 0.0
    %2658 = vmatpush1.xpose.msra.mxu0 0.0
    %2659 = vmatprep.subr.mxu0 0.0
    %2660 = vmatpush1.xpose.msra.mxu0 0.0
    %2661 = vmatprep.subr.mxu0 0.0
    %2662 = vmatpush1.xpose.msra.mxu0 0.0
    %2663 = vmatprep.subr.mxu0 0.0
    %2664 = vmatpush1.xpose.msra.mxu0 0.0
    %2665 = vmatprep.subr.mxu0 0.0
    %2666 = vmatpush1.xpose.msra.mxu0 0.0
    %2667 = vmatprep.subr.mxu0 0.0
    %2668 = vmatpush1.xpose.msra.mxu0 0.0
    %2669 = vmatprep.subr.mxu0 0.0
    %2670 = vmatpush1.xpose.msra.mxu0 0.0
    %2671 = vmatprep.subr.mxu0 0.0
    %2672 = vmatpush1.xpose.msra.mxu0 0.0
    %2673 = vmatprep.subr.mxu0 0.0
    %2674 = vmatpush1.xpose.msra.mxu0 0.0
    %2675 = vmatprep.subr.mxu0 0.0
    %2676 = vmatpush1.xpose.msra.mxu0 0.0
    %2677 = vmatprep.subr.mxu0 0.0
    %2678 = vmatpush1.xpose.msra.mxu0 0.0
    %2679 = vmatprep.subr.mxu0 0.0
    %2680 = vmatpush1.xpose.msra.mxu0 0.0
    %2681 = vmatprep.subr.mxu0 0.0
    %2682 = vmatpush1.xpose.msra.mxu0 0.0
    %2683 = vmatprep.subr.mxu0 0.0
    %2684 = vmatpush1.xpose.msra.mxu0 0.0
    %2685 = vmatprep.subr.mxu0 0.0
    %2686 = vmatpush1.xpose.msra.mxu0 0.0
    %2687 = vmatprep.subr.mxu0 0.0
    %2688 = vmatpush1.xpose.msra.mxu0 0.0
    %2689 = vmatprep.subr.mxu0 0.0
    %2690 = vmatpush1.xpose.msra.mxu0 0.0
    %2691 = vmatprep.subr.mxu0 0.0
    %2692 = vmatpush1.xpose.msra.mxu0 0.0
    %2693 = vmatprep.mubr.f32.mxu0 0.0
    %2694 = vmatmul.mubr.f32.gmra.mrb[0].mxu0 %v2625
    %v2695 = vpop.f32.mrb[0].mxu0
    %v2696 = vadd.f32 %v148, %v2695
    %v2697 = vpop.f32.mrb[0].mxu0
    %2698 = vdwg.mxu0
    %v2699 = vsel %vm257, %v2164, -inf
    %2700 = vmax.xlane.f32.xlu0 %v2699
    %v2701 = vpop.xlane.xlu0 %2700
    %v2702 = vsel %vm257, %v2240, -inf
    %2703 = vmax.xlane.f32.xlu0 %v2702
    %v2704 = vpop.xlane.xlu0 %2703
    %v2705 = vsel %vm257, %v2316, -inf
    %2706 = vmax.xlane.f32.xlu0 %v2705
    %v2707 = vpop.xlane.xlu0 %2706
    %v2708 = vsel %vm257, %v2392, -inf
    %2709 = vmax.xlane.f32.xlu0 %v2708
    %v2710 = vpop.xlane.xlu0 %2709
    %v2711 = vsel %vm257, %v2468, -inf
    %2712 = vmax.xlane.f32.xlu0 %v2711
    %v2713 = vpop.xlane.xlu0 %2712
    %v2714 = vsel %vm257, %v2544, -inf
    %2715 = vmax.xlane.f32.xlu0 %v2714
    %v2716 = vpop.xlane.xlu0 %2715
    %v2717 = vsel %vm257, %v2620, -inf
    %2718 = vmax.xlane.f32.xlu0 %v2717
    %v2719 = vpop.xlane.xlu0 %2718
    %v2720 = vsel %vm257, %v2696, -inf
    %2721 = vmax.xlane.f32.xlu0 %v2720
    %v2722 = vpop.xlane.xlu0 %2721
    %v2723 = vsub.f32 %v2164, %v2701
    %v2724 = vsub.f32 %v2240, %v2704
    %v2725 = vsub.f32 %v2316, %v2707
    %v2726 = vsub.f32 %v2392, %v2710
    %v2727 = vsub.f32 %v2468, %v2713
    %v2728 = vsub.f32 %v2544, %v2716
    %v2729 = vsub.f32 %v2620, %v2719
    %v2730 = vsub.f32 %v2696, %v2722
    %v2731 = vmul.f32 %v2723, 1.442695
    %v2732 = vpow.pop %v2731
    %v2733 = vmul.f32 %v2724, 1.442695
    %v2734 = vpow.pop %v2733
    %v2735 = vmul.f32 %v2725, 1.442695
    %v2736 = vpow.pop %v2735
    %v2737 = vmul.f32 %v2726, 1.442695
    %v2738 = vpow.pop %v2737
    %v2739 = vmul.f32 %v2727, 1.442695
    %v2740 = vpow.pop %v2739
    %v2741 = vmul.f32 %v2728, 1.442695
    %v2742 = vpow.pop %v2741
    %v2743 = vmul.f32 %v2729, 1.442695
    %v2744 = vpow.pop %v2743
    %v2745 = vmul.f32 %v2730, 1.442695
    %v2746 = vpow.pop %v2745
    %v2747 = vsel %vm257, %v2732, 0.0
    %2748 = vadd.xlane.f32.xlu0 %v2747
    %v2749 = vpop.xlane.xlu0 %2748
    %v2750 = vsel %vm257, %v2734, 0.0
    %2751 = vadd.xlane.f32.xlu0 %v2750
    %v2752 = vpop.xlane.xlu0 %2751
    %v2753 = vsel %vm257, %v2736, 0.0
    %2754 = vadd.xlane.f32.xlu0 %v2753
    %v2755 = vpop.xlane.xlu0 %2754
    %v2756 = vsel %vm257, %v2738, 0.0
    %2757 = vadd.xlane.f32.xlu0 %v2756
    %v2758 = vpop.xlane.xlu0 %2757
    %v2759 = vsel %vm257, %v2740, 0.0
    %2760 = vadd.xlane.f32.xlu0 %v2759
    %v2761 = vpop.xlane.xlu0 %2760
    %v2762 = vsel %vm257, %v2742, 0.0
    %2763 = vadd.xlane.f32.xlu0 %v2762
    %v2764 = vpop.xlane.xlu0 %2763
    %v2765 = vsel %vm257, %v2744, 0.0
    %2766 = vadd.xlane.f32.xlu0 %v2765
    %v2767 = vpop.xlane.xlu0 %2766
    %v2768 = vsel %vm257, %v2746, 0.0
    %2769 = vadd.xlane.f32.xlu0 %v2768
    %v2770 = vpop.xlane.xlu0 %2769
    %v2771 = vrcp.pop %v2749
    %v2772 = vmul.f32 %v2732, %v2771
    %v2773 = vrcp.pop %v2752
    %v2774 = vmul.f32 %v2734, %v2773
    %v2775 = vrcp.pop %v2755
    %v2776 = vmul.f32 %v2736, %v2775
    %v2777 = vrcp.pop %v2758
    %v2778 = vmul.f32 %v2738, %v2777
    %v2779 = vrcp.pop %v2761
    %v2780 = vmul.f32 %v2740, %v2779
    %v2781 = vrcp.pop %v2764
    %v2782 = vmul.f32 %v2742, %v2781
    %v2783 = vrcp.pop %v2767
    %v2784 = vmul.f32 %v2744, %v2783
    %v2785 = vrcp.pop %v2770
    %v2786 = vmul.f32 %v2746, %v2785
    %2787 = vrot.lane.b32.xlu0 %v2069, 64
    %v2788 = vpop.permute.xlu0 %2787
    %v2791 = vsel %vm257, %v2772, 0
    %2793 = vmatprep.subr.mxu0 0.0
    %2794 = vmatpush1.msra.mxu0 %v2788
    %2795 = vmatprep.subr.mxu0 0.0
    %2796 = vmatpush1.msra.mxu0 0.0
    %2797 = vmatprep.subr.mxu0 0.0
    %2798 = vmatpush1.msra.mxu0 0.0
    %2799 = vmatprep.subr.mxu0 0.0
    %2800 = vmatpush1.msra.mxu0 0.0
    %2801 = vmatprep.subr.mxu0 0.0
    %2802 = vmatpush1.msra.mxu0 0.0
    %2803 = vmatprep.subr.mxu0 0.0
    %2804 = vmatpush1.msra.mxu0 0.0
    %2805 = vmatprep.subr.mxu0 0.0
    %2806 = vmatpush1.msra.mxu0 0.0
    %2807 = vmatprep.subr.mxu0 0.0
    %2808 = vmatpush1.msra.mxu0 0.0
    %2809 = vmatprep.subr.mxu0 0.0
    %2810 = vmatpush1.msra.mxu0 0.0
    %2811 = vmatprep.subr.mxu0 0.0
    %2812 = vmatpush1.msra.mxu0 0.0
    %2813 = vmatprep.subr.mxu0 0.0
    %2814 = vmatpush1.msra.mxu0 0.0
    %2815 = vmatprep.subr.mxu0 0.0
    %2816 = vmatpush1.msra.mxu0 0.0
    %2817 = vmatprep.subr.mxu0 0.0
    %2818 = vmatpush1.msra.mxu0 0.0
    %2819 = vmatprep.subr.mxu0 0.0
    %2820 = vmatpush1.msra.mxu0 0.0
    %2821 = vmatprep.subr.mxu0 0.0
    %2822 = vmatpush1.msra.mxu0 0.0
    %2823 = vmatprep.subr.mxu0 0.0
    %2824 = vmatpush1.msra.mxu0 0.0
    %2825 = vmatprep.subr.mxu0 0.0
    %2826 = vmatpush1.msra.mxu0 0.0
    %2827 = vmatprep.subr.mxu0 0.0
    %2828 = vmatpush1.msra.mxu0 0.0
    %2829 = vmatprep.subr.mxu0 0.0
    %2830 = vmatpush1.msra.mxu0 0.0
    %2831 = vmatprep.subr.mxu0 0.0
    %2832 = vmatpush1.msra.mxu0 0.0
    %2833 = vmatprep.subr.mxu0 0.0
    %2834 = vmatpush1.msra.mxu0 0.0
    %2835 = vmatprep.subr.mxu0 0.0
    %2836 = vmatpush1.msra.mxu0 0.0
    %2837 = vmatprep.subr.mxu0 0.0
    %2838 = vmatpush1.msra.mxu0 0.0
    %2839 = vmatprep.subr.mxu0 0.0
    %2840 = vmatpush1.msra.mxu0 0.0
    %2841 = vmatprep.subr.mxu0 0.0
    %2842 = vmatpush1.msra.mxu0 0.0
    %2843 = vmatprep.subr.mxu0 0.0
    %2844 = vmatpush1.msra.mxu0 0.0
    %2845 = vmatprep.subr.mxu0 0.0
    %2846 = vmatpush1.msra.mxu0 0.0
    %2847 = vmatprep.subr.mxu0 0.0
    %2848 = vmatpush1.msra.mxu0 0.0
    %2849 = vmatprep.subr.mxu0 0.0
    %2850 = vmatpush1.msra.mxu0 0.0
    %2851 = vmatprep.subr.mxu0 0.0
    %2852 = vmatpush1.msra.mxu0 0.0
    %2853 = vmatprep.subr.mxu0 0.0
    %2854 = vmatpush1.msra.mxu0 0.0
    %2855 = vmatprep.subr.mxu0 0.0
    %2856 = vmatpush1.msra.mxu0 0.0
    %2857 = vmatprep.mubr.f32.mxu0 0.0
    %2858 = vmatmul.mubr.f32.gmra.mrb[0].mxu0 %v2791
    %v2859 = vpop.f32.mrb[0].mxu0
    %v2860 = vadd.f32 0.0, %v2859
    %v2861 = vpop.f32.mrb[0].mxu0
    %2862 = vdwg.mxu0
    %2863 = vrot.lane.b32.xlu0 %v2074, 64
    %v2864 = vpop.permute.xlu0 %2863
    %v2867 = vsel %vm257, %v2774, 0
    %2869 = vmatprep.subr.mxu0 0.0
    %2870 = vmatpush1.msra.mxu0 %v2864
    %2871 = vmatprep.subr.mxu0 0.0
    %2872 = vmatpush1.msra.mxu0 0.0
    %2873 = vmatprep.subr.mxu0 0.0
    %2874 = vmatpush1.msra.mxu0 0.0
    %2875 = vmatprep.subr.mxu0 0.0
    %2876 = vmatpush1.msra.mxu0 0.0
    %2877 = vmatprep.subr.mxu0 0.0
    %2878 = vmatpush1.msra.mxu0 0.0
    %2879 = vmatprep.subr.mxu0 0.0
    %2880 = vmatpush1.msra.mxu0 0.0
    %2881 = vmatprep.subr.mxu0 0.0
    %2882 = vmatpush1.msra.mxu0 0.0
    %2883 = vmatprep.subr.mxu0 0.0
    %2884 = vmatpush1.msra.mxu0 0.0
    %2885 = vmatprep.subr.mxu0 0.0
    %2886 = vmatpush1.msra.mxu0 0.0
    %2887 = vmatprep.subr.mxu0 0.0
    %2888 = vmatpush1.msra.mxu0 0.0
    %2889 = vmatprep.subr.mxu0 0.0
    %2890 = vmatpush1.msra.mxu0 0.0
    %2891 = vmatprep.subr.mxu0 0.0
    %2892 = vmatpush1.msra.mxu0 0.0
    %2893 = vmatprep.subr.mxu0 0.0
    %2894 = vmatpush1.msra.mxu0 0.0
    %2895 = vmatprep.subr.mxu0 0.0
    %2896 = vmatpush1.msra.mxu0 0.0
    %2897 = vmatprep.subr.mxu0 0.0
    %2898 = vmatpush1.msra.mxu0 0.0
    %2899 = vmatprep.subr.mxu0 0.0
    %2900 = vmatpush1.msra.mxu0 0.0
    %2901 = vmatprep.subr.mxu0 0.0
    %2902 = vmatpush1.msra.mxu0 0.0
    %2903 = vmatprep.subr.mxu0 0.0
    %2904 = vmatpush1.msra.mxu0 0.0
    %2905 = vmatprep.subr.mxu0 0.0
    %2906 = vmatpush1.msra.mxu0 0.0
    %2907 = vmatprep.subr.mxu0 0.0
    %2908 = vmatpush1.msra.mxu0 0.0
    %2909 = vmatprep.subr.mxu0 0.0
    %2910 = vmatpush1.msra.mxu0 0.0
    %2911 = vmatprep.subr.mxu0 0.0
    %2912 = vmatpush1.msra.mxu0 0.0
    %2913 = vmatprep.subr.mxu0 0.0
    %2914 = vmatpush1.msra.mxu0 0.0
    %2915 = vmatprep.subr.mxu0 0.0
    %2916 = vmatpush1.msra.mxu0 0.0
    %2917 = vmatprep.subr.mxu0 0.0
    %2918 = vmatpush1.msra.mxu0 0.0
    %2919 = vmatprep.subr.mxu0 0.0
    %2920 = vmatpush1.msra.mxu0 0.0
    %2921 = vmatprep.subr.mxu0 0.0
    %2922 = vmatpush1.msra.mxu0 0.0
    %2923 = vmatprep.subr.mxu0 0.0
    %2924 = vmatpush1.msra.mxu0 0.0
    %2925 = vmatprep.subr.mxu0 0.0
    %2926 = vmatpush1.msra.mxu0 0.0
    %2927 = vmatprep.subr.mxu0 0.0
    %2928 = vmatpush1.msra.mxu0 0.0
    %2929 = vmatprep.subr.mxu0 0.0
    %2930 = vmatpush1.msra.mxu0 0.0
    %2931 = vmatprep.subr.mxu0 0.0
    %2932 = vmatpush1.msra.mxu0 0.0
    %2933 = vmatprep.mubr.f32.mxu0 0.0
    %2934 = vmatmul.mubr.f32.gmra.mrb[0].mxu0 %v2867
    %v2935 = vpop.f32.mrb[0].mxu0
    %v2936 = vadd.f32 0.0, %v2935
    %v2937 = vpop.f32.mrb[0].mxu0
    %2938 = vdwg.mxu0
    %2939 = vrot.lane.b32.xlu0 %v2080, 64
    %v2940 = vpop.permute.xlu0 %2939
    %v2943 = vsel %vm257, %v2776, 0
    %2945 = vmatprep.subr.mxu0 0.0
    %2946 = vmatpush1.msra.mxu0 %v2940
    %2947 = vmatprep.subr.mxu0 0.0
    %2948 = vmatpush1.msra.mxu0 0.0
    %2949 = vmatprep.subr.mxu0 0.0
    %2950 = vmatpush1.msra.mxu0 0.0
    %2951 = vmatprep.subr.mxu0 0.0
    %2952 = vmatpush1.msra.mxu0 0.0
    %2953 = vmatprep.subr.mxu0 0.0
    %2954 = vmatpush1.msra.mxu0 0.0
    %2955 = vmatprep.subr.mxu0 0.0
    %2956 = vmatpush1.msra.mxu0 0.0
    %2957 = vmatprep.subr.mxu0 0.0
    %2958 = vmatpush1.msra.mxu0 0.0
    %2959 = vmatprep.subr.mxu0 0.0
    %2960 = vmatpush1.msra.mxu0 0.0
    %2961 = vmatprep.subr.mxu0 0.0
    %2962 = vmatpush1.msra.mxu0 0.0
    %2963 = vmatprep.subr.mxu0 0.0
    %2964 = vmatpush1.msra.mxu0 0.0
    %2965 = vmatprep.subr.mxu0 0.0
    %2966 = vmatpush1.msra.mxu0 0.0
    %2967 = vmatprep.subr.mxu0 0.0
    %2968 = vmatpush1.msra.mxu0 0.0
    %2969 = vmatprep.subr.mxu0 0.0
    %2970 = vmatpush1.msra.mxu0 0.0
    %2971 = vmatprep.subr.mxu0 0.0
    %2972 = vmatpush1.msra.mxu0 0.0
    %2973 = vmatprep.subr.mxu0 0.0
    %2974 = vmatpush1.msra.mxu0 0.0
    %2975 = vmatprep.subr.mxu0 0.0
    %2976 = vmatpush1.msra.mxu0 0.0
    %2977 = vmatprep.subr.mxu0 0.0
    %2978 = vmatpush1.msra.mxu0 0.0
    %2979 = vmatprep.subr.mxu0 0.0
    %2980 = vmatpush1.msra.mxu0 0.0
    %2981 = vmatprep.subr.mxu0 0.0
    %2982 = vmatpush1.msra.mxu0 0.0
    %2983 = vmatprep.subr.mxu0 0.0
    %2984 = vmatpush1.msra.mxu0 0.0
    %2985 = vmatprep.subr.mxu0 0.0
    %2986 = vmatpush1.msra.mxu0 0.0
    %2987 = vmatprep.subr.mxu0 0.0
    %2988 = vmatpush1.msra.mxu0 0.0
    %2989 = vmatprep.subr.mxu0 0.0
    %2990 = vmatpush1.msra.mxu0 0.0
    %2991 = vmatprep.subr.mxu0 0.0
    %2992 = vmatpush1.msra.mxu0 0.0
    %2993 = vmatprep.subr.mxu0 0.0
    %2994 = vmatpush1.msra.mxu0 0.0
    %2995 = vmatprep.subr.mxu0 0.0
    %2996 = vmatpush1.msra.mxu0 0.0
    %2997 = vmatprep.subr.mxu0 0.0
    %2998 = vmatpush1.msra.mxu0 0.0
    %2999 = vmatprep.subr.mxu0 0.0
    %3000 = vmatpush1.msra.mxu0 0.0
    %3001 = vmatprep.subr.mxu0 0.0
    %3002 = vmatpush1.msra.mxu0 0.0
    %3003 = vmatprep.subr.mxu0 0.0
    %3004 = vmatpush1.msra.mxu0 0.0
    %3005 = vmatprep.subr.mxu0 0.0
    %3006 = vmatpush1.msra.mxu0 0.0
    %3007 = vmatprep.subr.mxu0 0.0
    %3008 = vmatpush1.msra.mxu0 0.0
    %3009 = vmatprep.mubr.f32.mxu0 0.0
    %3010 = vmatmul.mubr.f32.gmra.mrb[0].mxu0 %v2943
    %v3011 = vpop.f32.mrb[0].mxu0
    %v3012 = vadd.f32 0.0, %v3011
    %v3013 = vpop.f32.mrb[0].mxu0
    %3014 = vdwg.mxu0
    %3015 = vrot.lane.b32.xlu0 %v2082, 64
    %v3016 = vpop.permute.xlu0 %3015
    %v3019 = vsel %vm257, %v2778, 0
    %3021 = vmatprep.subr.mxu0 0.0
    %3022 = vmatpush1.msra.mxu0 %v3016
    %3023 = vmatprep.subr.mxu0 0.0
    %3024 = vmatpush1.msra.mxu0 0.0
    %3025 = vmatprep.subr.mxu0 0.0
    %3026 = vmatpush1.msra.mxu0 0.0
    %3027 = vmatprep.subr.mxu0 0.0
    %3028 = vmatpush1.msra.mxu0 0.0
    %3029 = vmatprep.subr.mxu0 0.0
    %3030 = vmatpush1.msra.mxu0 0.0
    %3031 = vmatprep.subr.mxu0 0.0
    %3032 = vmatpush1.msra.mxu0 0.0
    %3033 = vmatprep.subr.mxu0 0.0
    %3034 = vmatpush1.msra.mxu0 0.0
    %3035 = vmatprep.subr.mxu0 0.0
    %3036 = vmatpush1.msra.mxu0 0.0
    %3037 = vmatprep.subr.mxu0 0.0
    %3038 = vmatpush1.msra.mxu0 0.0
    %3039 = vmatprep.subr.mxu0 0.0
    %3040 = vmatpush1.msra.mxu0 0.0
    %3041 = vmatprep.subr.mxu0 0.0
    %3042 = vmatpush1.msra.mxu0 0.0
    %3043 = vmatprep.subr.mxu0 0.0
    %3044 = vmatpush1.msra.mxu0 0.0
    %3045 = vmatprep.subr.mxu0 0.0
    %3046 = vmatpush1.msra.mxu0 0.0
    %3047 = vmatprep.subr.mxu0 0.0
    %3048 = vmatpush1.msra.mxu0 0.0
    %3049 = vmatprep.subr.mxu0 0.0
    %3050 = vmatpush1.msra.mxu0 0.0
    %3051 = vmatprep.subr.mxu0 0.0
    %3052 = vmatpush1.msra.mxu0 0.0
    %3053 = vmatprep.subr.mxu0 0.0
    %3054 = vmatpush1.msra.mxu0 0.0
    %3055 = vmatprep.subr.mxu0 0.0
    %3056 = vmatpush1.msra.mxu0 0.0
    %3057 = vmatprep.subr.mxu0 0.0
    %3058 = vmatpush1.msra.mxu0 0.0
    %3059 = vmatprep.subr.mxu0 0.0
    %3060 = vmatpush1.msra.mxu0 0.0
    %3061 = vmatprep.subr.mxu0 0.0
    %3062 = vmatpush1.msra.mxu0 0.0
    %3063 = vmatprep.subr.mxu0 0.0
    %3064 = vmatpush1.msra.mxu0 0.0
    %3065 = vmatprep.subr.mxu0 0.0
    %3066 = vmatpush1.msra.mxu0 0.0
    %3067 = vmatprep.subr.mxu0 0.0
    %3068 = vmatpush1.msra.mxu0 0.0
    %3069 = vmatprep.subr.mxu0 0.0
    %3070 = vmatpush1.msra.mxu0 0.0
    %3071 = vmatprep.subr.mxu0 0.0
    %3072 = vmatpush1.msra.mxu0 0.0
    %3073 = vmatprep.subr.mxu0 0.0
    %3074 = vmatpush1.msra.mxu0 0.0
    %3075 = vmatprep.subr.mxu0 0.0
    %3076 = vmatpush1.msra.mxu0 0.0
    %3077 = vmatprep.subr.mxu0 0.0
    %3078 = vmatpush1.msra.mxu0 0.0
    %3079 = vmatprep.subr.mxu0 0.0
    %3080 = vmatpush1.msra.mxu0 0.0
    %3081 = vmatprep.subr.mxu0 0.0
    %3082 = vmatpush1.msra.mxu0 0.0
    %3083 = vmatprep.subr.mxu0 0.0
    %3084 = vmatpush1.msra.mxu0 0.0
    %3085 = vmatprep.mubr.f32.mxu0 0.0
    %3086 = vmatmul.mubr.f32.gmra.mrb[0].mxu0 %v3019
    %v3087 = vpop.f32.mrb[0].mxu0
    %v3088 = vadd.f32 0.0, %v3087
    %v3089 = vpop.f32.mrb[0].mxu0
    %3090 = vdwg.mxu0
    %3091 = vrot.lane.b32.xlu0 %v2084, 64
    %v3092 = vpop.permute.xlu0 %3091
    %v3095 = vsel %vm257, %v2780, 0
    %3097 = vmatprep.subr.mxu0 0.0
    %3098 = vmatpush1.msra.mxu0 %v3092
    %3099 = vmatprep.subr.mxu0 0.0
    %3100 = vmatpush1.msra.mxu0 0.0
    %3101 = vmatprep.subr.mxu0 0.0
    %3102 = vmatpush1.msra.mxu0 0.0
    %3103 = vmatprep.subr.mxu0 0.0
    %3104 = vmatpush1.msra.mxu0 0.0
    %3105 = vmatprep.subr.mxu0 0.0
    %3106 = vmatpush1.msra.mxu0 0.0
    %3107 = vmatprep.subr.mxu0 0.0
    %3108 = vmatpush1.msra.mxu0 0.0
    %3109 = vmatprep.subr.mxu0 0.0
    %3110 = vmatpush1.msra.mxu0 0.0
    %3111 = vmatprep.subr.mxu0 0.0
    %3112 = vmatpush1.msra.mxu0 0.0
    %3113 = vmatprep.subr.mxu0 0.0
    %3114 = vmatpush1.msra.mxu0 0.0
    %3115 = vmatprep.subr.mxu0 0.0
    %3116 = vmatpush1.msra.mxu0 0.0
    %3117 = vmatprep.subr.mxu0 0.0
    %3118 = vmatpush1.msra.mxu0 0.0
    %3119 = vmatprep.subr.mxu0 0.0
    %3120 = vmatpush1.msra.mxu0 0.0
    %3121 = vmatprep.subr.mxu0 0.0
    %3122 = vmatpush1.msra.mxu0 0.0
    %3123 = vmatprep.subr.mxu0 0.0
    %3124 = vmatpush1.msra.mxu0 0.0
    %3125 = vmatprep.subr.mxu0 0.0
    %3126 = vmatpush1.msra.mxu0 0.0
    %3127 = vmatprep.subr.mxu0 0.0
    %3128 = vmatpush1.msra.mxu0 0.0
    %3129 = vmatprep.subr.mxu0 0.0
    %3130 = vmatpush1.msra.mxu0 0.0
    %3131 = vmatprep.subr.mxu0 0.0
    %3132 = vmatpush1.msra.mxu0 0.0
    %3133 = vmatprep.subr.mxu0 0.0
    %3134 = vmatpush1.msra.mxu0 0.0
    %3135 = vmatprep.subr.mxu0 0.0
    %3136 = vmatpush1.msra.mxu0 0.0
    %3137 = vmatprep.subr.mxu0 0.0
    %3138 = vmatpush1.msra.mxu0 0.0
    %3139 = vmatprep.subr.mxu0 0.0
    %3140 = vmatpush1.msra.mxu0 0.0
    %3141 = vmatprep.subr.mxu0 0.0
    %3142 = vmatpush1.msra.mxu0 0.0
    %3143 = vmatprep.subr.mxu0 0.0
    %3144 = vmatpush1.msra.mxu0 0.0
    %3145 = vmatprep.subr.mxu0 0.0
    %3146 = vmatpush1.msra.mxu0 0.0
    %3147 = vmatprep.subr.mxu0 0.0
    %3148 = vmatpush1.msra.mxu0 0.0
    %3149 = vmatprep.subr.mxu0 0.0
    %3150 = vmatpush1.msra.mxu0 0.0
    %3151 = vmatprep.subr.mxu0 0.0
    %3152 = vmatpush1.msra.mxu0 0.0
    %3153 = vmatprep.subr.mxu0 0.0
    %3154 = vmatpush1.msra.mxu0 0.0
    %3155 = vmatprep.subr.mxu0 0.0
    %3156 = vmatpush1.msra.mxu0 0.0
    %3157 = vmatprep.subr.mxu0 0.0
    %3158 = vmatpush1.msra.mxu0 0.0
    %3159 = vmatprep.subr.mxu0 0.0
    %3160 = vmatpush1.msra.mxu0 0.0
    %3161 = vmatprep.mubr.f32.mxu0 0.0
    %3162 = vmatmul.mubr.f32.gmra.mrb[0].mxu0 %v3095
    %v3163 = vpop.f32.mrb[0].mxu0
    %v3164 = vadd.f32 0.0, %v3163
    %v3165 = vpop.f32.mrb[0].mxu0
    %3166 = vdwg.mxu0
    %3167 = vrot.lane.b32.xlu0 %v2086, 64
    %v3168 = vpop.permute.xlu0 %3167
    %v3171 = vsel %vm257, %v2782, 0
    %3173 = vmatprep.subr.mxu0 0.0
    %3174 = vmatpush1.msra.mxu0 %v3168
    %3175 = vmatprep.subr.mxu0 0.0
    %3176 = vmatpush1.msra.mxu0 0.0
    %3177 = vmatprep.subr.mxu0 0.0
    %3178 = vmatpush1.msra.mxu0 0.0
    %3179 = vmatprep.subr.mxu0 0.0
    %3180 = vmatpush1.msra.mxu0 0.0
    %3181 = vmatprep.subr.mxu0 0.0
    %3182 = vmatpush1.msra.mxu0 0.0
    %3183 = vmatprep.subr.mxu0 0.0
    %3184 = vmatpush1.msra.mxu0 0.0
    %3185 = vmatprep.subr.mxu0 0.0
    %3186 = vmatpush1.msra.mxu0 0.0
    %3187 = vmatprep.subr.mxu0 0.0
    %3188 = vmatpush1.msra.mxu0 0.0
    %3189 = vmatprep.subr.mxu0 0.0
    %3190 = vmatpush1.msra.mxu0 0.0
    %3191 = vmatprep.subr.mxu0 0.0
    %3192 = vmatpush1.msra.mxu0 0.0
    %3193 = vmatprep.subr.mxu0 0.0
    %3194 = vmatpush1.msra.mxu0 0.0
    %3195 = vmatprep.subr.mxu0 0.0
    %3196 = vmatpush1.msra.mxu0 0.0
    %3197 = vmatprep.subr.mxu0 0.0
    %3198 = vmatpush1.msra.mxu0 0.0
    %3199 = vmatprep.subr.mxu0 0.0
    %3200 = vmatpush1.msra.mxu0 0.0
    %3201 = vmatprep.subr.mxu0 0.0
    %3202 = vmatpush1.msra.mxu0 0.0
    %3203 = vmatprep.subr.mxu0 0.0
    %3204 = vmatpush1.msra.mxu0 0.0
    %3205 = vmatprep.subr.mxu0 0.0
    %3206 = vmatpush1.msra.mxu0 0.0
    %3207 = vmatprep.subr.mxu0 0.0
    %3208 = vmatpush1.msra.mxu0 0.0
    %3209 = vmatprep.subr.mxu0 0.0
    %3210 = vmatpush1.msra.mxu0 0.0
    %3211 = vmatprep.subr.mxu0 0.0
    %3212 = vmatpush1.msra.mxu0 0.0
    %3213 = vmatprep.subr.mxu0 0.0
    %3214 = vmatpush1.msra.mxu0 0.0
    %3215 = vmatprep.subr.mxu0 0.0
    %3216 = vmatpush1.msra.mxu0 0.0
    %3217 = vmatprep.subr.mxu0 0.0
    %3218 = vmatpush1.msra.mxu0 0.0
    %3219 = vmatprep.subr.mxu0 0.0
    %3220 = vmatpush1.msra.mxu0 0.0
    %3221 = vmatprep.subr.mxu0 0.0
    %3222 = vmatpush1.msra.mxu0 0.0
    %3223 = vmatprep.subr.mxu0 0.0
    %3224 = vmatpush1.msra.mxu0 0.0
    %3225 = vmatprep.subr.mxu0 0.0
    %3226 = vmatpush1.msra.mxu0 0.0
    %3227 = vmatprep.subr.mxu0 0.0
    %3228 = vmatpush1.msra.mxu0 0.0
    %3229 = vmatprep.subr.mxu0 0.0
    %3230 = vmatpush1.msra.mxu0 0.0
    %3231 = vmatprep.subr.mxu0 0.0
    %3232 = vmatpush1.msra.mxu0 0.0
    %3233 = vmatprep.subr.mxu0 0.0
    %3234 = vmatpush1.msra.mxu0 0.0
    %3235 = vmatprep.subr.mxu0 0.0
    %3236 = vmatpush1.msra.mxu0 0.0
    %3237 = vmatprep.mubr.f32.mxu0 0.0
    %3238 = vmatmul.mubr.f32.gmra.mrb[0].mxu0 %v3171
    %v3239 = vpop.f32.mrb[0].mxu0
    %v3240 = vadd.f32 0.0, %v3239
    %v3241 = vpop.f32.mrb[0].mxu0
    %3242 = vdwg.mxu0
    %3243 = vrot.lane.b32.xlu0 %v2088, 64
    %v3244 = vpop.permute.xlu0 %3243
    %v3247 = vsel %vm257, %v2784, 0
    %3249 = vmatprep.subr.mxu0 0.0
    %3250 = vmatpush1.msra.mxu0 %v3244
    %3251 = vmatprep.subr.mxu0 0.0
    %3252 = vmatpush1.msra.mxu0 0.0
    %3253 = vmatprep.subr.mxu0 0.0
    %3254 = vmatpush1.msra.mxu0 0.0
    %3255 = vmatprep.subr.mxu0 0.0
    %3256 = vmatpush1.msra.mxu0 0.0
    %3257 = vmatprep.subr.mxu0 0.0
    %3258 = vmatpush1.msra.mxu0 0.0
    %3259 = vmatprep.subr.mxu0 0.0
    %3260 = vmatpush1.msra.mxu0 0.0
    %3261 = vmatprep.subr.mxu0 0.0
    %3262 = vmatpush1.msra.mxu0 0.0
    %3263 = vmatprep.subr.mxu0 0.0
    %3264 = vmatpush1.msra.mxu0 0.0
    %3265 = vmatprep.subr.mxu0 0.0
    %3266 = vmatpush1.msra.mxu0 0.0
    %3267 = vmatprep.subr.mxu0 0.0
    %3268 = vmatpush1.msra.mxu0 0.0
    %3269 = vmatprep.subr.mxu0 0.0
    %3270 = vmatpush1.msra.mxu0 0.0
    %3271 = vmatprep.subr.mxu0 0.0
    %3272 = vmatpush1.msra.mxu0 0.0
    %3273 = vmatprep.subr.mxu0 0.0
    %3274 = vmatpush1.msra.mxu0 0.0
    %3275 = vmatprep.subr.mxu0 0.0
    %3276 = vmatpush1.msra.mxu0 0.0
    %3277 = vmatprep.subr.mxu0 0.0
    %3278 = vmatpush1.msra.mxu0 0.0
    %3279 = vmatprep.subr.mxu0 0.0
    %3280 = vmatpush1.msra.mxu0 0.0
    %3281 = vmatprep.subr.mxu0 0.0
    %3282 = vmatpush1.msra.mxu0 0.0
    %3283 = vmatprep.subr.mxu0 0.0
    %3284 = vmatpush1.msra.mxu0 0.0
    %3285 = vmatprep.subr.mxu0 0.0
    %3286 = vmatpush1.msra.mxu0 0.0
    %3287 = vmatprep.subr.mxu0 0.0
    %3288 = vmatpush1.msra.mxu0 0.0
    %3289 = vmatprep.subr.mxu0 0.0
    %3290 = vmatpush1.msra.mxu0 0.0
    %3291 = vmatprep.subr.mxu0 0.0
    %3292 = vmatpush1.msra.mxu0 0.0
    %3293 = vmatprep.subr.mxu0 0.0
    %3294 = vmatpush1.msra.mxu0 0.0
    %3295 = vmatprep.subr.mxu0 0.0
    %3296 = vmatpush1.msra.mxu0 0.0
    %3297 = vmatprep.subr.mxu0 0.0
    %3298 = vmatpush1.msra.mxu0 0.0
    %3299 = vmatprep.subr.mxu0 0.0
    %3300 = vmatpush1.msra.mxu0 0.0
    %3301 = vmatprep.subr.mxu0 0.0
    %3302 = vmatpush1.msra.mxu0 0.0
    %3303 = vmatprep.subr.mxu0 0.0
    %3304 = vmatpush1.msra.mxu0 0.0
    %3305 = vmatprep.subr.mxu0 0.0
    %3306 = vmatpush1.msra.mxu0 0.0
    %3307 = vmatprep.subr.mxu0 0.0
    %3308 = vmatpush1.msra.mxu0 0.0
    %3309 = vmatprep.subr.mxu0 0.0
    %3310 = vmatpush1.msra.mxu0 0.0
    %3311 = vmatprep.subr.mxu0 0.0
    %3312 = vmatpush1.msra.mxu0 0.0
    %3313 = vmatprep.mubr.f32.mxu0 0.0
    %3314 = vmatmul.mubr.f32.gmra.mrb[0].mxu0 %v3247
    %v3315 = vpop.f32.mrb[0].mxu0
    %v3316 = vadd.f32 0.0, %v3315
    %v3317 = vpop.f32.mrb[0].mxu0
    %3318 = vdwg.mxu0
    %3319 = vrot.lane.b32.xlu0 %v2090, 64
    %v3320 = vpop.permute.xlu0 %3319
    %v3323 = vsel %vm257, %v2786, 0
    %3325 = vmatprep.subr.mxu0 0.0
    %3326 = vmatpush1.msra.mxu0 %v3320
    %3327 = vmatprep.subr.mxu0 0.0
    %3328 = vmatpush1.msra.mxu0 0.0
    %3329 = vmatprep.subr.mxu0 0.0
    %3330 = vmatpush1.msra.mxu0 0.0
    %3331 = vmatprep.subr.mxu0 0.0
    %3332 = vmatpush1.msra.mxu0 0.0
    %3333 = vmatprep.subr.mxu0 0.0
    %3334 = vmatpush1.msra.mxu0 0.0
    %3335 = vmatprep.subr.mxu0 0.0
    %3336 = vmatpush1.msra.mxu0 0.0
    %3337 = vmatprep.subr.mxu0 0.0
    %3338 = vmatpush1.msra.mxu0 0.0
    %3339 = vmatprep.subr.mxu0 0.0
    %3340 = vmatpush1.msra.mxu0 0.0
    %3341 = vmatprep.subr.mxu0 0.0
    %3342 = vmatpush1.msra.mxu0 0.0
    %3343 = vmatprep.subr.mxu0 0.0
    %3344 = vmatpush1.msra.mxu0 0.0
    %3345 = vmatprep.subr.mxu0 0.0
    %3346 = vmatpush1.msra.mxu0 0.0
    %3347 = vmatprep.subr.mxu0 0.0
    %3348 = vmatpush1.msra.mxu0 0.0
    %3349 = vmatprep.subr.mxu0 0.0
    %3350 = vmatpush1.msra.mxu0 0.0
    %3351 = vmatprep.subr.mxu0 0.0
    %3352 = vmatpush1.msra.mxu0 0.0
    %3353 = vmatprep.subr.mxu0 0.0
    %3354 = vmatpush1.msra.mxu0 0.0
    %3355 = vmatprep.subr.mxu0 0.0
    %3356 = vmatpush1.msra.mxu0 0.0
    %3357 = vmatprep.subr.mxu0 0.0
    %3358 = vmatpush1.msra.mxu0 0.0
    %3359 = vmatprep.subr.mxu0 0.0
    %3360 = vmatpush1.msra.mxu0 0.0
    %3361 = vmatprep.subr.mxu0 0.0
    %3362 = vmatpush1.msra.mxu0 0.0
    %3363 = vmatprep.subr.mxu0 0.0
    %3364 = vmatpush1.msra.mxu0 0.0
    %3365 = vmatprep.subr.mxu0 0.0
    %3366 = vmatpush1.msra.mxu0 0.0
    %3367 = vmatprep.subr.mxu0 0.0
    %3368 = vmatpush1.msra.mxu0 0.0
    %3369 = vmatprep.subr.mxu0 0.0
    %3370 = vmatpush1.msra.mxu0 0.0
    %3371 = vmatprep.subr.mxu0 0.0
    %3372 = vmatpush1.msra.mxu0 0.0
    %3373 = vmatprep.subr.mxu0 0.0
    %3374 = vmatpush1.msra.mxu0 0.0
    %3375 = vmatprep.subr.mxu0 0.0
    %3376 = vmatpush1.msra.mxu0 0.0
    %3377 = vmatprep.subr.mxu0 0.0
    %3378 = vmatpush1.msra.mxu0 0.0
    %3379 = vmatprep.subr.mxu0 0.0
    %3380 = vmatpush1.msra.mxu0 0.0
    %3381 = vmatprep.subr.mxu0 0.0
    %3382 = vmatpush1.msra.mxu0 0.0
    %3383 = vmatprep.subr.mxu0 0.0
    %3384 = vmatpush1.msra.mxu0 0.0
    %3385 = vmatprep.subr.mxu0 0.0
    %3386 = vmatpush1.msra.mxu0 0.0
    %3387 = vmatprep.subr.mxu0 0.0
    %3388 = vmatpush1.msra.mxu0 0.0
    %3389 = vmatprep.mubr.f32.mxu0 0.0
    %3390 = vmatmul.mubr.f32.gmra.mrb[0].mxu0 %v3323
    %v3391 = vpop.f32.mrb[0].mxu0
    %v3392 = vadd.f32 0.0, %v3391
    %v3393 = vpop.f32.mrb[0].mxu0
    %3394 = vdwg.mxu0
    %3397 = vrot.lane.b32.xlu0 %v3012, 8
    %v3398 = vpop.permute.xlu0 %3397
    %3399 = vrot.lane.b32.xlu0 %v3088, 8
    %v3400 = vpop.permute.xlu0 %3399
    %3405 = vrot.lane.b32.xlu0 %v3164, 16
    %v3406 = vpop.permute.xlu0 %3405
    %3407 = vrot.lane.b32.xlu0 %v3240, 16
    %v3408 = vpop.permute.xlu0 %3407
    %3413 = vrot.lane.b32.xlu0 %v3316, 24
    %v3414 = vpop.permute.xlu0 %3413
    %3415 = vrot.lane.b32.xlu0 %v3392, 24
    %v3416 = vpop.permute.xlu0 %3415
    %v3419 = vsel %vm257, %v2860, %v3398
    %v3420 = vsel %vm257, %v2936, %v3400
    %v3421 = vsel %vm1586, %v3419, %v3406
    %v3422 = vsel %vm1586, %v3420, %v3408
    %v3423 = vsel %vm1589, %v3421, %v3414
    %v3424 = vsel %vm1589, %v3422, %v3416
    %s3425 = scalar_lea.vmem %s6, 32
    %v3426 = vld [vmem:[%s3425] sm:$0xff]
    %v3427 = vld [vmem:[%s3425 + $0x8] sm:$0xff]
    %v3428 = vld [vmem:[%s3425 + $0x10] sm:$0xff]
    %v3429 = vld [vmem:[%s3425 + $0x18] sm:$0xff]
    %s3430 = scalar_lea.vmem %s7, 1
    %v3431 = vld [vmem:[%s3430] sm:$0x1]
    %v3433 = vlaneseq
    %v3434 = vshrl.u32 %v3433, 7
    %v3435 = vsub.s32 0, %v3434
    %v3436 = vrot.slane %v3431, %v3435
    %v3439 = vsel %vm97, %v3423, 0
    %v3442 = vsel %vm97, %v3424, 0
    %3444 = vmatprep.subr.mxu0 0.0
    %3445 = vmatpush1.msra.mxu0 %v3426
    %3446 = vmatprep.subr.mxu0 0.0
    %3447 = vmatpush1.msra.mxu0 %v3427
    %3448 = vmatprep.subr.mxu0 0.0
    %3449 = vmatpush1.msra.mxu0 %v3428
    %3450 = vmatprep.subr.mxu0 0.0
    %3451 = vmatpush1.msra.mxu0 %v3429
    %3452 = vmatprep.subr.mxu0 0.0
    %3453 = vmatpush1.msra.mxu0 0.0
    %3454 = vmatprep.subr.mxu0 0.0
    %3455 = vmatpush1.msra.mxu0 0.0
    %3456 = vmatprep.subr.mxu0 0.0
    %3457 = vmatpush1.msra.mxu0 0.0
    %3458 = vmatprep.subr.mxu0 0.0
    %3459 = vmatpush1.msra.mxu0 0.0
    %3460 = vmatprep.subr.mxu0 0.0
    %3461 = vmatpush1.msra.mxu0 0.0
    %3462 = vmatprep.subr.mxu0 0.0
    %3463 = vmatpush1.msra.mxu0 0.0
    %3464 = vmatprep.subr.mxu0 0.0
    %3465 = vmatpush1.msra.mxu0 0.0
    %3466 = vmatprep.subr.mxu0 0.0
    %3467 = vmatpush1.msra.mxu0 0.0
    %3468 = vmatprep.subr.mxu0 0.0
    %3469 = vmatpush1.msra.mxu0 0.0
    %3470 = vmatprep.subr.mxu0 0.0
    %3471 = vmatpush1.msra.mxu0 0.0
    %3472 = vmatprep.subr.mxu0 0.0
    %3473 = vmatpush1.msra.mxu0 0.0
    %3474 = vmatprep.subr.mxu0 0.0
    %3475 = vmatpush1.msra.mxu0 0.0
    %3476 = vmatprep.subr.mxu0 0.0
    %3477 = vmatpush1.msra.mxu0 0.0
    %3478 = vmatprep.subr.mxu0 0.0
    %3479 = vmatpush1.msra.mxu0 0.0
    %3480 = vmatprep.subr.mxu0 0.0
    %3481 = vmatpush1.msra.mxu0 0.0
    %3482 = vmatprep.subr.mxu0 0.0
    %3483 = vmatpush1.msra.mxu0 0.0
    %3484 = vmatprep.subr.mxu0 0.0
    %3485 = vmatpush1.msra.mxu0 0.0
    %3486 = vmatprep.subr.mxu0 0.0
    %3487 = vmatpush1.msra.mxu0 0.0
    %3488 = vmatprep.subr.mxu0 0.0
    %3489 = vmatpush1.msra.mxu0 0.0
    %3490 = vmatprep.subr.mxu0 0.0
    %3491 = vmatpush1.msra.mxu0 0.0
    %3492 = vmatprep.subr.mxu0 0.0
    %3493 = vmatpush1.msra.mxu0 0.0
    %3494 = vmatprep.subr.mxu0 0.0
    %3495 = vmatpush1.msra.mxu0 0.0
    %3496 = vmatprep.subr.mxu0 0.0
    %3497 = vmatpush1.msra.mxu0 0.0
    %3498 = vmatprep.subr.mxu0 0.0
    %3499 = vmatpush1.msra.mxu0 0.0
    %3500 = vmatprep.subr.mxu0 0.0
    %3501 = vmatpush1.msra.mxu0 0.0
    %3502 = vmatprep.subr.mxu0 0.0
    %3503 = vmatpush1.msra.mxu0 0.0
    %3504 = vmatprep.subr.mxu0 0.0
    %3505 = vmatpush1.msra.mxu0 0.0
    %3506 = vmatprep.subr.mxu0 0.0
    %3507 = vmatpush1.msra.mxu0 0.0
    %3508 = vmatprep.mubr.f32.mxu0 0.0
    %3509 = vmatmul.mubr.f32.gmra.mrb[0].mxu0 %v3439
    %v3510 = vpop.f32.mrb[0].mxu0
    %v3511 = vadd.f32 %v3436, %v3510
    %v3512 = vpop.f32.mrb[0].mxu0
    %3513 = vmatprep.mubr.f32.mxu0 0.0
    %3514 = vmatmul.mubr.f32.gmra.mrb[0].mxu0 %v3442
    %v3515 = vpop.f32.mrb[0].mxu0
    %v3516 = vadd.f32 %v3436, %v3515
    %v3517 = vpop.f32.mrb[0].mxu0
    %3518 = vdwg.mxu0
    %v3519 = vadd.f32 %v3511, %v1981
    %v3520 = vadd.f32 %v3516, %v1982
    %s3521 = scalar_lea.vmem %s8, 1
    %v3522 = vld [vmem:[%s3521] sm:$0x1]
    %s3523 = scalar_lea.vmem %s9, 1
    %v3524 = vld [vmem:[%s3523] sm:$0x1]
    %v3525 = vsel %vm97, %v3519, 0.0
    %3526 = vadd.xlane.f32.xlu0 %v3525
    %v3527 = vpop.xlane.xlu0 %3526
    %v3528 = vsel %vm97, %v3520, 0.0
    %3529 = vadd.xlane.f32.xlu0 %v3528
    %v3530 = vpop.xlane.xlu0 %3529
    %v3531 = vmul.f32 %v3527, %v104
    %v3532 = vmul.f32 %v3530, %v104
    %v3533 = vsub.f32 %v3519, %v3531
    %v3534 = vsub.f32 %v3520, %v3532
    %v3535 = vmul.f32 %v3533, %v3533
    %v3536 = vmul.f32 %v3534, %v3534
    %v3537 = vsel %vm97, %v3535, 0.0
    %3538 = vadd.xlane.f32.xlu0 %v3537
    %v3539 = vpop.xlane.xlu0 %3538
    %v3540 = vsel %vm97, %v3536, 0.0
    %3541 = vadd.xlane.f32.xlu0 %v3540
    %v3542 = vpop.xlane.xlu0 %3541
    %v3543 = vmul.f32 %v3539, %v104
    %v3544 = vmul.f32 %v3542, %v104
    %v3545 = vadd.f32 %v3543, 1e-12
    %v3546 = vadd.f32 %v3544, 1e-12
    %v3547 = vrsqrt.pop %v3545
    %v3548 = vrsqrt.pop %v3546
    %v3549 = vmul.f32 %v3533, %v3547
    %v3550 = vmul.f32 %v3534, %v3548
    %v3552 = vlaneseq
    %v3553 = vshrl.u32 %v3552, 7
    %v3554 = vsub.s32 0, %v3553
    %v3555 = vrot.slane %v3522, %v3554
    %v3557 = vmul.f32 %v3549, %v3555
    %v3558 = vmul.f32 %v3550, %v3555
    %v3560 = vlaneseq
    %v3561 = vshrl.u32 %v3560, 7
    %v3562 = vsub.s32 0, %v3561
    %v3563 = vrot.slane %v3524, %v3562
    %v3565 = vadd.f32 %v3557, %v3563
    %v3566 = vadd.f32 %v3558, %v3563
    %s3567 = scalar_lea.vmem [#allocation7], 32
    %v3568 = vld [vmem:[%s3567] sm:$0xff]
    %v3569 = vld [vmem:[%s3567 + $0x8] sm:$0xff]
    %v3570 = vld [vmem:[%s3567 + $0x10] sm:$0xff]
    %v3571 = vld [vmem:[%s3567 + $0x18] sm:$0xff]
    %s3572 = scalar_lea.vmem %s11, 1
    %v3573 = vld [vmem:[%s3572] sm:$0x1]
    %v3575 = vlaneseq
    %v3576 = vshrl.u32 %v3575, 7
    %v3577 = vsub.s32 0, %v3576
    %v3578 = vrot.slane %v3573, %v3577
    %v3581 = vsel %vm97, %v3565, 0
    %v3584 = vsel %vm97, %v3566, 0
    %3586 = vmatprep.subr.mxu0 0.0
    %3587 = vmatpush1.msra.mxu0 %v3568
    %3588 = vmatprep.subr.mxu0 0.0
    %3589 = vmatpush1.msra.mxu0 %v3569
    %3590 = vmatprep.subr.mxu0 0.0
    %3591 = vmatpush1.msra.mxu0 %v3570
    %3592 = vmatprep.subr.mxu0 0.0
    %3593 = vmatpush1.msra.mxu0 %v3571
    %3594 = vmatprep.subr.mxu0 0.0
    %3595 = vmatpush1.msra.mxu0 0.0
    %3596 = vmatprep.subr.mxu0 0.0
    %3597 = vmatpush1.msra.mxu0 0.0
    %3598 = vmatprep.subr.mxu0 0.0
    %3599 = vmatpush1.msra.mxu0 0.0
    %3600 = vmatprep.subr.mxu0 0.0
    %3601 = vmatpush1.msra.mxu0 0.0
    %3602 = vmatprep.subr.mxu0 0.0
    %3603 = vmatpush1.msra.mxu0 0.0
    %3604 = vmatprep.subr.mxu0 0.0
    %3605 = vmatpush1.msra.mxu0 0.0
    %3606 = vmatprep.subr.mxu0 0.0
    %3607 = vmatpush1.msra.mxu0 0.0
    %3608 = vmatprep.subr.mxu0 0.0
    %3609 = vmatpush1.msra.mxu0 0.0
    %3610 = vmatprep.subr.mxu0 0.0
    %3611 = vmatpush1.msra.mxu0 0.0
    %3612 = vmatprep.subr.mxu0 0.0
    %3613 = vmatpush1.msra.mxu0 0.0
    %3614 = vmatprep.subr.mxu0 0.0
    %3615 = vmatpush1.msra.mxu0 0.0
    %3616 = vmatprep.subr.mxu0 0.0
    %3617 = vmatpush1.msra.mxu0 0.0
    %3618 = vmatprep.subr.mxu0 0.0
    %3619 = vmatpush1.msra.mxu0 0.0
    %3620 = vmatprep.subr.mxu0 0.0
    %3621 = vmatpush1.msra.mxu0 0.0
    %3622 = vmatprep.subr.mxu0 0.0
    %3623 = vmatpush1.msra.mxu0 0.0
    %3624 = vmatprep.subr.mxu0 0.0
    %3625 = vmatpush1.msra.mxu0 0.0
    %3626 = vmatprep.subr.mxu0 0.0
    %3627 = vmatpush1.msra.mxu0 0.0
    %3628 = vmatprep.subr.mxu0 0.0
    %3629 = vmatpush1.msra.mxu0 0.0
    %3630 = vmatprep.subr.mxu0 0.0
    %3631 = vmatpush1.msra.mxu0 0.0
    %3632 = vmatprep.subr.mxu0 0.0
    %3633 = vmatpush1.msra.mxu0 0.0
    %3634 = vmatprep.subr.mxu0 0.0
    %3635 = vmatpush1.msra.mxu0 0.0
    %3636 = vmatprep.subr.mxu0 0.0
    %3637 = vmatpush1.msra.mxu0 0.0
    %3638 = vmatprep.subr.mxu0 0.0
    %3639 = vmatpush1.msra.mxu0 0.0
    %3640 = vmatprep.subr.mxu0 0.0
    %3641 = vmatpush1.msra.mxu0 0.0
    %3642 = vmatprep.subr.mxu0 0.0
    %3643 = vmatpush1.msra.mxu0 0.0
    %3644 = vmatprep.subr.mxu0 0.0
    %3645 = vmatpush1.msra.mxu0 0.0
    %3646 = vmatprep.subr.mxu0 0.0
    %3647 = vmatpush1.msra.mxu0 0.0
    %3648 = vmatprep.subr.mxu0 0.0
    %3649 = vmatpush1.msra.mxu0 0.0
    %3650 = vmatprep.mubr.f32.mxu0 0.0
    %3651 = vmatmul.mubr.f32.gmra.mrb[0].mxu0 %v3581
    %v3652 = vpop.f32.mrb[0].mxu0
    %v3653 = vadd.f32 %v3578, %v3652
    %v3654 = vpop.f32.mrb[0].mxu0
    %3655 = vmatprep.mubr.f32.mxu0 0.0
    %3656 = vmatmul.mubr.f32.gmra.mrb[0].mxu0 %v3584
    %v3657 = vpop.f32.mrb[0].mxu0
    %v3658 = vadd.f32 %v3578, %v3657
    %v3659 = vpop.f32.mrb[0].mxu0
    %3660 = vdwg.mxu0
    %v3661 = vmul.f32 %v3653, 0.5
    %v3662 = vmul.f32 %v3658, 0.5
    %v3663 = vmul.f32 %v3653, 0.044715
    %v3664 = vmul.f32 %v3658, 0.044715
    %v3665 = vmul.f32 %v3663, %v3653
    %v3666 = vmul.f32 %v3664, %v3658
    %v3667 = vmul.f32 %v3665, %v3653
    %v3668 = vmul.f32 %v3666, %v3658
    %v3669 = vadd.f32 %v3653, %v3667
    %v3670 = vadd.f32 %v3658, %v3668
    %v3671 = vmul.f32 %v3669, 0.7978846
    %v3672 = vmul.f32 %v3670, 0.7978846
    %v3673 = vtanh.pop %v3671
    %v3674 = vtanh.pop %v3672
    %v3675 = vadd.f32 %v3673, 1.0
    %v3676 = vadd.f32 %v3674, 1.0
    %v3677 = vmul.f32 %v3661, %v3675
    %v3678 = vmul.f32 %v3662, %v3676
    %s3679 = scalar_lea.vmem %s12, 64
    %v3680 = vld [vmem:[%s3679] sm:$0xff]
    %v3681 = vld [vmem:[%s3679 + $0x8] sm:$0xff]
    %v3682 = vld [vmem:[%s3679 + $0x10] sm:$0xff]
    %v3683 = vld [vmem:[%s3679 + $0x18] sm:$0xff]
    %v3684 = vld [vmem:[%s3679 + $0x20] sm:$0xff]
    %v3685 = vld [vmem:[%s3679 + $0x28] sm:$0xff]
    %v3686 = vld [vmem:[%s3679 + $0x30] sm:$0xff]
    %v3687 = vld [vmem:[%s3679 + $0x38] sm:$0xff]
    %s3688 = scalar_lea.vmem %s13, 1
    %v3689 = vld [vmem:[%s3688] sm:$0x1]
    %v3691 = vlaneseq
    %v3692 = vshrl.u32 %v3691, 7
    %v3693 = vsub.s32 0, %v3692
    %v3694 = vrot.slane %v3689, %v3693
    %v3697 = vsel %vm1855, %v3677, 0
    %v3700 = vsel %vm1855, %v3678, 0
    %3702 = vmatprep.subr.mxu0 0.0
    %3703 = vmatpush1.msra.mxu0 %v3680
    %3704 = vmatprep.subr.mxu0 0.0
    %3705 = vmatpush1.msra.mxu0 %v3681
    %3706 = vmatprep.subr.mxu0 0.0
    %3707 = vmatpush1.msra.mxu0 %v3682
    %3708 = vmatprep.subr.mxu0 0.0
    %3709 = vmatpush1.msra.mxu0 %v3683
    %3710 = vmatprep.subr.mxu0 0.0
    %3711 = vmatpush1.msra.mxu0 %v3684
    %3712 = vmatprep.subr.mxu0 0.0
    %3713 = vmatpush1.msra.mxu0 %v3685
    %3714 = vmatprep.subr.mxu0 0.0
    %3715 = vmatpush1.msra.mxu0 %v3686
    %3716 = vmatprep.subr.mxu0 0.0
    %3717 = vmatpush1.msra.mxu0 %v3687
    %3718 = vmatprep.subr.mxu0 0.0
    %3719 = vmatpush1.msra.mxu0 0.0
    %3720 = vmatprep.subr.mxu0 0.0
    %3721 = vmatpush1.msra.mxu0 0.0
    %3722 = vmatprep.subr.mxu0 0.0
    %3723 = vmatpush1.msra.mxu0 0.0
    %3724 = vmatprep.subr.mxu0 0.0
    %3725 = vmatpush1.msra.mxu0 0.0
    %3726 = vmatprep.subr.mxu0 0.0
    %3727 = vmatpush1.msra.mxu0 0.0
    %3728 = vmatprep.subr.mxu0 0.0
    %3729 = vmatpush1.msra.mxu0 0.0
    %3730 = vmatprep.subr.mxu0 0.0
    %3731 = vmatpush1.msra.mxu0 0.0
    %3732 = vmatprep.subr.mxu0 0.0
    %3733 = vmatpush1.msra.mxu0 0.0
    %3734 = vmatprep.subr.mxu0 0.0
    %3735 = vmatpush1.msra.mxu0 0.0
    %3736 = vmatprep.subr.mxu0 0.0
    %3737 = vmatpush1.msra.mxu0 0.0
    %3738 = vmatprep.subr.mxu0 0.0
    %3739 = vmatpush1.msra.mxu0 0.0
    %3740 = vmatprep.subr.mxu0 0.0
    %3741 = vmatpush1.msra.mxu0 0.0
    %3742 = vmatprep.subr.mxu0 0.0
    %3743 = vmatpush1.msra.mxu0 0.0
    %3744 = vmatprep.subr.mxu0 0.0
    %3745 = vmatpush1.msra.mxu0 0.0
    %3746 = vmatprep.subr.mxu0 0.0
    %3747 = vmatpush1.msra.mxu0 0.0
    %3748 = vmatprep.subr.mxu0 0.0
    %3749 = vmatpush1.msra.mxu0 0.0
    %3750 = vmatprep.subr.mxu0 0.0
    %3751 = vmatpush1.msra.mxu0 0.0
    %3752 = vmatprep.subr.mxu0 0.0
    %3753 = vmatpush1.msra.mxu0 0.0
    %3754 = vmatprep.subr.mxu0 0.0
    %3755 = vmatpush1.msra.mxu0 0.0
    %3756 = vmatprep.subr.mxu0 0.0
    %3757 = vmatpush1.msra.mxu0 0.0
    %3758 = vmatprep.subr.mxu0 0.0
    %3759 = vmatpush1.msra.mxu0 0.0
    %3760 = vmatprep.subr.mxu0 0.0
    %3761 = vmatpush1.msra.mxu0 0.0
    %3762 = vmatprep.subr.mxu0 0.0
    %3763 = vmatpush1.msra.mxu0 0.0
    %3764 = vmatprep.subr.mxu0 0.0
    %3765 = vmatpush1.msra.mxu0 0.0
    %3766 = vmatprep.mubr.f32.mxu0 0.0
    %3767 = vmatmul.mubr.f32.gmra.mrb[0].mxu0 %v3697
    %v3768 = vpop.f32.mrb[0].mxu0
    %v3769 = vadd.f32 %v3694, %v3768
    %v3770 = vpop.f32.mrb[0].mxu0
    %3771 = vmatprep.mubr.f32.mxu0 0.0
    %3772 = vmatmul.mubr.f32.gmra.mrb[0].mxu0 %v3700
    %v3773 = vpop.f32.mrb[0].mxu0
    %v3774 = vadd.f32 %v3694, %v3773
    %v3775 = vpop.f32.mrb[0].mxu0
    %3776 = vdwg.mxu0
    %v3777 = vadd.f32 %v3769, %v3565
    %v3778 = vadd.f32 %v3774, %v3566
    %s3779 = scalar_lea.vmem %s14, 1
    %v3780 = vld [vmem:[%s3779] sm:$0x1]
    %s3781 = scalar_lea.vmem %s15, 1
    %v3782 = vld [vmem:[%s3781] sm:$0x1]
    %v3783 = vsel %vm97, %v3777, 0.0
    %3784 = vadd.xlane.f32.xlu0 %v3783
    %v3785 = vpop.xlane.xlu0 %3784
    %v3786 = vsel %vm97, %v3778, 0.0
    %3787 = vadd.xlane.f32.xlu0 %v3786
    %v3788 = vpop.xlane.xlu0 %3787
    %v3789 = vmul.f32 %v3785, %v104
    %v3790 = vmul.f32 %v3788, %v104
    %v3791 = vsub.f32 %v3777, %v3789
    %v3792 = vsub.f32 %v3778, %v3790
    %v3793 = vmul.f32 %v3791, %v3791
    %v3794 = vmul.f32 %v3792, %v3792
    %v3795 = vsel %vm97, %v3793, 0.0
    %3796 = vadd.xlane.f32.xlu0 %v3795
    %v3797 = vpop.xlane.xlu0 %3796
    %v3798 = vsel %vm97, %v3794, 0.0
    %3799 = vadd.xlane.f32.xlu0 %v3798
    %v3800 = vpop.xlane.xlu0 %3799
    %v3801 = vmul.f32 %v3797, %v104
    %v3802 = vmul.f32 %v3800, %v104
    %v3803 = vadd.f32 %v3801, 1e-12
    %v3804 = vadd.f32 %v3802, 1e-12
    %v3805 = vrsqrt.pop %v3803
    %v3806 = vrsqrt.pop %v3804
    %v3807 = vmul.f32 %v3791, %v3805
    %v3808 = vmul.f32 %v3792, %v3806
    %v3810 = vlaneseq
    %v3811 = vshrl.u32 %v3810, 7
    %v3812 = vsub.s32 0, %v3811
    %v3813 = vrot.slane %v3780, %v3812
    %v3815 = vmul.f32 %v3807, %v3813
    %v3816 = vmul.f32 %v3808, %v3813
    %v3818 = vlaneseq
    %v3819 = vshrl.u32 %v3818, 7
    %v3820 = vsub.s32 0, %v3819
    %v3821 = vrot.slane %v3782, %v3820
    %v3823 = vadd.f32 %v3815, %v3821
    %v3824 = vadd.f32 %v3816, %v3821
    %v3827 = vrot.slane %v3824, 7
    %vm3828 = vcmask 1041409
    %v3829 = vsel %vm3828, %v3827, %v3823
    %vm3831 = vcmask 254976
    %3832 = vst.msk [vmem:[#allocation8] sm:$0x3] %vm3831, %v3829
    // Predicated region
    $region78: #{tpu_custom_call.1} parent=1 // pred_check
      _
    $region79: #{tpu_custom_call.1} parent=1 // pred_check_branch
      %3834 = sbr.rel (0) target = $region81
    $region80: #{tpu_custom_call.1} parent=1 // pred_region
      %s3836 = ssub.s32 32, 32
      %3837 = vsyncadd [#allocation4], %s3836
      %s3839 = sshll.u32 [#allocation8], 4
      %s3840 = int_to_ptr.vmem [resolvable:$true] %s3839
      %3842 = dma.vmem_to_hbm [thread:$0]  %s3840, 32, %s16, [#allocation4]
    $region81: #{tpu_custom_call.1} parent=1 // pred_fallthru
      _
    // Predicated region
    $region82: #{tpu_custom_call.1} parent=1 // pred_check
      _
    $region83: #{tpu_custom_call.1} parent=1 // pred_check_branch
      %3844 = sbr.rel (0) target = $region85
    $region84: #{tpu_custom_call.1} parent=1 // pred_region
      %3845 = dma.done [#allocation4], 32
    $region85: #{tpu_custom_call.1} parent=1 // pred_fallthru
      _
    %3846 = vsyncpa [#allocation3], 1
    %3847 = vsyncpa [#allocation6], 1
    %3848 = vsyncpa [#allocation4], 1

</llo_original>
